<compile_context>
chip_gen: v6e
topology: v6e:2x2x1
jax: 0.10.0
libtpu: 0.0.40
codegen_flags: <defaults>
</compile_context>

<pallas_src>
import jax
import jax.numpy as jnp
from jax.experimental import pallas as pl
from jax.experimental.pallas import tpu as pltpu

# ---- configuration (mirrors DropGCN.__init__ / args) ----
INPUT_DIM = 8
HIDDEN_DIM = 32          # args.hidden_dim
OUTPUT_DIM = 4
NUM_LAYERS = 4
NUM_PERTURBATIONS = 8
P_DROP = 0.2             # p (node-drop bernoulli probability)
DROPOUT = 0.0            # args.dropout = 0.0 -> F.dropout is identity (deterministic)
BN_EPS = 1e-5

N_NODES = 16
N_GRAPHS = 2


def _vmem_specs(n):
    return [pl.BlockSpec(memory_space=pltpu.MemorySpace.VMEM) for _ in range(n)]


# ---------------- single fused Pallas kernel ----------------

def drop_gcn_fused_kernel(*refs):
    """Fused DropGCN forward.

    Ref layout (all f32):
      [0] x      (N, P*Fin)   node-dropped input, perturbations packed on lanes
      [1] a      (N, N)       D^-1/2 (A + I) D^-1/2
      [2] pool   (G, N)       one-hot graph membership
      [3] kavg   (P*H, H)     kron(1_P/P, I_H): per-feature mean over p blocks
      [4] ktile  (H, P*H)     kron(1_P^T, I_H): tile per-feature vec over p blocks
      then NUM_LAYERS   x (w_blk (P*Fin_i, P*H), gamma (1,H), beta (1,H))
      then NUM_LAYERS+1 x (fw_packed (P*F_i, C), fb (1, C))
      last: o (G, C)
    """
    x_ref, a_ref, pool_ref, kavg_ref, ktile_ref = refs[0:5]
    conv_refs = [refs[5 + 3 * i: 8 + 3 * i] for i in range(NUM_LAYERS)]
    base = 5 + 3 * NUM_LAYERS
    fc_refs = [refs[base + 2 * i: base + 2 * (i + 1)] for i in range(NUM_LAYERS + 1)]
    o_ref = refs[base + 2 * (NUM_LAYERS + 1)]

    a = a_ref[...]                       # (N, N)
    pool = pool_ref[...]                 # (G, N)
    kavg = kavg_ref[...]                 # (P*H, H)
    ktile = ktile_ref[...]               # (H, P*H)

    def readout(hp, fwp_ref, fb_ref):
        # mean over perturbations -> global_add_pool -> Linear, all folded into
        # (pool @ hp) @ fw_packed + fb   with fw_packed = tile(fw, P)/P.
        pooled = jnp.dot(pool, hp, preferred_element_type=jnp.float32)      # (G, P*F)
        return jnp.dot(pooled, fwp_ref[...],
                       preferred_element_type=jnp.float32) + fb_ref[...]    # (G, C)

    hp = x_ref[...]                                                         # (N, P*Fin)
    out = readout(hp, *fc_refs[0])

    for i in range(NUM_LAYERS):
        w_blk_ref, gamma_ref, beta_ref = conv_refs[i]
        # GCNConv: A_hat @ (X W) for all P perturbations as two lane-dense dots.
        xw = jnp.dot(hp, w_blk_ref[...], preferred_element_type=jnp.float32)  # (N, P*H)
        h = jnp.dot(a, xw, preferred_element_type=jnp.float32)                # (N, P*H)
        # (GCNConv bias folded: a per-feature constant offset cancels exactly
        #  under training-mode BatchNorm.)
        # BatchNorm1d training mode: biased batch stats over all P*N rows.
        col_mean = jnp.mean(h, axis=0, keepdims=True)                         # (1, P*H)
        col_sq = jnp.mean(h * h, axis=0, keepdims=True)                       # (1, P*H)
        mean = jnp.dot(col_mean, kavg, preferred_element_type=jnp.float32)    # (1, H)
        sqmean = jnp.dot(col_sq, kavg, preferred_element_type=jnp.float32)    # (1, H)
        var = sqmean - mean * mean
        s = gamma_ref[...] * jax.lax.rsqrt(var + BN_EPS)                      # (1, H)
        off = beta_ref[...] - s * mean                                        # (1, H)
        s_t = jnp.dot(s, ktile, preferred_element_type=jnp.float32)           # (1, P*H)
        off_t = jnp.dot(off, ktile, preferred_element_type=jnp.float32)       # (1, P*H)
        hp = jnp.maximum(h * s_t + off_t, 0.0)                 # fused BN affine + ReLU
        out = out + readout(hp, *fc_refs[i + 1])

    # TODO(synk): F.dropout(p=args.dropout) on the readouts is omitted since
    # args.dropout = 0.0 (deterministic identity).
    # args.dataset not in ['ogbg-moltox21', 'ogbg-molhiv'] -> log_softmax.
    m = jnp.max(out, axis=-1, keepdims=True)
    sh = out - m
    lse = jnp.log(jnp.sum(jnp.exp(sh), axis=-1, keepdims=True))
    o_ref[...] = sh - lse


# ---------------- glue (graph / parameter setup in plain JAX) ----------------

def build_norm_adj(edge_index, num_nodes):
    """Dense D^{-1/2} (A + I) D^{-1/2}, matching PyG GCNConv normalization."""
    src, dst = edge_index
    a = jnp.zeros((num_nodes, num_nodes), jnp.float32)
    a = a.at[dst, src].add(1.0)                       # message src -> dst
    a = a + jnp.eye(num_nodes, dtype=jnp.float32)     # self loops
    deg = jnp.sum(a, axis=1)
    dinv = jax.lax.rsqrt(deg)                         # deg >= 1 (self loops)
    return a * dinv[:, None] * dinv[None, :]


def init_params(key):
    params = {'convs': [], 'fcs': []}
    dims_in = [INPUT_DIM] + [HIDDEN_DIM] * (NUM_LAYERS - 1)
    keys = jax.random.split(key, NUM_LAYERS + 2 * (NUM_LAYERS + 1))
    for i in range(NUM_LAYERS):
        fin, fout = dims_in[i], HIDDEN_DIM
        scale = (2.0 / (fin + fout)) ** 0.5           # glorot-style
        w = scale * jax.random.normal(keys[i], (fin, fout), jnp.float32)
        b = jnp.zeros((1, fout), jnp.float32)         # GCNConv bias (zero init)
        gamma = jnp.ones((1, fout), jnp.float32)
        beta = jnp.zeros((1, fout), jnp.float32)
        params['convs'].append((w, b, gamma, beta))
    fc_in = [INPUT_DIM] + [HIDDEN_DIM] * NUM_LAYERS
    for i in range(NUM_LAYERS + 1):
        fin = fc_in[i]
        scale = (1.0 / fin) ** 0.5
        kw = keys[NUM_LAYERS + 2 * i]
        kb = keys[NUM_LAYERS + 2 * i + 1]
        w = scale * jax.random.normal(kw, (fin, OUTPUT_DIM), jnp.float32)
        b = scale * jax.random.uniform(kb, (1, OUTPUT_DIM), jnp.float32, -1.0, 1.0)
        params['fcs'].append((w, b))
    return params


def drop_gcn_forward(params, x, edge_index, batch, drop_key):
    P = NUM_PERTURBATIONS
    H = HIDDEN_DIM
    n, fin = x.shape
    a = build_norm_adj(edge_index, n)
    pool = jax.nn.one_hot(batch, N_GRAPHS, axis=0, dtype=jnp.float32)       # (G, N)

    # Per-perturbation node dropout (torch.bernoulli mask), packed as (N, P*Fin).
    drop = jax.random.bernoulli(drop_key, P_DROP, (P, n))
    xp = jnp.where(drop[:, :, None], 0.0, jnp.broadcast_to(x, (P, n, fin)))
    xp_packed = jnp.transpose(xp, (1, 0, 2)).reshape(n, P * fin).astype(jnp.float32)

    eye_p = jnp.eye(P, dtype=jnp.float32)
    eye_h = jnp.eye(H, dtype=jnp.float32)
    kavg = jnp.kron(jnp.ones((P, 1), jnp.float32) / P, eye_h)               # (P*H, H)
    ktile = jnp.kron(jnp.ones((1, P), jnp.float32), eye_h)                  # (H, P*H)

    inputs = [xp_packed, a, pool, kavg, ktile]
    for (w, _b, gamma, beta) in params['convs']:
        # Block-diagonal weight: all P perturbations in one matmul.
        # GCNConv bias _b is folded away (cancels under training-mode BN).
        inputs += [jnp.kron(eye_p, w), gamma, beta]
    for (fw, fb) in params['fcs']:
        inputs += [jnp.tile(fw, (P, 1)) / P, fb]      # folds mean-over-P into the FC

    return pl.pallas_call(
        drop_gcn_fused_kernel,
        out_shape=jax.ShapeDtypeStruct((N_GRAPHS, OUTPUT_DIM), jnp.float32),
        in_specs=_vmem_specs(len(inputs)),
        out_specs=pl.BlockSpec(memory_space=pltpu.MemorySpace.VMEM),
    )(*inputs)


if __name__ == "__main__":
    key = jax.random.PRNGKey(0)
    k_param, k_x, k_drop = jax.random.split(key, 3)

    params = init_params(k_param)

    # Two 8-node cycle graphs (both edge directions), 16 nodes total.
    base = jnp.arange(8, dtype=jnp.int32)
    nxt = (base + 1) % 8
    src = jnp.concatenate([base, nxt, base + 8, nxt + 8])
    dst = jnp.concatenate([nxt, base, nxt + 8, base + 8])
    edge_index = jnp.stack([src, dst])                        # (2, 32)
    batch = jnp.concatenate([jnp.zeros(8, jnp.int32),
                             jnp.ones(8, jnp.int32)])         # (16,)
    x = jax.random.normal(k_x, (N_NODES, INPUT_DIM), jnp.float32)

    fwd = jax.jit(lambda xx: drop_gcn_forward(params, xx, edge_index, batch, k_drop))
    out = fwd(x)
    jax.block_until_ready(out)
    assert out.shape == (N_GRAPHS, OUTPUT_DIM)
    print("KERNEL_OK")
</pallas_src>

<mosaic_0001>
module attributes {stable_mosaic.version = 11 : i64} {
  func.func private @main(%arg0: i32) attributes {dimension_semantics = [#tpu.dimension_semantics<core_parallel>], iteration_bounds = array<i64: 2>, tpu.core_type = #tpu.core_type<sc_scalar_subcore>, window_params = []} {
    return
  }
}

module attributes {stable_mosaic.version = 11 : i64} {
  func.func private @main(%arg0: i32) attributes {dimension_semantics = [#tpu.dimension_semantics<core_parallel>], iteration_bounds = array<i64: 2>, tpu.core_type = #tpu.core_type<sc_scalar_subcore>, window_params = []} {
    return
  }
}

module attributes {stable_mosaic.version = 11 : i64} {
  func.func @drop_gcn_fused_kernel(%arg0: memref<16x64xf32, #tpu.memory_space<vmem>>, %arg1: memref<16x16xf32, #tpu.memory_space<vmem>>, %arg2: memref<2x16xf32, #tpu.memory_space<vmem>>, %arg3: memref<256x32xf32, #tpu.memory_space<vmem>>, %arg4: memref<32x256xf32, #tpu.memory_space<vmem>>, %arg5: memref<64x256xf32, #tpu.memory_space<vmem>>, %arg6: memref<1x32xf32, #tpu.memory_space<vmem>>, %arg7: memref<1x32xf32, #tpu.memory_space<vmem>>, %arg8: memref<256x256xf32, #tpu.memory_space<vmem>>, %arg9: memref<1x32xf32, #tpu.memory_space<vmem>>, %arg10: memref<1x32xf32, #tpu.memory_space<vmem>>, %arg11: memref<256x256xf32, #tpu.memory_space<vmem>>, %arg12: memref<1x32xf32, #tpu.memory_space<vmem>>, %arg13: memref<1x32xf32, #tpu.memory_space<vmem>>, %arg14: memref<256x256xf32, #tpu.memory_space<vmem>>, %arg15: memref<1x32xf32, #tpu.memory_space<vmem>>, %arg16: memref<1x32xf32, #tpu.memory_space<vmem>>, %arg17: memref<64x4xf32, #tpu.memory_space<vmem>>, %arg18: memref<1x4xf32, #tpu.memory_space<vmem>>, %arg19: memref<256x4xf32, #tpu.memory_space<vmem>>, %arg20: memref<1x4xf32, #tpu.memory_space<vmem>>, %arg21: memref<256x4xf32, #tpu.memory_space<vmem>>, %arg22: memref<1x4xf32, #tpu.memory_space<vmem>>, %arg23: memref<256x4xf32, #tpu.memory_space<vmem>>, %arg24: memref<1x4xf32, #tpu.memory_space<vmem>>, %arg25: memref<256x4xf32, #tpu.memory_space<vmem>>, %arg26: memref<1x4xf32, #tpu.memory_space<vmem>>, %arg27: memref<2x4xf32, #tpu.memory_space<vmem>>) attributes {dimension_semantics = [], scalar_prefetch = 0 : i64, scratch_operands = 0 : i64, tpu.core_type = #tpu.core_type<tc>} {
    %c0 = arith.constant 0 : index
    %c0_0 = arith.constant 0 : index
    %0 = vector.load %arg1[%c0, %c0_0] : memref<16x16xf32, #tpu.memory_space<vmem>>, vector<16x16xf32>
    %c0_1 = arith.constant 0 : index
    %c0_2 = arith.constant 0 : index
    %1 = vector.load %arg2[%c0_1, %c0_2] : memref<2x16xf32, #tpu.memory_space<vmem>>, vector<2x16xf32>
    %c0_3 = arith.constant 0 : index
    %c0_4 = arith.constant 0 : index
    %2 = vector.load %arg3[%c0_3, %c0_4] : memref<256x32xf32, #tpu.memory_space<vmem>>, vector<256x32xf32>
    %c0_5 = arith.constant 0 : index
    %c0_6 = arith.constant 0 : index
    %3 = vector.load %arg4[%c0_5, %c0_6] : memref<32x256xf32, #tpu.memory_space<vmem>>, vector<32x256xf32>
    %c0_7 = arith.constant 0 : index
    %c0_8 = arith.constant 0 : index
    %4 = vector.load %arg0[%c0_7, %c0_8] : memref<16x64xf32, #tpu.memory_space<vmem>>, vector<16x64xf32>
    %cst = arith.constant dense<0.000000e+00> : vector<2x64xf32>
    %5 = tpu.matmul %1, %4, %cst {dimension_numbers = #tpu.dot_dimension_numbers<[1], [0], [0], [1], [0, 0, 1, 1], [], []>} : vector<2x16xf32>, vector<16x64xf32>, vector<2x64xf32> -> vector<2x64xf32>
    %c0_9 = arith.constant 0 : index
    %c0_10 = arith.constant 0 : index
    %6 = vector.load %arg17[%c0_9, %c0_10] : memref<64x4xf32, #tpu.memory_space<vmem>>, vector<64x4xf32>
    %cst_11 = arith.constant dense<0.000000e+00> : vector<2x4xf32>
    %7 = tpu.matmul %5, %6, %cst_11 {dimension_numbers = #tpu.dot_dimension_numbers<[1], [0], [0], [1], [0, 0, 1, 1], [], []>} : vector<2x64xf32>, vector<64x4xf32>, vector<2x4xf32> -> vector<2x4xf32>
    %c0_12 = arith.constant 0 : index
    %c0_13 = arith.constant 0 : index
    %8 = vector.load %arg18[%c0_12, %c0_13] : memref<1x4xf32, #tpu.memory_space<vmem>>, vector<1x4xf32>
    %9 = vector.broadcast %8 : vector<1x4xf32> to vector<2x4xf32>
    %10 = arith.addf %7, %9 : vector<2x4xf32>
    %c0_14 = arith.constant 0 : index
    %c0_15 = arith.constant 0 : index
    %11 = vector.load %arg5[%c0_14, %c0_15] : memref<64x256xf32, #tpu.memory_space<vmem>>, vector<64x256xf32>
    %cst_16 = arith.constant dense<0.000000e+00> : vector<16x256xf32>
    %12 = tpu.matmul %4, %11, %cst_16 {dimension_numbers = #tpu.dot_dimension_numbers<[1], [0], [0], [1], [0, 0, 1, 1], [], []>} : vector<16x64xf32>, vector<64x256xf32>, vector<16x256xf32> -> vector<16x256xf32>
    %cst_17 = arith.constant dense<0.000000e+00> : vector<16x256xf32>
    %13 = tpu.matmul %0, %12, %cst_17 {dimension_numbers = #tpu.dot_dimension_numbers<[1], [0], [0], [1], [0, 0, 1, 1], [], []>} : vector<16x16xf32>, vector<16x256xf32>, vector<16x256xf32> -> vector<16x256xf32>
    %cst_18 = arith.constant dense<0.000000e+00> : vector<256xf32>
    %14 = vector.multi_reduction <add>, %13, %cst_18 [0] : vector<16x256xf32> to vector<256xf32>
    %15 = vector.shape_cast %14 : vector<256xf32> to vector<1x256xf32>
    %cst_19 = arith.constant 1.600000e+01 : f32
    %16 = vector.broadcast %cst_19 : f32 to vector<1x256xf32>
    %17 = arith.divf %15, %16 : vector<1x256xf32>
    %18 = arith.mulf %13, %13 : vector<16x256xf32>
    %cst_20 = arith.constant dense<0.000000e+00> : vector<256xf32>
    %19 = vector.multi_reduction <add>, %18, %cst_20 [0] : vector<16x256xf32> to vector<256xf32>
    %20 = vector.shape_cast %19 : vector<256xf32> to vector<1x256xf32>
    %cst_21 = arith.constant 1.600000e+01 : f32
    %21 = vector.broadcast %cst_21 : f32 to vector<1x256xf32>
    %22 = arith.divf %20, %21 : vector<1x256xf32>
    %cst_22 = arith.constant dense<0.000000e+00> : vector<1x32xf32>
    %23 = tpu.matmul %17, %2, %cst_22 {dimension_numbers = #tpu.dot_dimension_numbers<[1], [0], [0], [1], [0, 0, 1, 1], [], []>} : vector<1x256xf32>, vector<256x32xf32>, vector<1x32xf32> -> vector<1x32xf32>
    %cst_23 = arith.constant dense<0.000000e+00> : vector<1x32xf32>
    %24 = tpu.matmul %22, %2, %cst_23 {dimension_numbers = #tpu.dot_dimension_numbers<[1], [0], [0], [1], [0, 0, 1, 1], [], []>} : vector<1x256xf32>, vector<256x32xf32>, vector<1x32xf32> -> vector<1x32xf32>
    %25 = arith.mulf %23, %23 : vector<1x32xf32>
    %26 = arith.subf %24, %25 : vector<1x32xf32>
    %c0_24 = arith.constant 0 : index
    %c0_25 = arith.constant 0 : index
    %27 = vector.load %arg6[%c0_24, %c0_25] : memref<1x32xf32, #tpu.memory_space<vmem>>, vector<1x32xf32>
    %cst_26 = arith.constant 9.99999974E-6 : f32
    %28 = vector.broadcast %cst_26 : f32 to vector<1x32xf32>
    %29 = arith.addf %26, %28 : vector<1x32xf32>
    %30 = math.rsqrt %29 : vector<1x32xf32>
    %31 = arith.mulf %27, %30 : vector<1x32xf32>
    %c0_27 = arith.constant 0 : index
    %c0_28 = arith.constant 0 : index
    %32 = vector.load %arg7[%c0_27, %c0_28] : memref<1x32xf32, #tpu.memory_space<vmem>>, vector<1x32xf32>
    %33 = arith.mulf %31, %23 : vector<1x32xf32>
    %34 = arith.subf %32, %33 : vector<1x32xf32>
    %cst_29 = arith.constant dense<0.000000e+00> : vector<1x256xf32>
    %35 = tpu.matmul %31, %3, %cst_29 {dimension_numbers = #tpu.dot_dimension_numbers<[1], [0], [0], [1], [0, 0, 1, 1], [], []>} : vector<1x32xf32>, vector<32x256xf32>, vector<1x256xf32> -> vector<1x256xf32>
    %cst_30 = arith.constant dense<0.000000e+00> : vector<1x256xf32>
    %36 = tpu.matmul %34, %3, %cst_30 {dimension_numbers = #tpu.dot_dimension_numbers<[1], [0], [0], [1], [0, 0, 1, 1], [], []>} : vector<1x32xf32>, vector<32x256xf32>, vector<1x256xf32> -> vector<1x256xf32>
    %37 = vector.broadcast %35 : vector<1x256xf32> to vector<16x256xf32>
    %38 = arith.mulf %13, %37 : vector<16x256xf32>
    %39 = vector.broadcast %36 : vector<1x256xf32> to vector<16x256xf32>
    %40 = arith.addf %38, %39 : vector<16x256xf32>
    %cst_31 = arith.constant 0.000000e+00 : f32
    %41 = vector.broadcast %cst_31 : f32 to vector<16x256xf32>
    %42 = arith.maximumf %40, %41 : vector<16x256xf32>
    %cst_32 = arith.constant dense<0.000000e+00> : vector<2x256xf32>
    %43 = tpu.matmul %1, %42, %cst_32 {dimension_numbers = #tpu.dot_dimension_numbers<[1], [0], [0], [1], [0, 0, 1, 1], [], []>} : vector<2x16xf32>, vector<16x256xf32>, vector<2x256xf32> -> vector<2x256xf32>
    %c0_33 = arith.constant 0 : index
    %c0_34 = arith.constant 0 : index
    %44 = vector.load %arg19[%c0_33, %c0_34] : memref<256x4xf32, #tpu.memory_space<vmem>>, vector<256x4xf32>
    %cst_35 = arith.constant dense<0.000000e+00> : vector<2x4xf32>
    %45 = tpu.matmul %43, %44, %cst_35 {dimension_numbers = #tpu.dot_dimension_numbers<[1], [0], [0], [1], [0, 0, 1, 1], [], []>} : vector<2x256xf32>, vector<256x4xf32>, vector<2x4xf32> -> vector<2x4xf32>
    %c0_36 = arith.constant 0 : index
    %c0_37 = arith.constant 0 : index
    %46 = vector.load %arg20[%c0_36, %c0_37] : memref<1x4xf32, #tpu.memory_space<vmem>>, vector<1x4xf32>
    %47 = vector.broadcast %46 : vector<1x4xf32> to vector<2x4xf32>
    %48 = arith.addf %45, %47 : vector<2x4xf32>
    %49 = arith.addf %10, %48 : vector<2x4xf32>
    %c0_38 = arith.constant 0 : index
    %c0_39 = arith.constant 0 : index
    %50 = vector.load %arg8[%c0_38, %c0_39] : memref<256x256xf32, #tpu.memory_space<vmem>>, vector<256x256xf32>
    %cst_40 = arith.constant dense<0.000000e+00> : vector<16x256xf32>
    %51 = tpu.matmul %42, %50, %cst_40 {dimension_numbers = #tpu.dot_dimension_numbers<[1], [0], [0], [1], [0, 0, 1, 1], [], []>} : vector<16x256xf32>, vector<256x256xf32>, vector<16x256xf32> -> vector<16x256xf32>
    %cst_41 = arith.constant dense<0.000000e+00> : vector<16x256xf32>
    %52 = tpu.matmul %0, %51, %cst_41 {dimension_numbers = #tpu.dot_dimension_numbers<[1], [0], [0], [1], [0, 0, 1, 1], [], []>} : vector<16x16xf32>, vector<16x256xf32>, vector<16x256xf32> -> vector<16x256xf32>
    %cst_42 = arith.constant dense<0.000000e+00> : vector<256xf32>
    %53 = vector.multi_reduction <add>, %52, %cst_42 [0] : vector<16x256xf32> to vector<256xf32>
    %54 = vector.shape_cast %53 : vector<256xf32> to vector<1x256xf32>
    %cst_43 = arith.constant 1.600000e+01 : f32
    %55 = vector.broadcast %cst_43 : f32 to vector<1x256xf32>
    %56 = arith.divf %54, %55 : vector<1x256xf32>
    %57 = arith.mulf %52, %52 : vector<16x256xf32>
    %cst_44 = arith.constant dense<0.000000e+00> : vector<256xf32>
    %58 = vector.multi_reduction <add>, %57, %cst_44 [0] : vector<16x256xf32> to vector<256xf32>
    %59 = vector.shape_cast %58 : vector<256xf32> to vector<1x256xf32>
    %cst_45 = arith.constant 1.600000e+01 : f32
    %60 = vector.broadcast %cst_45 : f32 to vector<1x256xf32>
    %61 = arith.divf %59, %60 : vector<1x256xf32>
    %cst_46 = arith.constant dense<0.000000e+00> : vector<1x32xf32>
    %62 = tpu.matmul %56, %2, %cst_46 {dimension_numbers = #tpu.dot_dimension_numbers<[1], [0], [0], [1], [0, 0, 1, 1], [], []>} : vector<1x256xf32>, vector<256x32xf32>, vector<1x32xf32> -> vector<1x32xf32>
    %cst_47 = arith.constant dense<0.000000e+00> : vector<1x32xf32>
    %63 = tpu.matmul %61, %2, %cst_47 {dimension_numbers = #tpu.dot_dimension_numbers<[1], [0], [0], [1], [0, 0, 1, 1], [], []>} : vector<1x256xf32>, vector<256x32xf32>, vector<1x32xf32> -> vector<1x32xf32>
    %64 = arith.mulf %62, %62 : vector<1x32xf32>
    %65 = arith.subf %63, %64 : vector<1x32xf32>
    %c0_48 = arith.constant 0 : index
    %c0_49 = arith.constant 0 : index
    %66 = vector.load %arg9[%c0_48, %c0_49] : memref<1x32xf32, #tpu.memory_space<vmem>>, vector<1x32xf32>
    %cst_50 = arith.constant 9.99999974E-6 : f32
    %67 = vector.broadcast %cst_50 : f32 to vector<1x32xf32>
    %68 = arith.addf %65, %67 : vector<1x32xf32>
    %69 = math.rsqrt %68 : vector<1x32xf32>
    %70 = arith.mulf %66, %69 : vector<1x32xf32>
    %c0_51 = arith.constant 0 : index
    %c0_52 = arith.constant 0 : index
    %71 = vector.load %arg10[%c0_51, %c0_52] : memref<1x32xf32, #tpu.memory_space<vmem>>, vector<1x32xf32>
    %72 = arith.mulf %70, %62 : vector<1x32xf32>
    %73 = arith.subf %71, %72 : vector<1x32xf32>
    %cst_53 = arith.constant dense<0.000000e+00> : vector<1x256xf32>
    %74 = tpu.matmul %70, %3, %cst_53 {dimension_numbers = #tpu.dot_dimension_numbers<[1], [0], [0], [1], [0, 0, 1, 1], [], []>} : vector<1x32xf32>, vector<32x256xf32>, vector<1x256xf32> -> vector<1x256xf32>
    %cst_54 = arith.constant dense<0.000000e+00> : vector<1x256xf32>
    %75 = tpu.matmul %73, %3, %cst_54 {dimension_numbers = #tpu.dot_dimension_numbers<[1], [0], [0], [1], [0, 0, 1, 1], [], []>} : vector<1x32xf32>, vector<32x256xf32>, vector<1x256xf32> -> vector<1x256xf32>
    %76 = vector.broadcast %74 : vector<1x256xf32> to vector<16x256xf32>
    %77 = arith.mulf %52, %76 : vector<16x256xf32>
    %78 = vector.broadcast %75 : vector<1x256xf32> to vector<16x256xf32>
    %79 = arith.addf %77, %78 : vector<16x256xf32>
    %cst_55 = arith.constant 0.000000e+00 : f32
    %80 = vector.broadcast %cst_55 : f32 to vector<16x256xf32>
    %81 = arith.maximumf %79, %80 : vector<16x256xf32>
    %cst_56 = arith.constant dense<0.000000e+00> : vector<2x256xf32>
    %82 = tpu.matmul %1, %81, %cst_56 {dimension_numbers = #tpu.dot_dimension_numbers<[1], [0], [0], [1], [0, 0, 1, 1], [], []>} : vector<2x16xf32>, vector<16x256xf32>, vector<2x256xf32> -> vector<2x256xf32>
    %c0_57 = arith.constant 0 : index
    %c0_58 = arith.constant 0 : index
    %83 = vector.load %arg21[%c0_57, %c0_58] : memref<256x4xf32, #tpu.memory_space<vmem>>, vector<256x4xf32>
    %cst_59 = arith.constant dense<0.000000e+00> : vector<2x4xf32>
    %84 = tpu.matmul %82, %83, %cst_59 {dimension_numbers = #tpu.dot_dimension_numbers<[1], [0], [0], [1], [0, 0, 1, 1], [], []>} : vector<2x256xf32>, vector<256x4xf32>, vector<2x4xf32> -> vector<2x4xf32>
    %c0_60 = arith.constant 0 : index
    %c0_61 = arith.constant 0 : index
    %85 = vector.load %arg22[%c0_60, %c0_61] : memref<1x4xf32, #tpu.memory_space<vmem>>, vector<1x4xf32>
    %86 = vector.broadcast %85 : vector<1x4xf32> to vector<2x4xf32>
    %87 = arith.addf %84, %86 : vector<2x4xf32>
    %88 = arith.addf %49, %87 : vector<2x4xf32>
    %c0_62 = arith.constant 0 : index
    %c0_63 = arith.constant 0 : index
    %89 = vector.load %arg11[%c0_62, %c0_63] : memref<256x256xf32, #tpu.memory_space<vmem>>, vector<256x256xf32>
    %cst_64 = arith.constant dense<0.000000e+00> : vector<16x256xf32>
    %90 = tpu.matmul %81, %89, %cst_64 {dimension_numbers = #tpu.dot_dimension_numbers<[1], [0], [0], [1], [0, 0, 1, 1], [], []>} : vector<16x256xf32>, vector<256x256xf32>, vector<16x256xf32> -> vector<16x256xf32>
    %cst_65 = arith.constant dense<0.000000e+00> : vector<16x256xf32>
    %91 = tpu.matmul %0, %90, %cst_65 {dimension_numbers = #tpu.dot_dimension_numbers<[1], [0], [0], [1], [0, 0, 1, 1], [], []>} : vector<16x16xf32>, vector<16x256xf32>, vector<16x256xf32> -> vector<16x256xf32>
    %cst_66 = arith.constant dense<0.000000e+00> : vector<256xf32>
    %92 = vector.multi_reduction <add>, %91, %cst_66 [0] : vector<16x256xf32> to vector<256xf32>
    %93 = vector.shape_cast %92 : vector<256xf32> to vector<1x256xf32>
    %cst_67 = arith.constant 1.600000e+01 : f32
    %94 = vector.broadcast %cst_67 : f32 to vector<1x256xf32>
    %95 = arith.divf %93, %94 : vector<1x256xf32>
    %96 = arith.mulf %91, %91 : vector<16x256xf32>
    %cst_68 = arith.constant dense<0.000000e+00> : vector<256xf32>
    %97 = vector.multi_reduction <add>, %96, %cst_68 [0] : vector<16x256xf32> to vector<256xf32>
    %98 = vector.shape_cast %97 : vector<256xf32> to vector<1x256xf32>
    %cst_69 = arith.constant 1.600000e+01 : f32
    %99 = vector.broadcast %cst_69 : f32 to vector<1x256xf32>
    %100 = arith.divf %98, %99 : vector<1x256xf32>
    %cst_70 = arith.constant dense<0.000000e+00> : vector<1x32xf32>
    %101 = tpu.matmul %95, %2, %cst_70 {dimension_numbers = #tpu.dot_dimension_numbers<[1], [0], [0], [1], [0, 0, 1, 1], [], []>} : vector<1x256xf32>, vector<256x32xf32>, vector<1x32xf32> -> vector<1x32xf32>
    %cst_71 = arith.constant dense<0.000000e+00> : vector<1x32xf32>
    %102 = tpu.matmul %100, %2, %cst_71 {dimension_numbers = #tpu.dot_dimension_numbers<[1], [0], [0], [1], [0, 0, 1, 1], [], []>} : vector<1x256xf32>, vector<256x32xf32>, vector<1x32xf32> -> vector<1x32xf32>
    %103 = arith.mulf %101, %101 : vector<1x32xf32>
    %104 = arith.subf %102, %103 : vector<1x32xf32>
    %c0_72 = arith.constant 0 : index
    %c0_73 = arith.constant 0 : index
    %105 = vector.load %arg12[%c0_72, %c0_73] : memref<1x32xf32, #tpu.memory_space<vmem>>, vector<1x32xf32>
    %cst_74 = arith.constant 9.99999974E-6 : f32
    %106 = vector.broadcast %cst_74 : f32 to vector<1x32xf32>
    %107 = arith.addf %104, %106 : vector<1x32xf32>
    %108 = math.rsqrt %107 : vector<1x32xf32>
    %109 = arith.mulf %105, %108 : vector<1x32xf32>
    %c0_75 = arith.constant 0 : index
    %c0_76 = arith.constant 0 : index
    %110 = vector.load %arg13[%c0_75, %c0_76] : memref<1x32xf32, #tpu.memory_space<vmem>>, vector<1x32xf32>
    %111 = arith.mulf %109, %101 : vector<1x32xf32>
    %112 = arith.subf %110, %111 : vector<1x32xf32>
    %cst_77 = arith.constant dense<0.000000e+00> : vector<1x256xf32>
    %113 = tpu.matmul %109, %3, %cst_77 {dimension_numbers = #tpu.dot_dimension_numbers<[1], [0], [0], [1], [0, 0, 1, 1], [], []>} : vector<1x32xf32>, vector<32x256xf32>, vector<1x256xf32> -> vector<1x256xf32>
    %cst_78 = arith.constant dense<0.000000e+00> : vector<1x256xf32>
    %114 = tpu.matmul %112, %3, %cst_78 {dimension_numbers = #tpu.dot_dimension_numbers<[1], [0], [0], [1], [0, 0, 1, 1], [], []>} : vector<1x32xf32>, vector<32x256xf32>, vector<1x256xf32> -> vector<1x256xf32>
    %115 = vector.broadcast %113 : vector<1x256xf32> to vector<16x256xf32>
    %116 = arith.mulf %91, %115 : vector<16x256xf32>
    %117 = vector.broadcast %114 : vector<1x256xf32> to vector<16x256xf32>
    %118 = arith.addf %116, %117 : vector<16x256xf32>
    %cst_79 = arith.constant 0.000000e+00 : f32
    %119 = vector.broadcast %cst_79 : f32 to vector<16x256xf32>
    %120 = arith.maximumf %118, %119 : vector<16x256xf32>
    %cst_80 = arith.constant dense<0.000000e+00> : vector<2x256xf32>
    %121 = tpu.matmul %1, %120, %cst_80 {dimension_numbers = #tpu.dot_dimension_numbers<[1], [0], [0], [1], [0, 0, 1, 1], [], []>} : vector<2x16xf32>, vector<16x256xf32>, vector<2x256xf32> -> vector<2x256xf32>
    %c0_81 = arith.constant 0 : index
    %c0_82 = arith.constant 0 : index
    %122 = vector.load %arg23[%c0_81, %c0_82] : memref<256x4xf32, #tpu.memory_space<vmem>>, vector<256x4xf32>
    %cst_83 = arith.constant dense<0.000000e+00> : vector<2x4xf32>
    %123 = tpu.matmul %121, %122, %cst_83 {dimension_numbers = #tpu.dot_dimension_numbers<[1], [0], [0], [1], [0, 0, 1, 1], [], []>} : vector<2x256xf32>, vector<256x4xf32>, vector<2x4xf32> -> vector<2x4xf32>
    %c0_84 = arith.constant 0 : index
    %c0_85 = arith.constant 0 : index
    %124 = vector.load %arg24[%c0_84, %c0_85] : memref<1x4xf32, #tpu.memory_space<vmem>>, vector<1x4xf32>
    %125 = vector.broadcast %124 : vector<1x4xf32> to vector<2x4xf32>
    %126 = arith.addf %123, %125 : vector<2x4xf32>
    %127 = arith.addf %88, %126 : vector<2x4xf32>
    %c0_86 = arith.constant 0 : index
    %c0_87 = arith.constant 0 : index
    %128 = vector.load %arg14[%c0_86, %c0_87] : memref<256x256xf32, #tpu.memory_space<vmem>>, vector<256x256xf32>
    %cst_88 = arith.constant dense<0.000000e+00> : vector<16x256xf32>
    %129 = tpu.matmul %120, %128, %cst_88 {dimension_numbers = #tpu.dot_dimension_numbers<[1], [0], [0], [1], [0, 0, 1, 1], [], []>} : vector<16x256xf32>, vector<256x256xf32>, vector<16x256xf32> -> vector<16x256xf32>
    %cst_89 = arith.constant dense<0.000000e+00> : vector<16x256xf32>
    %130 = tpu.matmul %0, %129, %cst_89 {dimension_numbers = #tpu.dot_dimension_numbers<[1], [0], [0], [1], [0, 0, 1, 1], [], []>} : vector<16x16xf32>, vector<16x256xf32>, vector<16x256xf32> -> vector<16x256xf32>
    %cst_90 = arith.constant dense<0.000000e+00> : vector<256xf32>
    %131 = vector.multi_reduction <add>, %130, %cst_90 [0] : vector<16x256xf32> to vector<256xf32>
    %132 = vector.shape_cast %131 : vector<256xf32> to vector<1x256xf32>
    %cst_91 = arith.constant 1.600000e+01 : f32
    %133 = vector.broadcast %cst_91 : f32 to vector<1x256xf32>
    %134 = arith.divf %132, %133 : vector<1x256xf32>
    %135 = arith.mulf %130, %130 : vector<16x256xf32>
    %cst_92 = arith.constant dense<0.000000e+00> : vector<256xf32>
    %136 = vector.multi_reduction <add>, %135, %cst_92 [0] : vector<16x256xf32> to vector<256xf32>
    %137 = vector.shape_cast %136 : vector<256xf32> to vector<1x256xf32>
    %cst_93 = arith.constant 1.600000e+01 : f32
    %138 = vector.broadcast %cst_93 : f32 to vector<1x256xf32>
    %139 = arith.divf %137, %138 : vector<1x256xf32>
    %cst_94 = arith.constant dense<0.000000e+00> : vector<1x32xf32>
    %140 = tpu.matmul %134, %2, %cst_94 {dimension_numbers = #tpu.dot_dimension_numbers<[1], [0], [0], [1], [0, 0, 1, 1], [], []>} : vector<1x256xf32>, vector<256x32xf32>, vector<1x32xf32> -> vector<1x32xf32>
    %cst_95 = arith.constant dense<0.000000e+00> : vector<1x32xf32>
    %141 = tpu.matmul %139, %2, %cst_95 {dimension_numbers = #tpu.dot_dimension_numbers<[1], [0], [0], [1], [0, 0, 1, 1], [], []>} : vector<1x256xf32>, vector<256x32xf32>, vector<1x32xf32> -> vector<1x32xf32>
    %142 = arith.mulf %140, %140 : vector<1x32xf32>
    %143 = arith.subf %141, %142 : vector<1x32xf32>
    %c0_96 = arith.constant 0 : index
    %c0_97 = arith.constant 0 : index
    %144 = vector.load %arg15[%c0_96, %c0_97] : memref<1x32xf32, #tpu.memory_space<vmem>>, vector<1x32xf32>
    %cst_98 = arith.constant 9.99999974E-6 : f32
    %145 = vector.broadcast %cst_98 : f32 to vector<1x32xf32>
    %146 = arith.addf %143, %145 : vector<1x32xf32>
    %147 = math.rsqrt %146 : vector<1x32xf32>
    %148 = arith.mulf %144, %147 : vector<1x32xf32>
    %c0_99 = arith.constant 0 : index
    %c0_100 = arith.constant 0 : index
    %149 = vector.load %arg16[%c0_99, %c0_100] : memref<1x32xf32, #tpu.memory_space<vmem>>, vector<1x32xf32>
    %150 = arith.mulf %148, %140 : vector<1x32xf32>
    %151 = arith.subf %149, %150 : vector<1x32xf32>
    %cst_101 = arith.constant dense<0.000000e+00> : vector<1x256xf32>
    %152 = tpu.matmul %148, %3, %cst_101 {dimension_numbers = #tpu.dot_dimension_numbers<[1], [0], [0], [1], [0, 0, 1, 1], [], []>} : vector<1x32xf32>, vector<32x256xf32>, vector<1x256xf32> -> vector<1x256xf32>
    %cst_102 = arith.constant dense<0.000000e+00> : vector<1x256xf32>
    %153 = tpu.matmul %151, %3, %cst_102 {dimension_numbers = #tpu.dot_dimension_numbers<[1], [0], [0], [1], [0, 0, 1, 1], [], []>} : vector<1x32xf32>, vector<32x256xf32>, vector<1x256xf32> -> vector<1x256xf32>
    %154 = vector.broadcast %152 : vector<1x256xf32> to vector<16x256xf32>
    %155 = arith.mulf %130, %154 : vector<16x256xf32>
    %156 = vector.broadcast %153 : vector<1x256xf32> to vector<16x256xf32>
    %157 = arith.addf %155, %156 : vector<16x256xf32>
    %cst_103 = arith.constant 0.000000e+00 : f32
    %158 = vector.broadcast %cst_103 : f32 to vector<16x256xf32>
    %159 = arith.maximumf %157, %158 : vector<16x256xf32>
    %cst_104 = arith.constant dense<0.000000e+00> : vector<2x256xf32>
    %160 = tpu.matmul %1, %159, %cst_104 {dimension_numbers = #tpu.dot_dimension_numbers<[1], [0], [0], [1], [0, 0, 1, 1], [], []>} : vector<2x16xf32>, vector<16x256xf32>, vector<2x256xf32> -> vector<2x256xf32>
    %c0_105 = arith.constant 0 : index
    %c0_106 = arith.constant 0 : index
    %161 = vector.load %arg25[%c0_105, %c0_106] : memref<256x4xf32, #tpu.memory_space<vmem>>, vector<256x4xf32>
    %cst_107 = arith.constant dense<0.000000e+00> : vector<2x4xf32>
    %162 = tpu.matmul %160, %161, %cst_107 {dimension_numbers = #tpu.dot_dimension_numbers<[1], [0], [0], [1], [0, 0, 1, 1], [], []>} : vector<2x256xf32>, vector<256x4xf32>, vector<2x4xf32> -> vector<2x4xf32>
    %c0_108 = arith.constant 0 : index
    %c0_109 = arith.constant 0 : index
    %163 = vector.load %arg26[%c0_108, %c0_109] : memref<1x4xf32, #tpu.memory_space<vmem>>, vector<1x4xf32>
    %164 = vector.broadcast %163 : vector<1x4xf32> to vector<2x4xf32>
    %165 = arith.addf %162, %164 : vector<2x4xf32>
    %166 = arith.addf %127, %165 : vector<2x4xf32>
    %cst_110 = arith.constant dense<0xFF800000> : vector<2xf32>
    %167 = vector.multi_reduction <maximumf>, %166, %cst_110 [1] : vector<2x4xf32> to vector<2xf32>
    %168 = vector.shape_cast %167 : vector<2xf32> to vector<2x1xf32>
    %169 = vector.broadcast %168 : vector<2x1xf32> to vector<2x4xf32>
    %170 = arith.subf %166, %169 : vector<2x4xf32>
    %171 = math.exp %170 : vector<2x4xf32>
    %cst_111 = arith.constant dense<0.000000e+00> : vector<2xf32>
    %172 = vector.multi_reduction <add>, %171, %cst_111 [1] : vector<2x4xf32> to vector<2xf32>
    %173 = vector.shape_cast %172 : vector<2xf32> to vector<2x1xf32>
    %174 = math.log %173 : vector<2x1xf32>
    %175 = vector.broadcast %174 : vector<2x1xf32> to vector<2x4xf32>
    %176 = arith.subf %170, %175 : vector<2x4xf32>
    %c0_112 = arith.constant 0 : index
    %c0_113 = arith.constant 0 : index
    %177 = vector.load %arg27[%c0_112, %c0_113] : memref<2x4xf32, #tpu.memory_space<vmem>>, vector<2x4xf32>
    tpu.vector_store %arg27[%c0_112, %c0_113], %176 {strides = array<i32>} : memref<2x4xf32, #tpu.memory_space<vmem>>, vector<2x4xf32>,
    return
  }
}

</mosaic_0001>

<llo_original>
// kernel: _lambda_.1
$region0: #{_lambda_.1}
  #allocation0 [shape = 'u32[]', space=smem, size = 0x4, offset = 0x4, fixed_abs, tag = 'smem constant byte address 0x4 - core index']
  #allocation1 [shape = 'u32[144,128]{1,0:T(1,128)}', space=vmem, size = 0x12000, scoped, tag = 'internal scratch']
  %s0 = inlined_call_operand.vmem [shape: f32[16,64], index: 0, kind: input, shape index: {}]
  %s1 = inlined_call_operand.vmem [shape: f32[16,16], index: 1, kind: input, shape index: {}]
  %s2 = inlined_call_operand.vmem [shape: f32[2,16], index: 2, kind: input, shape index: {}]
  %s3 = inlined_call_operand.vmem [shape: f32[256,32], index: 3, kind: input, shape index: {}]
  %s4 = inlined_call_operand.vmem [shape: f32[32,256], index: 4, kind: input, shape index: {}]
  %s5 = inlined_call_operand.vmem [shape: f32[64,256], index: 5, kind: input, shape index: {}]
  %s6 = inlined_call_operand.vmem [shape: f32[1,32], index: 6, kind: input, shape index: {}, may-alias: {6,9,12,15}]
  %s7 = inlined_call_operand.vmem [shape: f32[1,32], index: 7, kind: input, shape index: {}, may-alias: {7,10,13,16}]
  %s8 = inlined_call_operand.vmem [shape: f32[256,256], index: 8, kind: input, shape index: {}]
  %s9 = inlined_call_operand.vmem [shape: f32[1,32], index: 9, kind: input, shape index: {}, may-alias: {6,9,12,15}]
  %s10 = inlined_call_operand.vmem [shape: f32[1,32], index: 10, kind: input, shape index: {}, may-alias: {7,10,13,16}]
  %s11 = inlined_call_operand.vmem [shape: f32[256,256], index: 11, kind: input, shape index: {}]
  %s12 = inlined_call_operand.vmem [shape: f32[1,32], index: 12, kind: input, shape index: {}, may-alias: {6,9,12,15}]
  %s13 = inlined_call_operand.vmem [shape: f32[1,32], index: 13, kind: input, shape index: {}, may-alias: {7,10,13,16}]
  %s14 = inlined_call_operand.vmem [shape: f32[256,256], index: 14, kind: input, shape index: {}]
  %s15 = inlined_call_operand.vmem [shape: f32[1,32], index: 15, kind: input, shape index: {}, may-alias: {6,9,12,15}]
  %s16 = inlined_call_operand.vmem [shape: f32[1,32], index: 16, kind: input, shape index: {}, may-alias: {7,10,13,16}]
  %s17 = inlined_call_operand.vmem [shape: f32[64,4], index: 17, kind: input, shape index: {}]
  %s18 = inlined_call_operand.vmem [shape: f32[1,4], index: 18, kind: input, shape index: {}]
  %s19 = inlined_call_operand.vmem [shape: f32[256,4], index: 19, kind: input, shape index: {}]
  %s20 = inlined_call_operand.vmem [shape: f32[1,4], index: 20, kind: input, shape index: {}]
  %s21 = inlined_call_operand.vmem [shape: f32[256,4], index: 21, kind: input, shape index: {}]
  %s22 = inlined_call_operand.vmem [shape: f32[1,4], index: 22, kind: input, shape index: {}]
  %s23 = inlined_call_operand.vmem [shape: f32[256,4], index: 23, kind: input, shape index: {}]
  %s24 = inlined_call_operand.vmem [shape: f32[1,4], index: 24, kind: input, shape index: {}]
  %s25 = inlined_call_operand.vmem [shape: f32[256,4], index: 25, kind: input, shape index: {}]
  %s26 = inlined_call_operand.vmem [shape: f32[1,4], index: 26, kind: input, shape index: {}]
  %s27 = inlined_call_operand.hbm [shape: f32[2,4], index: 27, kind: output, shape index: {}]
  %s28 = sld [smem:[#allocation0]]
  $region118: #{_lambda_.1} parent=0
    _
  %s30 = ssub.s32 1, %s28
  %s31 = scalar_select 0, %s30, %s28
  $region1: #{_lambda_.1} parent=0
    #allocation2 [shape = 'u8[1024]{0}', space=vmem, size = 0x400, scoped, tag = 'output window, operand 0, single buffered']
    #allocation3 [shape = 's32[1]{0}', space=sflag, size = 0x4, scoped, tag = 'scoped memory for _lambda_.1']
    %32 = vsyncpa [#allocation3], 0
    // Predicated region
    $region2: #{_lambda_.1} parent=1 // pred_check
      _
    $region3: #{_lambda_.1} parent=1 // pred_check_branch
      %34 = sbr.rel (0) target = $region5
    $region4: #{_lambda_.1} parent=1 // pred_region
      _
    $region5: #{_lambda_.1} parent=1 // pred_fallthru
      _
    // Predicated region
    $region6: #{_lambda_.1} parent=1 // pred_check
      _
    $region7: #{_lambda_.1} parent=1 // pred_check_branch
      %36 = sbr.rel (0) target = $region9
    $region8: #{_lambda_.1} parent=1 // pred_region
      _
    $region9: #{_lambda_.1} parent=1 // pred_fallthru
      _
    // Predicated region
    $region10: #{_lambda_.1} parent=1 // pred_check
      _
    $region11: #{_lambda_.1} parent=1 // pred_check_branch
      %38 = sbr.rel (0) target = $region13
    $region12: #{_lambda_.1} parent=1 // pred_region
      _
    $region13: #{_lambda_.1} parent=1 // pred_fallthru
      _
    // Predicated region
    $region14: #{_lambda_.1} parent=1 // pred_check
      _
    $region15: #{_lambda_.1} parent=1 // pred_check_branch
      %40 = sbr.rel (0) target = $region17
    $region16: #{_lambda_.1} parent=1 // pred_region
      _
    $region17: #{_lambda_.1} parent=1 // pred_fallthru
      _
    // Predicated region
    $region18: #{_lambda_.1} parent=1 // pred_check
      _
    $region19: #{_lambda_.1} parent=1 // pred_check_branch
      %42 = sbr.rel (0) target = $region21
    $region20: #{_lambda_.1} parent=1 // pred_region
      _
    $region21: #{_lambda_.1} parent=1 // pred_fallthru
      _
    // Predicated region
    $region22: #{_lambda_.1} parent=1 // pred_check
      _
    $region23: #{_lambda_.1} parent=1 // pred_check_branch
      %44 = sbr.rel (0) target = $region25
    $region24: #{_lambda_.1} parent=1 // pred_region
      _
    $region25: #{_lambda_.1} parent=1 // pred_fallthru
      _
    // Predicated region
    $region26: #{_lambda_.1} parent=1 // pred_check
      _
    $region27: #{_lambda_.1} parent=1 // pred_check_branch
      %46 = sbr.rel (0) target = $region29
    $region28: #{_lambda_.1} parent=1 // pred_region
      _
    $region29: #{_lambda_.1} parent=1 // pred_fallthru
      _
    // Predicated region
    $region30: #{_lambda_.1} parent=1 // pred_check
      _
    $region31: #{_lambda_.1} parent=1 // pred_check_branch
      %48 = sbr.rel (0) target = $region33
    $region32: #{_lambda_.1} parent=1 // pred_region
      _
    $region33: #{_lambda_.1} parent=1 // pred_fallthru
      _
    // Predicated region
    $region34: #{_lambda_.1} parent=1 // pred_check
      _
    $region35: #{_lambda_.1} parent=1 // pred_check_branch
      %50 = sbr.rel (0) target = $region37
    $region36: #{_lambda_.1} parent=1 // pred_region
      _
    $region37: #{_lambda_.1} parent=1 // pred_fallthru
      _
    // Predicated region
    $region38: #{_lambda_.1} parent=1 // pred_check
      _
    $region39: #{_lambda_.1} parent=1 // pred_check_branch
      %52 = sbr.rel (0) target = $region41
    $region40: #{_lambda_.1} parent=1 // pred_region
      _
    $region41: #{_lambda_.1} parent=1 // pred_fallthru
      _
    // Predicated region
    $region42: #{_lambda_.1} parent=1 // pred_check
      _
    $region43: #{_lambda_.1} parent=1 // pred_check_branch
      %54 = sbr.rel (0) target = $region45
    $region44: #{_lambda_.1} parent=1 // pred_region
      _
    $region45: #{_lambda_.1} parent=1 // pred_fallthru
      _
    // Predicated region
    $region46: #{_lambda_.1} parent=1 // pred_check
      _
    $region47: #{_lambda_.1} parent=1 // pred_check_branch
      %56 = sbr.rel (0) target = $region49
    $region48: #{_lambda_.1} parent=1 // pred_region
      _
    $region49: #{_lambda_.1} parent=1 // pred_fallthru
      _
    // Predicated region
    $region50: #{_lambda_.1} parent=1 // pred_check
      _
    $region51: #{_lambda_.1} parent=1 // pred_check_branch
      %58 = sbr.rel (0) target = $region53
    $region52: #{_lambda_.1} parent=1 // pred_region
      _
    $region53: #{_lambda_.1} parent=1 // pred_fallthru
      _
    // Predicated region
    $region54: #{_lambda_.1} parent=1 // pred_check
      _
    $region55: #{_lambda_.1} parent=1 // pred_check_branch
      %60 = sbr.rel (0) target = $region57
    $region56: #{_lambda_.1} parent=1 // pred_region
      _
    $region57: #{_lambda_.1} parent=1 // pred_fallthru
      _
    // Predicated region
    $region58: #{_lambda_.1} parent=1 // pred_check
      _
    $region59: #{_lambda_.1} parent=1 // pred_check_branch
      %62 = sbr.rel (0) target = $region61
    $region60: #{_lambda_.1} parent=1 // pred_region
      _
    $region61: #{_lambda_.1} parent=1 // pred_fallthru
      _
    // Predicated region
    $region62: #{_lambda_.1} parent=1 // pred_check
      _
    $region63: #{_lambda_.1} parent=1 // pred_check_branch
      %64 = sbr.rel (0) target = $region65
    $region64: #{_lambda_.1} parent=1 // pred_region
      _
    $region65: #{_lambda_.1} parent=1 // pred_fallthru
      _
    // Predicated region
    $region66: #{_lambda_.1} parent=1 // pred_check
      _
    $region67: #{_lambda_.1} parent=1 // pred_check_branch
      %66 = sbr.rel (0) target = $region69
    $region68: #{_lambda_.1} parent=1 // pred_region
      _
    $region69: #{_lambda_.1} parent=1 // pred_fallthru
      _
    // Predicated region
    $region70: #{_lambda_.1} parent=1 // pred_check
      _
    $region71: #{_lambda_.1} parent=1 // pred_check_branch
      %68 = sbr.rel (0) target = $region73
    $region72: #{_lambda_.1} parent=1 // pred_region
      _
    $region73: #{_lambda_.1} parent=1 // pred_fallthru
      _
    // Predicated region
    $region74: #{_lambda_.1} parent=1 // pred_check
      _
    $region75: #{_lambda_.1} parent=1 // pred_check_branch
      %70 = sbr.rel (0) target = $region77
    $region76: #{_lambda_.1} parent=1 // pred_region
      _
    $region77: #{_lambda_.1} parent=1 // pred_fallthru
      _
    // Predicated region
    $region78: #{_lambda_.1} parent=1 // pred_check
      _
    $region79: #{_lambda_.1} parent=1 // pred_check_branch
      %72 = sbr.rel (0) target = $region81
    $region80: #{_lambda_.1} parent=1 // pred_region
      _
    $region81: #{_lambda_.1} parent=1 // pred_fallthru
      _
    // Predicated region
    $region82: #{_lambda_.1} parent=1 // pred_check
      _
    $region83: #{_lambda_.1} parent=1 // pred_check_branch
      %74 = sbr.rel (0) target = $region85
    $region84: #{_lambda_.1} parent=1 // pred_region
      _
    $region85: #{_lambda_.1} parent=1 // pred_fallthru
      _
    // Predicated region
    $region86: #{_lambda_.1} parent=1 // pred_check
      _
    $region87: #{_lambda_.1} parent=1 // pred_check_branch
      %76 = sbr.rel (0) target = $region89
    $region88: #{_lambda_.1} parent=1 // pred_region
      _
    $region89: #{_lambda_.1} parent=1 // pred_fallthru
      _
    // Predicated region
    $region90: #{_lambda_.1} parent=1 // pred_check
      _
    $region91: #{_lambda_.1} parent=1 // pred_check_branch
      %78 = sbr.rel (0) target = $region93
    $region92: #{_lambda_.1} parent=1 // pred_region
      _
    $region93: #{_lambda_.1} parent=1 // pred_fallthru
      _
    // Predicated region
    $region94: #{_lambda_.1} parent=1 // pred_check
      _
    $region95: #{_lambda_.1} parent=1 // pred_check_branch
      %80 = sbr.rel (0) target = $region97
    $region96: #{_lambda_.1} parent=1 // pred_region
      _
    $region97: #{_lambda_.1} parent=1 // pred_fallthru
      _
    // Predicated region
    $region98: #{_lambda_.1} parent=1 // pred_check
      _
    $region99: #{_lambda_.1} parent=1 // pred_check_branch
      %82 = sbr.rel (0) target = $region101
    $region100: #{_lambda_.1} parent=1 // pred_region
      _
    $region101: #{_lambda_.1} parent=1 // pred_fallthru
      _
    // Predicated region
    $region102: #{_lambda_.1} parent=1 // pred_check
      _
    $region103: #{_lambda_.1} parent=1 // pred_check_branch
      %84 = sbr.rel (0) target = $region105
    $region104: #{_lambda_.1} parent=1 // pred_region
      _
    $region105: #{_lambda_.1} parent=1 // pred_fallthru
      _
    // Predicated region
    $region106: #{_lambda_.1} parent=1 // pred_check
      _
    $region107: #{_lambda_.1} parent=1 // pred_check_branch
      %86 = sbr.rel (0) target = $region109
    $region108: #{_lambda_.1} parent=1 // pred_region
      _
    $region109: #{_lambda_.1} parent=1 // pred_fallthru
      _
    %v87 = vld [vmem:[%s1] sm:$0xff]
    %v88 = vld [vmem:[%s1 + $0x8] sm:$0xff]
    %v89 = vld [vmem:[%s2] sm:$0x3]
    %v90 = vld [vmem:[%s3] sm:$0xff]
    %v91 = vld [vmem:[%s3 + $0x8] sm:$0xff]
    %v92 = vld [vmem:[%s3 + $0x10] sm:$0xff]
    %v93 = vld [vmem:[%s3 + $0x18] sm:$0xff]
    %v94 = vld [vmem:[%s3 + $0x20] sm:$0xff]
    %v95 = vld [vmem:[%s3 + $0x28] sm:$0xff]
    %v96 = vld [vmem:[%s3 + $0x30] sm:$0xff]
    %v97 = vld [vmem:[%s3 + $0x38] sm:$0xff]
    %v98 = vld [vmem:[%s3 + $0x40] sm:$0xff]
    %v99 = vld [vmem:[%s3 + $0x48] sm:$0xff]
    %v100 = vld [vmem:[%s3 + $0x50] sm:$0xff]
    %v101 = vld [vmem:[%s3 + $0x58] sm:$0xff]
    %v102 = vld [vmem:[%s3 + $0x60] sm:$0xff]
    %v103 = vld [vmem:[%s3 + $0x68] sm:$0xff]
    %v104 = vld [vmem:[%s3 + $0x70] sm:$0xff]
    %v105 = vld [vmem:[%s3 + $0x78] sm:$0xff]
    %v106 = vld [vmem:[%s3 + $0x80] sm:$0xff]
    %v107 = vld [vmem:[%s3 + $0x88] sm:$0xff]
    %v108 = vld [vmem:[%s3 + $0x90] sm:$0xff]
    %v109 = vld [vmem:[%s3 + $0x98] sm:$0xff]
    %v110 = vld [vmem:[%s3 + $0xa0] sm:$0xff]
    %v111 = vld [vmem:[%s3 + $0xa8] sm:$0xff]
    %v112 = vld [vmem:[%s3 + $0xb0] sm:$0xff]
    %v113 = vld [vmem:[%s3 + $0xb8] sm:$0xff]
    %v114 = vld [vmem:[%s3 + $0xc0] sm:$0xff]
    %v115 = vld [vmem:[%s3 + $0xc8] sm:$0xff]
    %v116 = vld [vmem:[%s3 + $0xd0] sm:$0xff]
    %v117 = vld [vmem:[%s3 + $0xd8] sm:$0xff]
    %v118 = vld [vmem:[%s3 + $0xe0] sm:$0xff]
    %v119 = vld [vmem:[%s3 + $0xe8] sm:$0xff]
    %v120 = vld [vmem:[%s3 + $0xf0] sm:$0xff]
    %v121 = vld [vmem:[%s3 + $0xf8] sm:$0xff]
    %v122 = vld [vmem:[%s4] sm:$0xff]
    %v123 = vld [vmem:[%s4 + $0x8] sm:$0xff]
    %v124 = vld [vmem:[%s4 + $0x10] sm:$0xff]
    %v125 = vld [vmem:[%s4 + $0x18] sm:$0xff]
    %v126 = vld [vmem:[%s4 + $0x20] sm:$0xff]
    %v127 = vld [vmem:[%s4 + $0x28] sm:$0xff]
    %v128 = vld [vmem:[%s4 + $0x30] sm:$0xff]
    %v129 = vld [vmem:[%s4 + $0x38] sm:$0xff]
    %v130 = vld [vmem:[%s0] sm:$0xff]
    %v131 = vld [vmem:[%s0 + $0x8] sm:$0xff]
    %vm132 = vcmask 130048
    %v134 = vsel %vm132, %v89, 0
    %136 = vmatprep.subr.mxu0 0.0
    %137 = vmatpush1.msra.mxu0 0.0
    %138 = vmatprep.subr.mxu0 0.0
    %139 = vmatpush1.msra.mxu0 0.0
    %140 = vmatprep.subr.mxu0 0.0
    %141 = vmatpush1.msra.mxu0 0.0
    %142 = vmatprep.subr.mxu0 0.0
    %143 = vmatpush1.msra.mxu0 0.0
    %144 = vmatprep.subr.mxu0 0.0
    %145 = vmatpush1.msra.mxu0 0.0
    %146 = vmatprep.subr.mxu0 0.0
    %147 = vmatpush1.msra.mxu0 0.0
    %148 = vmatprep.subr.mxu0 0.0
    %149 = vmatpush1.msra.mxu0 0.0
    %150 = vmatprep.subr.mxu0 0.0
    %151 = vmatpush1.msra.mxu0 0.0
    %152 = vmatprep.subr.mxu0 0.0
    %153 = vmatpush1.msra.mxu0 0.0
    %154 = vmatprep.subr.mxu0 0.0
    %155 = vmatpush1.msra.mxu0 0.0
    %156 = vmatprep.subr.mxu0 0.0
    %157 = vmatpush1.msra.mxu0 0.0
    %158 = vmatprep.subr.mxu0 0.0
    %159 = vmatpush1.msra.mxu0 0.0
    %160 = vmatprep.subr.mxu0 0.0
    %161 = vmatpush1.msra.mxu0 0.0
    %162 = vmatprep.subr.mxu0 0.0
    %163 = vmatpush1.msra.mxu0 0.0
    %164 = vmatprep.subr.mxu0 0.0
    %165 = vmatpush1.msra.mxu0 %v131
    %166 = vmatprep.subr.mxu0 0.0
    %167 = vmatpush1.msra.mxu0 %v130
    %168 = vmatprep.subr.mxu0 0.0
    %169 = vmatpush2.msra.mxu0 0.0
    %170 = vmatprep.subr.mxu0 0.0
    %171 = vmatpush2.msra.mxu0 0.0
    %172 = vmatprep.subr.mxu0 0.0
    %173 = vmatpush2.msra.mxu0 0.0
    %174 = vmatprep.subr.mxu0 0.0
    %175 = vmatpush2.msra.mxu0 0.0
    %176 = vmatprep.subr.mxu0 0.0
    %177 = vmatpush2.msra.mxu0 0.0
    %178 = vmatprep.subr.mxu0 0.0
    %179 = vmatpush2.msra.mxu0 0.0
    %180 = vmatprep.subr.mxu0 0.0
    %181 = vmatpush2.msra.mxu0 0.0
    %182 = vmatprep.subr.mxu0 0.0
    %183 = vmatpush2.msra.mxu0 0.0
    %184 = vmatprep.subr.mxu0 0.0
    %185 = vmatpush2.msra.mxu0 0.0
    %186 = vmatprep.subr.mxu0 0.0
    %187 = vmatpush2.msra.mxu0 0.0
    %188 = vmatprep.subr.mxu0 0.0
    %189 = vmatpush2.msra.mxu0 0.0
    %190 = vmatprep.subr.mxu0 0.0
    %191 = vmatpush2.msra.mxu0 0.0
    %192 = vmatprep.subr.mxu0 0.0
    %193 = vmatpush2.msra.mxu0 0.0
    %194 = vmatprep.subr.mxu0 0.0
    %195 = vmatpush2.msra.mxu0 0.0
    %196 = vmatprep.subr.mxu0 0.0
    %197 = vmatpush2.msra.mxu0 0.0
    %198 = vmatprep.subr.mxu0 0.0
    %199 = vmatpush2.msra.mxu0 0.0
    %200 = vmatprep.mubr.f32.mxu0 0.0
    %201 = vmatmul.mubr.f32.gmra.mxu0 %v134
    %v202 = vpop.f32.mrf.mxu0
    %v203 = vadd.f32 0.0, %v202
    %v204 = vpop.f32.mrf.mxu0
    %205 = vdwg.mxu0
    %v206 = vld [vmem:[%s17] sm:$0xff]
    %v207 = vld [vmem:[%s17 + $0x8] sm:$0xff]
    %v208 = vld [vmem:[%s17 + $0x10] sm:$0xff]
    %v209 = vld [vmem:[%s17 + $0x18] sm:$0xff]
    %v210 = vld [vmem:[%s17 + $0x20] sm:$0xff]
    %v211 = vld [vmem:[%s17 + $0x28] sm:$0xff]
    %v212 = vld [vmem:[%s17 + $0x30] sm:$0xff]
    %v213 = vld [vmem:[%s17 + $0x38] sm:$0xff]
    %v214 = vld [vmem:[%s18] sm:$0x1]
    %v216 = vlaneseq
    %v217 = vshrl.u32 %v216, 7
    %v218 = vsub.s32 0, %v217
    %v219 = vrot.slane %v214, %v218
    %vm221 = vcmask 523264
    %v223 = vsel %vm221, %v203, 0
    %225 = vmatprep.subr.mxu0 0.0
    %226 = vmatpush1.msra.mxu0 0.0
    %227 = vmatprep.subr.mxu0 0.0
    %228 = vmatpush1.msra.mxu0 0.0
    %229 = vmatprep.subr.mxu0 0.0
    %230 = vmatpush1.msra.mxu0 0.0
    %231 = vmatprep.subr.mxu0 0.0
    %232 = vmatpush1.msra.mxu0 0.0
    %233 = vmatprep.subr.mxu0 0.0
    %234 = vmatpush1.msra.mxu0 0.0
    %235 = vmatprep.subr.mxu0 0.0
    %236 = vmatpush1.msra.mxu0 0.0
    %237 = vmatprep.subr.mxu0 0.0
    %238 = vmatpush1.msra.mxu0 0.0
    %239 = vmatprep.subr.mxu0 0.0
    %240 = vmatpush1.msra.mxu0 0.0
    %241 = vmatprep.subr.mxu0 0.0
    %242 = vmatpush1.msra.mxu0 %v213
    %243 = vmatprep.subr.mxu0 0.0
    %244 = vmatpush1.msra.mxu0 %v212
    %245 = vmatprep.subr.mxu0 0.0
    %246 = vmatpush1.msra.mxu0 %v211
    %247 = vmatprep.subr.mxu0 0.0
    %248 = vmatpush1.msra.mxu0 %v210
    %249 = vmatprep.subr.mxu0 0.0
    %250 = vmatpush1.msra.mxu0 %v209
    %251 = vmatprep.subr.mxu0 0.0
    %252 = vmatpush1.msra.mxu0 %v208
    %253 = vmatprep.subr.mxu0 0.0
    %254 = vmatpush1.msra.mxu0 %v207
    %255 = vmatprep.subr.mxu0 0.0
    %256 = vmatpush1.msra.mxu0 %v206
    %257 = vmatprep.subr.mxu0 0.0
    %258 = vmatpush2.msra.mxu0 0.0
    %259 = vmatprep.subr.mxu0 0.0
    %260 = vmatpush2.msra.mxu0 0.0
    %261 = vmatprep.subr.mxu0 0.0
    %262 = vmatpush2.msra.mxu0 0.0
    %263 = vmatprep.subr.mxu0 0.0
    %264 = vmatpush2.msra.mxu0 0.0
    %265 = vmatprep.subr.mxu0 0.0
    %266 = vmatpush2.msra.mxu0 0.0
    %267 = vmatprep.subr.mxu0 0.0
    %268 = vmatpush2.msra.mxu0 0.0
    %269 = vmatprep.subr.mxu0 0.0
    %270 = vmatpush2.msra.mxu0 0.0
    %271 = vmatprep.subr.mxu0 0.0
    %272 = vmatpush2.msra.mxu0 0.0
    %273 = vmatprep.subr.mxu0 0.0
    %274 = vmatpush2.msra.mxu0 0.0
    %275 = vmatprep.subr.mxu0 0.0
    %276 = vmatpush2.msra.mxu0 0.0
    %277 = vmatprep.subr.mxu0 0.0
    %278 = vmatpush2.msra.mxu0 0.0
    %279 = vmatprep.subr.mxu0 0.0
    %280 = vmatpush2.msra.mxu0 0.0
    %281 = vmatprep.subr.mxu0 0.0
    %282 = vmatpush2.msra.mxu0 0.0
    %283 = vmatprep.subr.mxu0 0.0
    %284 = vmatpush2.msra.mxu0 0.0
    %285 = vmatprep.subr.mxu0 0.0
    %286 = vmatpush2.msra.mxu0 0.0
    %287 = vmatprep.subr.mxu0 0.0
    %288 = vmatpush2.msra.mxu0 0.0
    %289 = vmatprep.mubr.f32.mxu0 0.0
    %290 = vmatmul.mubr.f32.gmra.mxu0 %v223
    %v291 = vpop.f32.mrf.mxu0
    %v292 = vadd.f32 %v219, %v291
    %v293 = vpop.f32.mrf.mxu0
    %294 = vdwg.mxu0
    %v295 = vld [vmem:[%s5] sm:$0xff]
    %v296 = vld [vmem:[%s5 + $0x8] sm:$0xff]
    %v297 = vld [vmem:[%s5 + $0x10] sm:$0xff]
    %v298 = vld [vmem:[%s5 + $0x18] sm:$0xff]
    %v299 = vld [vmem:[%s5 + $0x20] sm:$0xff]
    %v300 = vld [vmem:[%s5 + $0x28] sm:$0xff]
    %v301 = vld [vmem:[%s5 + $0x30] sm:$0xff]
    %v302 = vld [vmem:[%s5 + $0x38] sm:$0xff]
    %v303 = vld [vmem:[%s5 + $0x40] sm:$0xff]
    %v304 = vld [vmem:[%s5 + $0x48] sm:$0xff]
    %v305 = vld [vmem:[%s5 + $0x50] sm:$0xff]
    %v306 = vld [vmem:[%s5 + $0x58] sm:$0xff]
    %v307 = vld [vmem:[%s5 + $0x60] sm:$0xff]
    %v308 = vld [vmem:[%s5 + $0x68] sm:$0xff]
    %v309 = vld [vmem:[%s5 + $0x70] sm:$0xff]
    %v310 = vld [vmem:[%s5 + $0x78] sm:$0xff]
    %v312 = vsel %vm221, %v130, 0
    %v315 = vsel %vm221, %v131, 0
    %317 = vmatprep.subr.mxu0 0.0
    %318 = vmatpush1.msra.mxu0 0.0
    %319 = vmatprep.subr.mxu0 0.0
    %320 = vmatpush1.msra.mxu0 0.0
    %321 = vmatprep.subr.mxu0 0.0
    %322 = vmatpush1.msra.mxu0 0.0
    %323 = vmatprep.subr.mxu0 0.0
    %324 = vmatpush1.msra.mxu0 0.0
    %325 = vmatprep.subr.mxu0 0.0
    %326 = vmatpush1.msra.mxu0 0.0
    %327 = vmatprep.subr.mxu0 0.0
    %328 = vmatpush1.msra.mxu0 0.0
    %329 = vmatprep.subr.mxu0 0.0
    %330 = vmatpush1.msra.mxu0 0.0
    %331 = vmatprep.subr.mxu0 0.0
    %332 = vmatpush1.msra.mxu0 0.0
    %333 = vmatprep.subr.mxu0 %v310
    %334 = vmatpush1.msra.mxu0 %v309
    %335 = vmatprep.subr.mxu0 %v308
    %336 = vmatpush1.msra.mxu0 %v307
    %337 = vmatprep.subr.mxu0 %v306
    %338 = vmatpush1.msra.mxu0 %v305
    %339 = vmatprep.subr.mxu0 %v304
    %340 = vmatpush1.msra.mxu0 %v303
    %341 = vmatprep.subr.mxu0 %v302
    %342 = vmatpush1.msra.mxu0 %v301
    %343 = vmatprep.subr.mxu0 %v300
    %344 = vmatpush1.msra.mxu0 %v299
    %345 = vmatprep.subr.mxu0 %v298
    %346 = vmatpush1.msra.mxu0 %v297
    %347 = vmatprep.subr.mxu0 %v296
    %348 = vmatpush1.msra.mxu0 %v295
    %349 = vmatprep.subr.mxu0 0.0
    %350 = vmatpush2.msra.mxu0 0.0
    %351 = vmatprep.subr.mxu0 0.0
    %352 = vmatpush2.msra.mxu0 0.0
    %353 = vmatprep.subr.mxu0 0.0
    %354 = vmatpush2.msra.mxu0 0.0
    %355 = vmatprep.subr.mxu0 0.0
    %356 = vmatpush2.msra.mxu0 0.0
    %357 = vmatprep.subr.mxu0 0.0
    %358 = vmatpush2.msra.mxu0 0.0
    %359 = vmatprep.subr.mxu0 0.0
    %360 = vmatpush2.msra.mxu0 0.0
    %361 = vmatprep.subr.mxu0 0.0
    %362 = vmatpush2.msra.mxu0 0.0
    %363 = vmatprep.subr.mxu0 0.0
    %364 = vmatpush2.msra.mxu0 0.0
    %365 = vmatprep.subr.mxu0 0.0
    %366 = vmatpush2.msra.mxu0 0.0
    %367 = vmatprep.subr.mxu0 0.0
    %368 = vmatpush2.msra.mxu0 0.0
    %369 = vmatprep.subr.mxu0 0.0
    %370 = vmatpush2.msra.mxu0 0.0
    %371 = vmatprep.subr.mxu0 0.0
    %372 = vmatpush2.msra.mxu0 0.0
    %373 = vmatprep.subr.mxu0 0.0
    %374 = vmatpush2.msra.mxu0 0.0
    %375 = vmatprep.subr.mxu0 0.0
    %376 = vmatpush2.msra.mxu0 0.0
    %377 = vmatprep.subr.mxu0 0.0
    %378 = vmatpush2.msra.mxu0 0.0
    %379 = vmatprep.subr.mxu0 0.0
    %380 = vmatpush2.msra.mxu0 0.0
    %381 = vmatprep.mubr.f32.mxu0 0.0
    %382 = vmatmul.mubr.f32.gmra.mxu0 %v312
    %v383 = vpop.f32.mrf.mxu0
    %v384 = vadd.f32 0.0, %v383
    %v385 = vpop.f32.mrf.mxu0
    %v386 = vadd.f32 0.0, %v385
    %387 = vmatprep.mubr.f32.mxu0 0.0
    %388 = vmatmul.mubr.f32.gmra.mxu0 %v315
    %v389 = vpop.f32.mrf.mxu0
    %v390 = vadd.f32 0.0, %v389
    %v391 = vpop.f32.mrf.mxu0
    %v392 = vadd.f32 0.0, %v391
    %393 = vdwg.mxu0
    %v395 = vsel %vm132, %v87, 0
    %v398 = vsel %vm132, %v88, 0
    %400 = vmatprep.subr.mxu0 0.0
    %401 = vmatpush1.msra.mxu0 0.0
    %402 = vmatprep.subr.mxu0 0.0
    %403 = vmatpush1.msra.mxu0 0.0
    %404 = vmatprep.subr.mxu0 0.0
    %405 = vmatpush1.msra.mxu0 0.0
    %406 = vmatprep.subr.mxu0 0.0
    %407 = vmatpush1.msra.mxu0 0.0
    %408 = vmatprep.subr.mxu0 0.0
    %409 = vmatpush1.msra.mxu0 0.0
    %410 = vmatprep.subr.mxu0 0.0
    %411 = vmatpush1.msra.mxu0 0.0
    %412 = vmatprep.subr.mxu0 0.0
    %413 = vmatpush1.msra.mxu0 0.0
    %414 = vmatprep.subr.mxu0 0.0
    %415 = vmatpush1.msra.mxu0 0.0
    %416 = vmatprep.subr.mxu0 0.0
    %417 = vmatpush1.msra.mxu0 0.0
    %418 = vmatprep.subr.mxu0 0.0
    %419 = vmatpush1.msra.mxu0 0.0
    %420 = vmatprep.subr.mxu0 0.0
    %421 = vmatpush1.msra.mxu0 0.0
    %422 = vmatprep.subr.mxu0 0.0
    %423 = vmatpush1.msra.mxu0 0.0
    %424 = vmatprep.subr.mxu0 0.0
    %425 = vmatpush1.msra.mxu0 0.0
    %426 = vmatprep.subr.mxu0 0.0
    %427 = vmatpush1.msra.mxu0 0.0
    %428 = vmatprep.subr.mxu0 %v392
    %429 = vmatpush1.msra.mxu0 %v390
    %430 = vmatprep.subr.mxu0 %v386
    %431 = vmatpush1.msra.mxu0 %v384
    %432 = vmatprep.subr.mxu0 0.0
    %433 = vmatpush2.msra.mxu0 0.0
    %434 = vmatprep.subr.mxu0 0.0
    %435 = vmatpush2.msra.mxu0 0.0
    %436 = vmatprep.subr.mxu0 0.0
    %437 = vmatpush2.msra.mxu0 0.0
    %438 = vmatprep.subr.mxu0 0.0
    %439 = vmatpush2.msra.mxu0 0.0
    %440 = vmatprep.subr.mxu0 0.0
    %441 = vmatpush2.msra.mxu0 0.0
    %442 = vmatprep.subr.mxu0 0.0
    %443 = vmatpush2.msra.mxu0 0.0
    %444 = vmatprep.subr.mxu0 0.0
    %445 = vmatpush2.msra.mxu0 0.0
    %446 = vmatprep.subr.mxu0 0.0
    %447 = vmatpush2.msra.mxu0 0.0
    %448 = vmatprep.subr.mxu0 0.0
    %449 = vmatpush2.msra.mxu0 0.0
    %450 = vmatprep.subr.mxu0 0.0
    %451 = vmatpush2.msra.mxu0 0.0
    %452 = vmatprep.subr.mxu0 0.0
    %453 = vmatpush2.msra.mxu0 0.0
    %454 = vmatprep.subr.mxu0 0.0
    %455 = vmatpush2.msra.mxu0 0.0
    %456 = vmatprep.subr.mxu0 0.0
    %457 = vmatpush2.msra.mxu0 0.0
    %458 = vmatprep.subr.mxu0 0.0
    %459 = vmatpush2.msra.mxu0 0.0
    %460 = vmatprep.subr.mxu0 0.0
    %461 = vmatpush2.msra.mxu0 0.0
    %462 = vmatprep.subr.mxu0 0.0
    %463 = vmatpush2.msra.mxu0 0.0
    %464 = vmatprep.mubr.f32.mxu0 0.0
    %465 = vmatmul.mubr.f32.gmra.mxu0 %v395
    %v466 = vpop.f32.mrf.mxu0
    %v467 = vadd.f32 0.0, %v466
    %v468 = vpop.f32.mrf.mxu0
    %v469 = vadd.f32 0.0, %v468
    %470 = vmatprep.mubr.f32.mxu0 0.0
    %471 = vmatmul.mubr.f32.gmra.mxu0 %v398
    %v472 = vpop.f32.mrf.mxu0
    %v473 = vadd.f32 0.0, %v472
    %v474 = vpop.f32.mrf.mxu0
    %v475 = vadd.f32 0.0, %v474
    %476 = vdwg.mxu0
    %v477 = vadd.f32 %v467, %v473
    %v478 = vrot.slane %v477, 4
    %v479 = vadd.f32 %v477, %v478
    %v480 = vrot.slane %v479, 2
    %v481 = vadd.f32 %v479, %v480
    %v482 = vrot.slane %v481, 1
    %v483 = vadd.f32 %v481, %v482
    %v484 = vadd.f32 %v469, %v475
    %v485 = vrot.slane %v484, 4
    %v486 = vadd.f32 %v484, %v485
    %v487 = vrot.slane %v486, 2
    %v488 = vadd.f32 %v486, %v487
    %v489 = vrot.slane %v488, 1
    %v490 = vadd.f32 %v488, %v489
    %v491 = vrcp.pop 16.0
    %v492 = vmul.f32 %v483, %v491
    %v493 = vmul.f32 %v490, %v491
    %v494 = vmul.f32 %v467, %v467
    %v495 = vmul.f32 %v469, %v469
    %v496 = vmul.f32 %v473, %v473
    %v497 = vmul.f32 %v475, %v475
    %v498 = vadd.f32 %v494, %v496
    %v499 = vrot.slane %v498, 4
    %v500 = vadd.f32 %v498, %v499
    %v501 = vrot.slane %v500, 2
    %v502 = vadd.f32 %v500, %v501
    %v503 = vrot.slane %v502, 1
    %v504 = vadd.f32 %v502, %v503
    %v505 = vadd.f32 %v495, %v497
    %v506 = vrot.slane %v505, 4
    %v507 = vadd.f32 %v505, %v506
    %v508 = vrot.slane %v507, 2
    %v509 = vadd.f32 %v507, %v508
    %v510 = vrot.slane %v509, 1
    %v511 = vadd.f32 %v509, %v510
    %v512 = vmul.f32 %v504, %v491
    %v513 = vmul.f32 %v511, %v491
    %514 = vmatprep.subr.mxu0 0.0
    %515 = vmatpush1.msra.mxu0 %v105
    %516 = vmatprep.subr.mxu0 0.0
    %517 = vmatpush1.msra.mxu0 %v104
    %518 = vmatprep.subr.mxu0 0.0
    %519 = vmatpush1.msra.mxu0 %v103
    %520 = vmatprep.subr.mxu0 0.0
    %521 = vmatpush1.msra.mxu0 %v102
    %522 = vmatprep.subr.mxu0 0.0
    %523 = vmatpush1.msra.mxu0 %v101
    %524 = vmatprep.subr.mxu0 0.0
    %525 = vmatpush1.msra.mxu0 %v100
    %526 = vmatprep.subr.mxu0 0.0
    %527 = vmatpush1.msra.mxu0 %v99
    %528 = vmatprep.subr.mxu0 0.0
    %529 = vmatpush1.msra.mxu0 %v98
    %530 = vmatprep.subr.mxu0 0.0
    %531 = vmatpush1.msra.mxu0 %v97
    %532 = vmatprep.subr.mxu0 0.0
    %533 = vmatpush1.msra.mxu0 %v96
    %534 = vmatprep.subr.mxu0 0.0
    %535 = vmatpush1.msra.mxu0 %v95
    %536 = vmatprep.subr.mxu0 0.0
    %537 = vmatpush1.msra.mxu0 %v94
    %538 = vmatprep.subr.mxu0 0.0
    %539 = vmatpush1.msra.mxu0 %v93
    %540 = vmatprep.subr.mxu0 0.0
    %541 = vmatpush1.msra.mxu0 %v92
    %542 = vmatprep.subr.mxu0 0.0
    %543 = vmatpush1.msra.mxu0 %v91
    %544 = vmatprep.subr.mxu0 0.0
    %545 = vmatpush1.msra.mxu0 %v90
    %546 = vmatprep.subr.mxu0 0.0
    %547 = vmatpush2.msra.mxu0 %v121
    %548 = vmatprep.subr.mxu0 0.0
    %549 = vmatpush2.msra.mxu0 %v120
    %550 = vmatprep.subr.mxu0 0.0
    %551 = vmatpush2.msra.mxu0 %v119
    %552 = vmatprep.subr.mxu0 0.0
    %553 = vmatpush2.msra.mxu0 %v118
    %554 = vmatprep.subr.mxu0 0.0
    %555 = vmatpush2.msra.mxu0 %v117
    %556 = vmatprep.subr.mxu0 0.0
    %557 = vmatpush2.msra.mxu0 %v116
    %558 = vmatprep.subr.mxu0 0.0
    %559 = vmatpush2.msra.mxu0 %v115
    %560 = vmatprep.subr.mxu0 0.0
    %561 = vmatpush2.msra.mxu0 %v114
    %562 = vmatprep.subr.mxu0 0.0
    %563 = vmatpush2.msra.mxu0 %v113
    %564 = vmatprep.subr.mxu0 0.0
    %565 = vmatpush2.msra.mxu0 %v112
    %566 = vmatprep.subr.mxu0 0.0
    %567 = vmatpush2.msra.mxu0 %v111
    %568 = vmatprep.subr.mxu0 0.0
    %569 = vmatpush2.msra.mxu0 %v110
    %570 = vmatprep.subr.mxu0 0.0
    %571 = vmatpush2.msra.mxu0 %v109
    %572 = vmatprep.subr.mxu0 0.0
    %573 = vmatpush2.msra.mxu0 %v108
    %574 = vmatprep.subr.mxu0 0.0
    %575 = vmatpush2.msra.mxu0 %v107
    %576 = vmatprep.subr.mxu0 0.0
    %577 = vmatpush2.msra.mxu0 %v106
    %578 = vmatprep.mubr.f32.mxu0 %v493
    %579 = vmatmul.mubr.f32.gmra.mxu0 %v492
    %v580 = vpop.f32.mrf.mxu0
    %v581 = vadd.f32 0.0, %v580
    %v582 = vpop.f32.mrf.mxu0
    %583 = vdwg.mxu0
    %584 = vmatprep.subr.mxu0 0.0
    %585 = vmatpush1.msra.mxu0 %v105
    %586 = vmatprep.subr.mxu0 0.0
    %587 = vmatpush1.msra.mxu0 %v104
    %588 = vmatprep.subr.mxu0 0.0
    %589 = vmatpush1.msra.mxu0 %v103
    %590 = vmatprep.subr.mxu0 0.0
    %591 = vmatpush1.msra.mxu0 %v102
    %592 = vmatprep.subr.mxu0 0.0
    %593 = vmatpush1.msra.mxu0 %v101
    %594 = vmatprep.subr.mxu0 0.0
    %595 = vmatpush1.msra.mxu0 %v100
    %596 = vmatprep.subr.mxu0 0.0
    %597 = vmatpush1.msra.mxu0 %v99
    %598 = vmatprep.subr.mxu0 0.0
    %599 = vmatpush1.msra.mxu0 %v98
    %600 = vmatprep.subr.mxu0 0.0
    %601 = vmatpush1.msra.mxu0 %v97
    %602 = vmatprep.subr.mxu0 0.0
    %603 = vmatpush1.msra.mxu0 %v96
    %604 = vmatprep.subr.mxu0 0.0
    %605 = vmatpush1.msra.mxu0 %v95
    %606 = vmatprep.subr.mxu0 0.0
    %607 = vmatpush1.msra.mxu0 %v94
    %608 = vmatprep.subr.mxu0 0.0
    %609 = vmatpush1.msra.mxu0 %v93
    %610 = vmatprep.subr.mxu0 0.0
    %611 = vmatpush1.msra.mxu0 %v92
    %612 = vmatprep.subr.mxu0 0.0
    %613 = vmatpush1.msra.mxu0 %v91
    %614 = vmatprep.subr.mxu0 0.0
    %615 = vmatpush1.msra.mxu0 %v90
    %616 = vmatprep.subr.mxu0 0.0
    %617 = vmatpush2.msra.mxu0 %v121
    %618 = vmatprep.subr.mxu0 0.0
    %619 = vmatpush2.msra.mxu0 %v120
    %620 = vmatprep.subr.mxu0 0.0
    %621 = vmatpush2.msra.mxu0 %v119
    %622 = vmatprep.subr.mxu0 0.0
    %623 = vmatpush2.msra.mxu0 %v118
    %624 = vmatprep.subr.mxu0 0.0
    %625 = vmatpush2.msra.mxu0 %v117
    %626 = vmatprep.subr.mxu0 0.0
    %627 = vmatpush2.msra.mxu0 %v116
    %628 = vmatprep.subr.mxu0 0.0
    %629 = vmatpush2.msra.mxu0 %v115
    %630 = vmatprep.subr.mxu0 0.0
    %631 = vmatpush2.msra.mxu0 %v114
    %632 = vmatprep.subr.mxu0 0.0
    %633 = vmatpush2.msra.mxu0 %v113
    %634 = vmatprep.subr.mxu0 0.0
    %635 = vmatpush2.msra.mxu0 %v112
    %636 = vmatprep.subr.mxu0 0.0
    %637 = vmatpush2.msra.mxu0 %v111
    %638 = vmatprep.subr.mxu0 0.0
    %639 = vmatpush2.msra.mxu0 %v110
    %640 = vmatprep.subr.mxu0 0.0
    %641 = vmatpush2.msra.mxu0 %v109
    %642 = vmatprep.subr.mxu0 0.0
    %643 = vmatpush2.msra.mxu0 %v108
    %644 = vmatprep.subr.mxu0 0.0
    %645 = vmatpush2.msra.mxu0 %v107
    %646 = vmatprep.subr.mxu0 0.0
    %647 = vmatpush2.msra.mxu0 %v106
    %648 = vmatprep.mubr.f32.mxu0 %v513
    %649 = vmatmul.mubr.f32.gmra.mxu0 %v512
    %v650 = vpop.f32.mrf.mxu0
    %v651 = vadd.f32 0.0, %v650
    %v652 = vpop.f32.mrf.mxu0
    %653 = vdwg.mxu0
    %v654 = vmul.f32 %v581, %v581
    %v655 = vsub.f32 %v651, %v654
    %v656 = vld [vmem:[%s6] sm:$0x1]
    %v657 = vadd.f32 %v655, 1e-05
    %v658 = vrsqrt.pop %v657
    %v659 = vmul.f32 %v656, %v658
    %v660 = vld [vmem:[%s7] sm:$0x1]
    %v661 = vmul.f32 %v659, %v581
    %v662 = vsub.f32 %v660, %v661
    %vm663 = vcmask 261120
    %v665 = vsel %vm663, %v659, 0
    %667 = vmatprep.subr.mxu0 0.0
    %668 = vmatpush1.msra.mxu0 0.0
    %669 = vmatprep.subr.mxu0 0.0
    %670 = vmatpush1.msra.mxu0 0.0
    %671 = vmatprep.subr.mxu0 0.0
    %672 = vmatpush1.msra.mxu0 0.0
    %673 = vmatprep.subr.mxu0 0.0
    %674 = vmatpush1.msra.mxu0 0.0
    %675 = vmatprep.subr.mxu0 0.0
    %676 = vmatpush1.msra.mxu0 0.0
    %677 = vmatprep.subr.mxu0 0.0
    %678 = vmatpush1.msra.mxu0 0.0
    %679 = vmatprep.subr.mxu0 0.0
    %680 = vmatpush1.msra.mxu0 0.0
    %681 = vmatprep.subr.mxu0 0.0
    %682 = vmatpush1.msra.mxu0 0.0
    %683 = vmatprep.subr.mxu0 0.0
    %684 = vmatpush1.msra.mxu0 0.0
    %685 = vmatprep.subr.mxu0 0.0
    %686 = vmatpush1.msra.mxu0 0.0
    %687 = vmatprep.subr.mxu0 0.0
    %688 = vmatpush1.msra.mxu0 0.0
    %689 = vmatprep.subr.mxu0 0.0
    %690 = vmatpush1.msra.mxu0 0.0
    %691 = vmatprep.subr.mxu0 %v129
    %692 = vmatpush1.msra.mxu0 %v128
    %693 = vmatprep.subr.mxu0 %v127
    %694 = vmatpush1.msra.mxu0 %v126
    %695 = vmatprep.subr.mxu0 %v125
    %696 = vmatpush1.msra.mxu0 %v124
    %697 = vmatprep.subr.mxu0 %v123
    %698 = vmatpush1.msra.mxu0 %v122
    %699 = vmatprep.subr.mxu0 0.0
    %700 = vmatpush2.msra.mxu0 0.0
    %701 = vmatprep.subr.mxu0 0.0
    %702 = vmatpush2.msra.mxu0 0.0
    %703 = vmatprep.subr.mxu0 0.0
    %704 = vmatpush2.msra.mxu0 0.0
    %705 = vmatprep.subr.mxu0 0.0
    %706 = vmatpush2.msra.mxu0 0.0
    %707 = vmatprep.subr.mxu0 0.0
    %708 = vmatpush2.msra.mxu0 0.0
    %709 = vmatprep.subr.mxu0 0.0
    %710 = vmatpush2.msra.mxu0 0.0
    %711 = vmatprep.subr.mxu0 0.0
    %712 = vmatpush2.msra.mxu0 0.0
    %713 = vmatprep.subr.mxu0 0.0
    %714 = vmatpush2.msra.mxu0 0.0
    %715 = vmatprep.subr.mxu0 0.0
    %716 = vmatpush2.msra.mxu0 0.0
    %717 = vmatprep.subr.mxu0 0.0
    %718 = vmatpush2.msra.mxu0 0.0
    %719 = vmatprep.subr.mxu0 0.0
    %720 = vmatpush2.msra.mxu0 0.0
    %721 = vmatprep.subr.mxu0 0.0
    %722 = vmatpush2.msra.mxu0 0.0
    %723 = vmatprep.subr.mxu0 0.0
    %724 = vmatpush2.msra.mxu0 0.0
    %725 = vmatprep.subr.mxu0 0.0
    %726 = vmatpush2.msra.mxu0 0.0
    %727 = vmatprep.subr.mxu0 0.0
    %728 = vmatpush2.msra.mxu0 0.0
    %729 = vmatprep.subr.mxu0 0.0
    %730 = vmatpush2.msra.mxu0 0.0
    %731 = vmatprep.mubr.f32.mxu0 0.0
    %732 = vmatmul.mubr.f32.gmra.mxu0 %v665
    %v733 = vpop.f32.mrf.mxu0
    %v734 = vadd.f32 0.0, %v733
    %v735 = vpop.f32.mrf.mxu0
    %v736 = vadd.f32 0.0, %v735
    %737 = vdwg.mxu0
    %v739 = vsel %vm663, %v662, 0
    %741 = vmatprep.subr.mxu0 0.0
    %742 = vmatpush1.msra.mxu0 0.0
    %743 = vmatprep.subr.mxu0 0.0
    %744 = vmatpush1.msra.mxu0 0.0
    %745 = vmatprep.subr.mxu0 0.0
    %746 = vmatpush1.msra.mxu0 0.0
    %747 = vmatprep.subr.mxu0 0.0
    %748 = vmatpush1.msra.mxu0 0.0
    %749 = vmatprep.subr.mxu0 0.0
    %750 = vmatpush1.msra.mxu0 0.0
    %751 = vmatprep.subr.mxu0 0.0
    %752 = vmatpush1.msra.mxu0 0.0
    %753 = vmatprep.subr.mxu0 0.0
    %754 = vmatpush1.msra.mxu0 0.0
    %755 = vmatprep.subr.mxu0 0.0
    %756 = vmatpush1.msra.mxu0 0.0
    %757 = vmatprep.subr.mxu0 0.0
    %758 = vmatpush1.msra.mxu0 0.0
    %759 = vmatprep.subr.mxu0 0.0
    %760 = vmatpush1.msra.mxu0 0.0
    %761 = vmatprep.subr.mxu0 0.0
    %762 = vmatpush1.msra.mxu0 0.0
    %763 = vmatprep.subr.mxu0 0.0
    %764 = vmatpush1.msra.mxu0 0.0
    %765 = vmatprep.subr.mxu0 %v129
    %766 = vmatpush1.msra.mxu0 %v128
    %767 = vmatprep.subr.mxu0 %v127
    %768 = vmatpush1.msra.mxu0 %v126
    %769 = vmatprep.subr.mxu0 %v125
    %770 = vmatpush1.msra.mxu0 %v124
    %771 = vmatprep.subr.mxu0 %v123
    %772 = vmatpush1.msra.mxu0 %v122
    %773 = vmatprep.subr.mxu0 0.0
    %774 = vmatpush2.msra.mxu0 0.0
    %775 = vmatprep.subr.mxu0 0.0
    %776 = vmatpush2.msra.mxu0 0.0
    %777 = vmatprep.subr.mxu0 0.0
    %778 = vmatpush2.msra.mxu0 0.0
    %779 = vmatprep.subr.mxu0 0.0
    %780 = vmatpush2.msra.mxu0 0.0
    %781 = vmatprep.subr.mxu0 0.0
    %782 = vmatpush2.msra.mxu0 0.0
    %783 = vmatprep.subr.mxu0 0.0
    %784 = vmatpush2.msra.mxu0 0.0
    %785 = vmatprep.subr.mxu0 0.0
    %786 = vmatpush2.msra.mxu0 0.0
    %787 = vmatprep.subr.mxu0 0.0
    %788 = vmatpush2.msra.mxu0 0.0
    %789 = vmatprep.subr.mxu0 0.0
    %790 = vmatpush2.msra.mxu0 0.0
    %791 = vmatprep.subr.mxu0 0.0
    %792 = vmatpush2.msra.mxu0 0.0
    %793 = vmatprep.subr.mxu0 0.0
    %794 = vmatpush2.msra.mxu0 0.0
    %795 = vmatprep.subr.mxu0 0.0
    %796 = vmatpush2.msra.mxu0 0.0
    %797 = vmatprep.subr.mxu0 0.0
    %798 = vmatpush2.msra.mxu0 0.0
    %799 = vmatprep.subr.mxu0 0.0
    %800 = vmatpush2.msra.mxu0 0.0
    %801 = vmatprep.subr.mxu0 0.0
    %802 = vmatpush2.msra.mxu0 0.0
    %803 = vmatprep.subr.mxu0 0.0
    %804 = vmatpush2.msra.mxu0 0.0
    %805 = vmatprep.mubr.f32.mxu0 0.0
    %806 = vmatmul.mubr.f32.gmra.mxu0 %v739
    %v807 = vpop.f32.mrf.mxu0
    %v808 = vadd.f32 0.0, %v807
    %v809 = vpop.f32.mrf.mxu0
    %v810 = vadd.f32 0.0, %v809
    %811 = vdwg.mxu0
    %v812 = vlaneseq
    %v813 = vshrl.u32 %v812, 7
    %v814 = vsub.s32 0, %v813
    %v815 = vrot.slane %v734, %v814
    %v816 = vlaneseq
    %v817 = vshrl.u32 %v816, 7
    %v818 = vsub.s32 0, %v817
    %v819 = vrot.slane %v736, %v818
    %v820 = vmul.f32 %v467, %v815
    %v821 = vmul.f32 %v469, %v819
    %v822 = vmul.f32 %v473, %v815
    %v823 = vmul.f32 %v475, %v819
    %v824 = vlaneseq
    %v825 = vshrl.u32 %v824, 7
    %v826 = vsub.s32 0, %v825
    %v827 = vrot.slane %v808, %v826
    %v828 = vlaneseq
    %v829 = vshrl.u32 %v828, 7
    %v830 = vsub.s32 0, %v829
    %v831 = vrot.slane %v810, %v830
    %v832 = vadd.f32 %v820, %v827
    %v833 = vadd.f32 %v821, %v831
    %v834 = vadd.f32 %v822, %v827
    %v835 = vadd.f32 %v823, %v831
    %v836 = vmax.f32 %v832, 0.0
    %v837 = vmax.f32 %v833, 0.0
    %v838 = vmax.f32 %v834, 0.0
    %v839 = vmax.f32 %v835, 0.0
    %840 = vmatprep.subr.mxu0 0.0
    %841 = vmatpush1.msra.mxu0 0.0
    %842 = vmatprep.subr.mxu0 0.0
    %843 = vmatpush1.msra.mxu0 0.0
    %844 = vmatprep.subr.mxu0 0.0
    %845 = vmatpush1.msra.mxu0 0.0
    %846 = vmatprep.subr.mxu0 0.0
    %847 = vmatpush1.msra.mxu0 0.0
    %848 = vmatprep.subr.mxu0 0.0
    %849 = vmatpush1.msra.mxu0 0.0
    %850 = vmatprep.subr.mxu0 0.0
    %851 = vmatpush1.msra.mxu0 0.0
    %852 = vmatprep.subr.mxu0 0.0
    %853 = vmatpush1.msra.mxu0 0.0
    %854 = vmatprep.subr.mxu0 0.0
    %855 = vmatpush1.msra.mxu0 0.0
    %856 = vmatprep.subr.mxu0 0.0
    %857 = vmatpush1.msra.mxu0 0.0
    %858 = vmatprep.subr.mxu0 0.0
    %859 = vmatpush1.msra.mxu0 0.0
    %860 = vmatprep.subr.mxu0 0.0
    %861 = vmatpush1.msra.mxu0 0.0
    %862 = vmatprep.subr.mxu0 0.0
    %863 = vmatpush1.msra.mxu0 0.0
    %864 = vmatprep.subr.mxu0 0.0
    %865 = vmatpush1.msra.mxu0 0.0
    %866 = vmatprep.subr.mxu0 0.0
    %867 = vmatpush1.msra.mxu0 0.0
    %868 = vmatprep.subr.mxu0 %v839
    %869 = vmatpush1.msra.mxu0 %v838
    %870 = vmatprep.subr.mxu0 %v837
    %871 = vmatpush1.msra.mxu0 %v836
    %872 = vmatprep.subr.mxu0 0.0
    %873 = vmatpush2.msra.mxu0 0.0
    %874 = vmatprep.subr.mxu0 0.0
    %875 = vmatpush2.msra.mxu0 0.0
    %876 = vmatprep.subr.mxu0 0.0
    %877 = vmatpush2.msra.mxu0 0.0
    %878 = vmatprep.subr.mxu0 0.0
    %879 = vmatpush2.msra.mxu0 0.0
    %880 = vmatprep.subr.mxu0 0.0
    %881 = vmatpush2.msra.mxu0 0.0
    %882 = vmatprep.subr.mxu0 0.0
    %883 = vmatpush2.msra.mxu0 0.0
    %884 = vmatprep.subr.mxu0 0.0
    %885 = vmatpush2.msra.mxu0 0.0
    %886 = vmatprep.subr.mxu0 0.0
    %887 = vmatpush2.msra.mxu0 0.0
    %888 = vmatprep.subr.mxu0 0.0
    %889 = vmatpush2.msra.mxu0 0.0
    %890 = vmatprep.subr.mxu0 0.0
    %891 = vmatpush2.msra.mxu0 0.0
    %892 = vmatprep.subr.mxu0 0.0
    %893 = vmatpush2.msra.mxu0 0.0
    %894 = vmatprep.subr.mxu0 0.0
    %895 = vmatpush2.msra.mxu0 0.0
    %896 = vmatprep.subr.mxu0 0.0
    %897 = vmatpush2.msra.mxu0 0.0
    %898 = vmatprep.subr.mxu0 0.0
    %899 = vmatpush2.msra.mxu0 0.0
    %900 = vmatprep.subr.mxu0 0.0
    %901 = vmatpush2.msra.mxu0 0.0
    %902 = vmatprep.subr.mxu0 0.0
    %903 = vmatpush2.msra.mxu0 0.0
    %904 = vmatprep.mubr.f32.mxu0 0.0
    %905 = vmatmul.mubr.f32.gmra.mxu0 %v134
    %v906 = vpop.f32.mrf.mxu0
    %v907 = vadd.f32 0.0, %v906
    %v908 = vpop.f32.mrf.mxu0
    %v909 = vadd.f32 0.0, %v908
    %910 = vdwg.mxu0
    %v911 = vld [vmem:[%s19] sm:$0xff]
    %v912 = vld [vmem:[%s19 + $0x8] sm:$0xff]
    %v913 = vld [vmem:[%s19 + $0x10] sm:$0xff]
    %v914 = vld [vmem:[%s19 + $0x18] sm:$0xff]
    %v915 = vld [vmem:[%s19 + $0x20] sm:$0xff]
    %v916 = vld [vmem:[%s19 + $0x28] sm:$0xff]
    %v917 = vld [vmem:[%s19 + $0x30] sm:$0xff]
    %v918 = vld [vmem:[%s19 + $0x38] sm:$0xff]
    %v919 = vld [vmem:[%s19 + $0x40] sm:$0xff]
    %v920 = vld [vmem:[%s19 + $0x48] sm:$0xff]
    %v921 = vld [vmem:[%s19 + $0x50] sm:$0xff]
    %v922 = vld [vmem:[%s19 + $0x58] sm:$0xff]
    %v923 = vld [vmem:[%s19 + $0x60] sm:$0xff]
    %v924 = vld [vmem:[%s19 + $0x68] sm:$0xff]
    %v925 = vld [vmem:[%s19 + $0x70] sm:$0xff]
    %v926 = vld [vmem:[%s19 + $0x78] sm:$0xff]
    %v927 = vld [vmem:[%s19 + $0x80] sm:$0xff]
    %v928 = vld [vmem:[%s19 + $0x88] sm:$0xff]
    %v929 = vld [vmem:[%s19 + $0x90] sm:$0xff]
    %v930 = vld [vmem:[%s19 + $0x98] sm:$0xff]
    %v931 = vld [vmem:[%s19 + $0xa0] sm:$0xff]
    %v932 = vld [vmem:[%s19 + $0xa8] sm:$0xff]
    %v933 = vld [vmem:[%s19 + $0xb0] sm:$0xff]
    %v934 = vld [vmem:[%s19 + $0xb8] sm:$0xff]
    %v935 = vld [vmem:[%s19 + $0xc0] sm:$0xff]
    %v936 = vld [vmem:[%s19 + $0xc8] sm:$0xff]
    %v937 = vld [vmem:[%s19 + $0xd0] sm:$0xff]
    %v938 = vld [vmem:[%s19 + $0xd8] sm:$0xff]
    %v939 = vld [vmem:[%s19 + $0xe0] sm:$0xff]
    %v940 = vld [vmem:[%s19 + $0xe8] sm:$0xff]
    %v941 = vld [vmem:[%s19 + $0xf0] sm:$0xff]
    %v942 = vld [vmem:[%s19 + $0xf8] sm:$0xff]
    %v943 = vld [vmem:[%s20] sm:$0x1]
    %v945 = vlaneseq
    %v946 = vshrl.u32 %v945, 7
    %v947 = vsub.s32 0, %v946
    %v948 = vrot.slane %v943, %v947
    %950 = vmatprep.subr.mxu0 0.0
    %951 = vmatpush1.msra.mxu0 %v926
    %952 = vmatprep.subr.mxu0 0.0
    %953 = vmatpush1.msra.mxu0 %v925
    %954 = vmatprep.subr.mxu0 0.0
    %955 = vmatpush1.msra.mxu0 %v924
    %956 = vmatprep.subr.mxu0 0.0
    %957 = vmatpush1.msra.mxu0 %v923
    %958 = vmatprep.subr.mxu0 0.0
    %959 = vmatpush1.msra.mxu0 %v922
    %960 = vmatprep.subr.mxu0 0.0
    %961 = vmatpush1.msra.mxu0 %v921
    %962 = vmatprep.subr.mxu0 0.0
    %963 = vmatpush1.msra.mxu0 %v920
    %964 = vmatprep.subr.mxu0 0.0
    %965 = vmatpush1.msra.mxu0 %v919
    %966 = vmatprep.subr.mxu0 0.0
    %967 = vmatpush1.msra.mxu0 %v918
    %968 = vmatprep.subr.mxu0 0.0
    %969 = vmatpush1.msra.mxu0 %v917
    %970 = vmatprep.subr.mxu0 0.0
    %971 = vmatpush1.msra.mxu0 %v916
    %972 = vmatprep.subr.mxu0 0.0
    %973 = vmatpush1.msra.mxu0 %v915
    %974 = vmatprep.subr.mxu0 0.0
    %975 = vmatpush1.msra.mxu0 %v914
    %976 = vmatprep.subr.mxu0 0.0
    %977 = vmatpush1.msra.mxu0 %v913
    %978 = vmatprep.subr.mxu0 0.0
    %979 = vmatpush1.msra.mxu0 %v912
    %980 = vmatprep.subr.mxu0 0.0
    %981 = vmatpush1.msra.mxu0 %v911
    %982 = vmatprep.subr.mxu0 0.0
    %983 = vmatpush2.msra.mxu0 %v942
    %984 = vmatprep.subr.mxu0 0.0
    %985 = vmatpush2.msra.mxu0 %v941
    %986 = vmatprep.subr.mxu0 0.0
    %987 = vmatpush2.msra.mxu0 %v940
    %988 = vmatprep.subr.mxu0 0.0
    %989 = vmatpush2.msra.mxu0 %v939
    %990 = vmatprep.subr.mxu0 0.0
    %991 = vmatpush2.msra.mxu0 %v938
    %992 = vmatprep.subr.mxu0 0.0
    %993 = vmatpush2.msra.mxu0 %v937
    %994 = vmatprep.subr.mxu0 0.0
    %995 = vmatpush2.msra.mxu0 %v936
    %996 = vmatprep.subr.mxu0 0.0
    %997 = vmatpush2.msra.mxu0 %v935
    %998 = vmatprep.subr.mxu0 0.0
    %999 = vmatpush2.msra.mxu0 %v934
    %1000 = vmatprep.subr.mxu0 0.0
    %1001 = vmatpush2.msra.mxu0 %v933
    %1002 = vmatprep.subr.mxu0 0.0
    %1003 = vmatpush2.msra.mxu0 %v932
    %1004 = vmatprep.subr.mxu0 0.0
    %1005 = vmatpush2.msra.mxu0 %v931
    %1006 = vmatprep.subr.mxu0 0.0
    %1007 = vmatpush2.msra.mxu0 %v930
    %1008 = vmatprep.subr.mxu0 0.0
    %1009 = vmatpush2.msra.mxu0 %v929
    %1010 = vmatprep.subr.mxu0 0.0
    %1011 = vmatpush2.msra.mxu0 %v928
    %1012 = vmatprep.subr.mxu0 0.0
    %1013 = vmatpush2.msra.mxu0 %v927
    %1014 = vmatprep.mubr.f32.mxu0 %v909
    %1015 = vmatmul.mubr.f32.gmra.mxu0 %v907
    %v1016 = vpop.f32.mrf.mxu0
    %v1017 = vadd.f32 %v948, %v1016
    %v1018 = vpop.f32.mrf.mxu0
    %1019 = vdwg.mxu0
    %v1020 = vadd.f32 %v292, %v1017
    %v1021 = vld [vmem:[%s8] sm:$0xff]
    %v1022 = vld [vmem:[%s8 + $0x8] sm:$0xff]
    %v1023 = vld [vmem:[%s8 + $0x10] sm:$0xff]
    %v1024 = vld [vmem:[%s8 + $0x18] sm:$0xff]
    %v1025 = vld [vmem:[%s8 + $0x20] sm:$0xff]
    %v1026 = vld [vmem:[%s8 + $0x28] sm:$0xff]
    %v1027 = vld [vmem:[%s8 + $0x30] sm:$0xff]
    %v1028 = vld [vmem:[%s8 + $0x38] sm:$0xff]
    %v1029 = vld [vmem:[%s8 + $0x40] sm:$0xff]
    %v1030 = vld [vmem:[%s8 + $0x48] sm:$0xff]
    %v1031 = vld [vmem:[%s8 + $0x50] sm:$0xff]
    %v1032 = vld [vmem:[%s8 + $0x58] sm:$0xff]
    %v1033 = vld [vmem:[%s8 + $0x60] sm:$0xff]
    %v1034 = vld [vmem:[%s8 + $0x68] sm:$0xff]
    %v1035 = vld [vmem:[%s8 + $0x70] sm:$0xff]
    %v1036 = vld [vmem:[%s8 + $0x78] sm:$0xff]
    %v1037 = vld [vmem:[%s8 + $0x80] sm:$0xff]
    %v1038 = vld [vmem:[%s8 + $0x88] sm:$0xff]
    %v1039 = vld [vmem:[%s8 + $0x90] sm:$0xff]
    %v1040 = vld [vmem:[%s8 + $0x98] sm:$0xff]
    %v1041 = vld [vmem:[%s8 + $0xa0] sm:$0xff]
    %v1042 = vld [vmem:[%s8 + $0xa8] sm:$0xff]
    %v1043 = vld [vmem:[%s8 + $0xb0] sm:$0xff]
    %v1044 = vld [vmem:[%s8 + $0xb8] sm:$0xff]
    %v1045 = vld [vmem:[%s8 + $0xc0] sm:$0xff]
    %v1046 = vld [vmem:[%s8 + $0xc8] sm:$0xff]
    %v1047 = vld [vmem:[%s8 + $0xd0] sm:$0xff]
    %v1048 = vld [vmem:[%s8 + $0xd8] sm:$0xff]
    %v1049 = vld [vmem:[%s8 + $0xe0] sm:$0xff]
    %v1050 = vld [vmem:[%s8 + $0xe8] sm:$0xff]
    %v1051 = vld [vmem:[%s8 + $0xf0] sm:$0xff]
    %v1052 = vld [vmem:[%s8 + $0xf8] sm:$0xff]
    %v1053 = vld [vmem:[%s8 + $0x100] sm:$0xff]
    %v1054 = vld [vmem:[%s8 + $0x108] sm:$0xff]
    %v1055 = vld [vmem:[%s8 + $0x110] sm:$0xff]
    %v1056 = vld [vmem:[%s8 + $0x118] sm:$0xff]
    %v1057 = vld [vmem:[%s8 + $0x120] sm:$0xff]
    %v1058 = vld [vmem:[%s8 + $0x128] sm:$0xff]
    %v1059 = vld [vmem:[%s8 + $0x130] sm:$0xff]
    %v1060 = vld [vmem:[%s8 + $0x138] sm:$0xff]
    %v1061 = vld [vmem:[%s8 + $0x140] sm:$0xff]
    %v1062 = vld [vmem:[%s8 + $0x148] sm:$0xff]
    %v1063 = vld [vmem:[%s8 + $0x150] sm:$0xff]
    %v1064 = vld [vmem:[%s8 + $0x158] sm:$0xff]
    %v1065 = vld [vmem:[%s8 + $0x160] sm:$0xff]
    %v1066 = vld [vmem:[%s8 + $0x168] sm:$0xff]
    %v1067 = vld [vmem:[%s8 + $0x170] sm:$0xff]
    %v1068 = vld [vmem:[%s8 + $0x178] sm:$0xff]
    %v1069 = vld [vmem:[%s8 + $0x180] sm:$0xff]
    %v1070 = vld [vmem:[%s8 + $0x188] sm:$0xff]
    %v1071 = vld [vmem:[%s8 + $0x190] sm:$0xff]
    %v1072 = vld [vmem:[%s8 + $0x198] sm:$0xff]
    %v1073 = vld [vmem:[%s8 + $0x1a0] sm:$0xff]
    %v1074 = vld [vmem:[%s8 + $0x1a8] sm:$0xff]
    %v1075 = vld [vmem:[%s8 + $0x1b0] sm:$0xff]
    %v1076 = vld [vmem:[%s8 + $0x1b8] sm:$0xff]
    %v1077 = vld [vmem:[%s8 + $0x1c0] sm:$0xff]
    %v1078 = vld [vmem:[%s8 + $0x1c8] sm:$0xff]
    %v1079 = vld [vmem:[%s8 + $0x1d0] sm:$0xff]
    %v1080 = vld [vmem:[%s8 + $0x1d8] sm:$0xff]
    %v1081 = vld [vmem:[%s8 + $0x1e0] sm:$0xff]
    %v1082 = vld [vmem:[%s8 + $0x1e8] sm:$0xff]
    %v1083 = vld [vmem:[%s8 + $0x1f0] sm:$0xff]
    %v1084 = vld [vmem:[%s8 + $0x1f8] sm:$0xff]
    %1085 = vmatprep.subr.mxu0 %v1052
    %1086 = vmatpush1.msra.mxu0 %v1051
    %1087 = vmatprep.subr.mxu0 %v1050
    %1088 = vmatpush1.msra.mxu0 %v1049
    %1089 = vmatprep.subr.mxu0 %v1048
    %1090 = vmatpush1.msra.mxu0 %v1047
    %1091 = vmatprep.subr.mxu0 %v1046
    %1092 = vmatpush1.msra.mxu0 %v1045
    %1093 = vmatprep.subr.mxu0 %v1044
    %1094 = vmatpush1.msra.mxu0 %v1043
    %1095 = vmatprep.subr.mxu0 %v1042
    %1096 = vmatpush1.msra.mxu0 %v1041
    %1097 = vmatprep.subr.mxu0 %v1040
    %1098 = vmatpush1.msra.mxu0 %v1039
    %1099 = vmatprep.subr.mxu0 %v1038
    %1100 = vmatpush1.msra.mxu0 %v1037
    %1101 = vmatprep.subr.mxu0 %v1036
    %1102 = vmatpush1.msra.mxu0 %v1035
    %1103 = vmatprep.subr.mxu0 %v1034
    %1104 = vmatpush1.msra.mxu0 %v1033
    %1105 = vmatprep.subr.mxu0 %v1032
    %1106 = vmatpush1.msra.mxu0 %v1031
    %1107 = vmatprep.subr.mxu0 %v1030
    %1108 = vmatpush1.msra.mxu0 %v1029
    %1109 = vmatprep.subr.mxu0 %v1028
    %1110 = vmatpush1.msra.mxu0 %v1027
    %1111 = vmatprep.subr.mxu0 %v1026
    %1112 = vmatpush1.msra.mxu0 %v1025
    %1113 = vmatprep.subr.mxu0 %v1024
    %1114 = vmatpush1.msra.mxu0 %v1023
    %1115 = vmatprep.subr.mxu0 %v1022
    %1116 = vmatpush1.msra.mxu0 %v1021
    %1117 = vmatprep.subr.mxu0 %v1084
    %1118 = vmatpush2.msra.mxu0 %v1083
    %1119 = vmatprep.subr.mxu0 %v1082
    %1120 = vmatpush2.msra.mxu0 %v1081
    %1121 = vmatprep.subr.mxu0 %v1080
    %1122 = vmatpush2.msra.mxu0 %v1079
    %1123 = vmatprep.subr.mxu0 %v1078
    %1124 = vmatpush2.msra.mxu0 %v1077
    %1125 = vmatprep.subr.mxu0 %v1076
    %1126 = vmatpush2.msra.mxu0 %v1075
    %1127 = vmatprep.subr.mxu0 %v1074
    %1128 = vmatpush2.msra.mxu0 %v1073
    %1129 = vmatprep.subr.mxu0 %v1072
    %1130 = vmatpush2.msra.mxu0 %v1071
    %1131 = vmatprep.subr.mxu0 %v1070
    %1132 = vmatpush2.msra.mxu0 %v1069
    %1133 = vmatprep.subr.mxu0 %v1068
    %1134 = vmatpush2.msra.mxu0 %v1067
    %1135 = vmatprep.subr.mxu0 %v1066
    %1136 = vmatpush2.msra.mxu0 %v1065
    %1137 = vmatprep.subr.mxu0 %v1064
    %1138 = vmatpush2.msra.mxu0 %v1063
    %1139 = vmatprep.subr.mxu0 %v1062
    %1140 = vmatpush2.msra.mxu0 %v1061
    %1141 = vmatprep.subr.mxu0 %v1060
    %1142 = vmatpush2.msra.mxu0 %v1059
    %1143 = vmatprep.subr.mxu0 %v1058
    %1144 = vmatpush2.msra.mxu0 %v1057
    %1145 = vmatprep.subr.mxu0 %v1056
    %1146 = vmatpush2.msra.mxu0 %v1055
    %1147 = vmatprep.subr.mxu0 %v1054
    %1148 = vmatpush2.msra.mxu0 %v1053
    %1149 = vmatprep.mubr.f32.mxu0 %v837
    %1150 = vmatmul.mubr.f32.gmra.mxu0 %v836
    %v1151 = vpop.f32.mrf.mxu0
    %v1152 = vadd.f32 0.0, %v1151
    %v1153 = vpop.f32.mrf.mxu0
    %v1154 = vadd.f32 0.0, %v1153
    %1155 = vmatprep.mubr.f32.mxu0 %v839
    %1156 = vmatmul.mubr.f32.gmra.mxu0 %v838
    %v1157 = vpop.f32.mrf.mxu0
    %v1158 = vadd.f32 0.0, %v1157
    %v1159 = vpop.f32.mrf.mxu0
    %v1160 = vadd.f32 0.0, %v1159
    %1161 = vdwg.mxu0
    %1162 = vmatprep.subr.mxu0 0.0
    %1163 = vmatpush1.msra.mxu0 0.0
    %1164 = vmatprep.subr.mxu0 0.0
    %1165 = vmatpush1.msra.mxu0 0.0
    %1166 = vmatprep.subr.mxu0 0.0
    %1167 = vmatpush1.msra.mxu0 0.0
    %1168 = vmatprep.subr.mxu0 0.0
    %1169 = vmatpush1.msra.mxu0 0.0
    %1170 = vmatprep.subr.mxu0 0.0
    %1171 = vmatpush1.msra.mxu0 0.0
    %1172 = vmatprep.subr.mxu0 0.0
    %1173 = vmatpush1.msra.mxu0 0.0
    %1174 = vmatprep.subr.mxu0 0.0
    %1175 = vmatpush1.msra.mxu0 0.0
    %1176 = vmatprep.subr.mxu0 0.0
    %1177 = vmatpush1.msra.mxu0 0.0
    %1178 = vmatprep.subr.mxu0 0.0
    %1179 = vmatpush1.msra.mxu0 0.0
    %1180 = vmatprep.subr.mxu0 0.0
    %1181 = vmatpush1.msra.mxu0 0.0
    %1182 = vmatprep.subr.mxu0 0.0
    %1183 = vmatpush1.msra.mxu0 0.0
    %1184 = vmatprep.subr.mxu0 0.0
    %1185 = vmatpush1.msra.mxu0 0.0
    %1186 = vmatprep.subr.mxu0 0.0
    %1187 = vmatpush1.msra.mxu0 0.0
    %1188 = vmatprep.subr.mxu0 0.0
    %1189 = vmatpush1.msra.mxu0 0.0
    %1190 = vmatprep.subr.mxu0 %v1160
    %1191 = vmatpush1.msra.mxu0 %v1158
    %1192 = vmatprep.subr.mxu0 %v1154
    %1193 = vmatpush1.msra.mxu0 %v1152
    %1194 = vmatprep.subr.mxu0 0.0
    %1195 = vmatpush2.msra.mxu0 0.0
    %1196 = vmatprep.subr.mxu0 0.0
    %1197 = vmatpush2.msra.mxu0 0.0
    %1198 = vmatprep.subr.mxu0 0.0
    %1199 = vmatpush2.msra.mxu0 0.0
    %1200 = vmatprep.subr.mxu0 0.0
    %1201 = vmatpush2.msra.mxu0 0.0
    %1202 = vmatprep.subr.mxu0 0.0
    %1203 = vmatpush2.msra.mxu0 0.0
    %1204 = vmatprep.subr.mxu0 0.0
    %1205 = vmatpush2.msra.mxu0 0.0
    %1206 = vmatprep.subr.mxu0 0.0
    %1207 = vmatpush2.msra.mxu0 0.0
    %1208 = vmatprep.subr.mxu0 0.0
    %1209 = vmatpush2.msra.mxu0 0.0
    %1210 = vmatprep.subr.mxu0 0.0
    %1211 = vmatpush2.msra.mxu0 0.0
    %1212 = vmatprep.subr.mxu0 0.0
    %1213 = vmatpush2.msra.mxu0 0.0
    %1214 = vmatprep.subr.mxu0 0.0
    %1215 = vmatpush2.msra.mxu0 0.0
    %1216 = vmatprep.subr.mxu0 0.0
    %1217 = vmatpush2.msra.mxu0 0.0
    %1218 = vmatprep.subr.mxu0 0.0
    %1219 = vmatpush2.msra.mxu0 0.0
    %1220 = vmatprep.subr.mxu0 0.0
    %1221 = vmatpush2.msra.mxu0 0.0
    %1222 = vmatprep.subr.mxu0 0.0
    %1223 = vmatpush2.msra.mxu0 0.0
    %1224 = vmatprep.subr.mxu0 0.0
    %1225 = vmatpush2.msra.mxu0 0.0
    %1226 = vmatprep.mubr.f32.mxu0 0.0
    %1227 = vmatmul.mubr.f32.gmra.mxu0 %v395
    %v1228 = vpop.f32.mrf.mxu0
    %v1229 = vadd.f32 0.0, %v1228
    %v1230 = vpop.f32.mrf.mxu0
    %v1231 = vadd.f32 0.0, %v1230
    %1232 = vmatprep.mubr.f32.mxu0 0.0
    %1233 = vmatmul.mubr.f32.gmra.mxu0 %v398
    %v1234 = vpop.f32.mrf.mxu0
    %v1235 = vadd.f32 0.0, %v1234
    %v1236 = vpop.f32.mrf.mxu0
    %v1237 = vadd.f32 0.0, %v1236
    %1238 = vdwg.mxu0
    %v1239 = vadd.f32 %v1229, %v1235
    %v1240 = vrot.slane %v1239, 4
    %v1241 = vadd.f32 %v1239, %v1240
    %v1242 = vrot.slane %v1241, 2
    %v1243 = vadd.f32 %v1241, %v1242
    %v1244 = vrot.slane %v1243, 1
    %v1245 = vadd.f32 %v1243, %v1244
    %v1246 = vadd.f32 %v1231, %v1237
    %v1247 = vrot.slane %v1246, 4
    %v1248 = vadd.f32 %v1246, %v1247
    %v1249 = vrot.slane %v1248, 2
    %v1250 = vadd.f32 %v1248, %v1249
    %v1251 = vrot.slane %v1250, 1
    %v1252 = vadd.f32 %v1250, %v1251
    %v1253 = vmul.f32 %v1245, %v491
    %v1254 = vmul.f32 %v1252, %v491
    %v1255 = vmul.f32 %v1229, %v1229
    %v1256 = vmul.f32 %v1231, %v1231
    %v1257 = vmul.f32 %v1235, %v1235
    %v1258 = vmul.f32 %v1237, %v1237
    %v1259 = vadd.f32 %v1255, %v1257
    %v1260 = vrot.slane %v1259, 4
    %v1261 = vadd.f32 %v1259, %v1260
    %v1262 = vrot.slane %v1261, 2
    %v1263 = vadd.f32 %v1261, %v1262
    %v1264 = vrot.slane %v1263, 1
    %v1265 = vadd.f32 %v1263, %v1264
    %v1266 = vadd.f32 %v1256, %v1258
    %v1267 = vrot.slane %v1266, 4
    %v1268 = vadd.f32 %v1266, %v1267
    %v1269 = vrot.slane %v1268, 2
    %v1270 = vadd.f32 %v1268, %v1269
    %v1271 = vrot.slane %v1270, 1
    %v1272 = vadd.f32 %v1270, %v1271
    %v1273 = vmul.f32 %v1265, %v491
    %v1274 = vmul.f32 %v1272, %v491
    %1275 = vmatprep.subr.mxu0 0.0
    %1276 = vmatpush1.msra.mxu0 %v105
    %1277 = vmatprep.subr.mxu0 0.0
    %1278 = vmatpush1.msra.mxu0 %v104
    %1279 = vmatprep.subr.mxu0 0.0
    %1280 = vmatpush1.msra.mxu0 %v103
    %1281 = vmatprep.subr.mxu0 0.0
    %1282 = vmatpush1.msra.mxu0 %v102
    %1283 = vmatprep.subr.mxu0 0.0
    %1284 = vmatpush1.msra.mxu0 %v101
    %1285 = vmatprep.subr.mxu0 0.0
    %1286 = vmatpush1.msra.mxu0 %v100
    %1287 = vmatprep.subr.mxu0 0.0
    %1288 = vmatpush1.msra.mxu0 %v99
    %1289 = vmatprep.subr.mxu0 0.0
    %1290 = vmatpush1.msra.mxu0 %v98
    %1291 = vmatprep.subr.mxu0 0.0
    %1292 = vmatpush1.msra.mxu0 %v97
    %1293 = vmatprep.subr.mxu0 0.0
    %1294 = vmatpush1.msra.mxu0 %v96
    %1295 = vmatprep.subr.mxu0 0.0
    %1296 = vmatpush1.msra.mxu0 %v95
    %1297 = vmatprep.subr.mxu0 0.0
    %1298 = vmatpush1.msra.mxu0 %v94
    %1299 = vmatprep.subr.mxu0 0.0
    %1300 = vmatpush1.msra.mxu0 %v93
    %1301 = vmatprep.subr.mxu0 0.0
    %1302 = vmatpush1.msra.mxu0 %v92
    %1303 = vmatprep.subr.mxu0 0.0
    %1304 = vmatpush1.msra.mxu0 %v91
    %1305 = vmatprep.subr.mxu0 0.0
    %1306 = vmatpush1.msra.mxu0 %v90
    %1307 = vmatprep.subr.mxu0 0.0
    %1308 = vmatpush2.msra.mxu0 %v121
    %1309 = vmatprep.subr.mxu0 0.0
    %1310 = vmatpush2.msra.mxu0 %v120
    %1311 = vmatprep.subr.mxu0 0.0
    %1312 = vmatpush2.msra.mxu0 %v119
    %1313 = vmatprep.subr.mxu0 0.0
    %1314 = vmatpush2.msra.mxu0 %v118
    %1315 = vmatprep.subr.mxu0 0.0
    %1316 = vmatpush2.msra.mxu0 %v117
    %1317 = vmatprep.subr.mxu0 0.0
    %1318 = vmatpush2.msra.mxu0 %v116
    %1319 = vmatprep.subr.mxu0 0.0
    %1320 = vmatpush2.msra.mxu0 %v115
    %1321 = vmatprep.subr.mxu0 0.0
    %1322 = vmatpush2.msra.mxu0 %v114
    %1323 = vmatprep.subr.mxu0 0.0
    %1324 = vmatpush2.msra.mxu0 %v113
    %1325 = vmatprep.subr.mxu0 0.0
    %1326 = vmatpush2.msra.mxu0 %v112
    %1327 = vmatprep.subr.mxu0 0.0
    %1328 = vmatpush2.msra.mxu0 %v111
    %1329 = vmatprep.subr.mxu0 0.0
    %1330 = vmatpush2.msra.mxu0 %v110
    %1331 = vmatprep.subr.mxu0 0.0
    %1332 = vmatpush2.msra.mxu0 %v109
    %1333 = vmatprep.subr.mxu0 0.0
    %1334 = vmatpush2.msra.mxu0 %v108
    %1335 = vmatprep.subr.mxu0 0.0
    %1336 = vmatpush2.msra.mxu0 %v107
    %1337 = vmatprep.subr.mxu0 0.0
    %1338 = vmatpush2.msra.mxu0 %v106
    %1339 = vmatprep.mubr.f32.mxu0 %v1254
    %1340 = vmatmul.mubr.f32.gmra.mxu0 %v1253
    %v1341 = vpop.f32.mrf.mxu0
    %v1342 = vadd.f32 0.0, %v1341
    %v1343 = vpop.f32.mrf.mxu0
    %1344 = vdwg.mxu0
    %1345 = vmatprep.subr.mxu0 0.0
    %1346 = vmatpush1.msra.mxu0 %v105
    %1347 = vmatprep.subr.mxu0 0.0
    %1348 = vmatpush1.msra.mxu0 %v104
    %1349 = vmatprep.subr.mxu0 0.0
    %1350 = vmatpush1.msra.mxu0 %v103
    %1351 = vmatprep.subr.mxu0 0.0
    %1352 = vmatpush1.msra.mxu0 %v102
    %1353 = vmatprep.subr.mxu0 0.0
    %1354 = vmatpush1.msra.mxu0 %v101
    %1355 = vmatprep.subr.mxu0 0.0
    %1356 = vmatpush1.msra.mxu0 %v100
    %1357 = vmatprep.subr.mxu0 0.0
    %1358 = vmatpush1.msra.mxu0 %v99
    %1359 = vmatprep.subr.mxu0 0.0
    %1360 = vmatpush1.msra.mxu0 %v98
    %1361 = vmatprep.subr.mxu0 0.0
    %1362 = vmatpush1.msra.mxu0 %v97
    %1363 = vmatprep.subr.mxu0 0.0
    %1364 = vmatpush1.msra.mxu0 %v96
    %1365 = vmatprep.subr.mxu0 0.0
    %1366 = vmatpush1.msra.mxu0 %v95
    %1367 = vmatprep.subr.mxu0 0.0
    %1368 = vmatpush1.msra.mxu0 %v94
    %1369 = vmatprep.subr.mxu0 0.0
    %1370 = vmatpush1.msra.mxu0 %v93
    %1371 = vmatprep.subr.mxu0 0.0
    %1372 = vmatpush1.msra.mxu0 %v92
    %1373 = vmatprep.subr.mxu0 0.0
    %1374 = vmatpush1.msra.mxu0 %v91
    %1375 = vmatprep.subr.mxu0 0.0
    %1376 = vmatpush1.msra.mxu0 %v90
    %1377 = vmatprep.subr.mxu0 0.0
    %1378 = vmatpush2.msra.mxu0 %v121
    %1379 = vmatprep.subr.mxu0 0.0
    %1380 = vmatpush2.msra.mxu0 %v120
    %1381 = vmatprep.subr.mxu0 0.0
    %1382 = vmatpush2.msra.mxu0 %v119
    %1383 = vmatprep.subr.mxu0 0.0
    %1384 = vmatpush2.msra.mxu0 %v118
    %1385 = vmatprep.subr.mxu0 0.0
    %1386 = vmatpush2.msra.mxu0 %v117
    %1387 = vmatprep.subr.mxu0 0.0
    %1388 = vmatpush2.msra.mxu0 %v116
    %1389 = vmatprep.subr.mxu0 0.0
    %1390 = vmatpush2.msra.mxu0 %v115
    %1391 = vmatprep.subr.mxu0 0.0
    %1392 = vmatpush2.msra.mxu0 %v114
    %1393 = vmatprep.subr.mxu0 0.0
    %1394 = vmatpush2.msra.mxu0 %v113
    %1395 = vmatprep.subr.mxu0 0.0
    %1396 = vmatpush2.msra.mxu0 %v112
    %1397 = vmatprep.subr.mxu0 0.0
    %1398 = vmatpush2.msra.mxu0 %v111
    %1399 = vmatprep.subr.mxu0 0.0
    %1400 = vmatpush2.msra.mxu0 %v110
    %1401 = vmatprep.subr.mxu0 0.0
    %1402 = vmatpush2.msra.mxu0 %v109
    %1403 = vmatprep.subr.mxu0 0.0
    %1404 = vmatpush2.msra.mxu0 %v108
    %1405 = vmatprep.subr.mxu0 0.0
    %1406 = vmatpush2.msra.mxu0 %v107
    %1407 = vmatprep.subr.mxu0 0.0
    %1408 = vmatpush2.msra.mxu0 %v106
    %1409 = vmatprep.mubr.f32.mxu0 %v1274
    %1410 = vmatmul.mubr.f32.gmra.mxu0 %v1273
    %v1411 = vpop.f32.mrf.mxu0
    %v1412 = vadd.f32 0.0, %v1411
    %v1413 = vpop.f32.mrf.mxu0
    %1414 = vdwg.mxu0
    %v1415 = vmul.f32 %v1342, %v1342
    %v1416 = vsub.f32 %v1412, %v1415
    %v1417 = vld [vmem:[%s9] sm:$0x1]
    %v1418 = vadd.f32 %v1416, 1e-05
    %v1419 = vrsqrt.pop %v1418
    %v1420 = vmul.f32 %v1417, %v1419
    %v1421 = vld [vmem:[%s10] sm:$0x1]
    %v1422 = vmul.f32 %v1420, %v1342
    %v1423 = vsub.f32 %v1421, %v1422
    %v1425 = vsel %vm663, %v1420, 0
    %1427 = vmatprep.subr.mxu0 0.0
    %1428 = vmatpush1.msra.mxu0 0.0
    %1429 = vmatprep.subr.mxu0 0.0
    %1430 = vmatpush1.msra.mxu0 0.0
    %1431 = vmatprep.subr.mxu0 0.0
    %1432 = vmatpush1.msra.mxu0 0.0
    %1433 = vmatprep.subr.mxu0 0.0
    %1434 = vmatpush1.msra.mxu0 0.0
    %1435 = vmatprep.subr.mxu0 0.0
    %1436 = vmatpush1.msra.mxu0 0.0
    %1437 = vmatprep.subr.mxu0 0.0
    %1438 = vmatpush1.msra.mxu0 0.0
    %1439 = vmatprep.subr.mxu0 0.0
    %1440 = vmatpush1.msra.mxu0 0.0
    %1441 = vmatprep.subr.mxu0 0.0
    %1442 = vmatpush1.msra.mxu0 0.0
    %1443 = vmatprep.subr.mxu0 0.0
    %1444 = vmatpush1.msra.mxu0 0.0
    %1445 = vmatprep.subr.mxu0 0.0
    %1446 = vmatpush1.msra.mxu0 0.0
    %1447 = vmatprep.subr.mxu0 0.0
    %1448 = vmatpush1.msra.mxu0 0.0
    %1449 = vmatprep.subr.mxu0 0.0
    %1450 = vmatpush1.msra.mxu0 0.0
    %1451 = vmatprep.subr.mxu0 %v129
    %1452 = vmatpush1.msra.mxu0 %v128
    %1453 = vmatprep.subr.mxu0 %v127
    %1454 = vmatpush1.msra.mxu0 %v126
    %1455 = vmatprep.subr.mxu0 %v125
    %1456 = vmatpush1.msra.mxu0 %v124
    %1457 = vmatprep.subr.mxu0 %v123
    %1458 = vmatpush1.msra.mxu0 %v122
    %1459 = vmatprep.subr.mxu0 0.0
    %1460 = vmatpush2.msra.mxu0 0.0
    %1461 = vmatprep.subr.mxu0 0.0
    %1462 = vmatpush2.msra.mxu0 0.0
    %1463 = vmatprep.subr.mxu0 0.0
    %1464 = vmatpush2.msra.mxu0 0.0
    %1465 = vmatprep.subr.mxu0 0.0
    %1466 = vmatpush2.msra.mxu0 0.0
    %1467 = vmatprep.subr.mxu0 0.0
    %1468 = vmatpush2.msra.mxu0 0.0
    %1469 = vmatprep.subr.mxu0 0.0
    %1470 = vmatpush2.msra.mxu0 0.0
    %1471 = vmatprep.subr.mxu0 0.0
    %1472 = vmatpush2.msra.mxu0 0.0
    %1473 = vmatprep.subr.mxu0 0.0
    %1474 = vmatpush2.msra.mxu0 0.0
    %1475 = vmatprep.subr.mxu0 0.0
    %1476 = vmatpush2.msra.mxu0 0.0
    %1477 = vmatprep.subr.mxu0 0.0
    %1478 = vmatpush2.msra.mxu0 0.0
    %1479 = vmatprep.subr.mxu0 0.0
    %1480 = vmatpush2.msra.mxu0 0.0
    %1481 = vmatprep.subr.mxu0 0.0
    %1482 = vmatpush2.msra.mxu0 0.0
    %1483 = vmatprep.subr.mxu0 0.0
    %1484 = vmatpush2.msra.mxu0 0.0
    %1485 = vmatprep.subr.mxu0 0.0
    %1486 = vmatpush2.msra.mxu0 0.0
    %1487 = vmatprep.subr.mxu0 0.0
    %1488 = vmatpush2.msra.mxu0 0.0
    %1489 = vmatprep.subr.mxu0 0.0
    %1490 = vmatpush2.msra.mxu0 0.0
    %1491 = vmatprep.mubr.f32.mxu0 0.0
    %1492 = vmatmul.mubr.f32.gmra.mxu0 %v1425
    %v1493 = vpop.f32.mrf.mxu0
    %v1494 = vadd.f32 0.0, %v1493
    %v1495 = vpop.f32.mrf.mxu0
    %v1496 = vadd.f32 0.0, %v1495
    %1497 = vdwg.mxu0
    %v1499 = vsel %vm663, %v1423, 0
    %1501 = vmatprep.subr.mxu0 0.0
    %1502 = vmatpush1.msra.mxu0 0.0
    %1503 = vmatprep.subr.mxu0 0.0
    %1504 = vmatpush1.msra.mxu0 0.0
    %1505 = vmatprep.subr.mxu0 0.0
    %1506 = vmatpush1.msra.mxu0 0.0
    %1507 = vmatprep.subr.mxu0 0.0
    %1508 = vmatpush1.msra.mxu0 0.0
    %1509 = vmatprep.subr.mxu0 0.0
    %1510 = vmatpush1.msra.mxu0 0.0
    %1511 = vmatprep.subr.mxu0 0.0
    %1512 = vmatpush1.msra.mxu0 0.0
    %1513 = vmatprep.subr.mxu0 0.0
    %1514 = vmatpush1.msra.mxu0 0.0
    %1515 = vmatprep.subr.mxu0 0.0
    %1516 = vmatpush1.msra.mxu0 0.0
    %1517 = vmatprep.subr.mxu0 0.0
    %1518 = vmatpush1.msra.mxu0 0.0
    %1519 = vmatprep.subr.mxu0 0.0
    %1520 = vmatpush1.msra.mxu0 0.0
    %1521 = vmatprep.subr.mxu0 0.0
    %1522 = vmatpush1.msra.mxu0 0.0
    %1523 = vmatprep.subr.mxu0 0.0
    %1524 = vmatpush1.msra.mxu0 0.0
    %1525 = vmatprep.subr.mxu0 %v129
    %1526 = vmatpush1.msra.mxu0 %v128
    %1527 = vmatprep.subr.mxu0 %v127
    %1528 = vmatpush1.msra.mxu0 %v126
    %1529 = vmatprep.subr.mxu0 %v125
    %1530 = vmatpush1.msra.mxu0 %v124
    %1531 = vmatprep.subr.mxu0 %v123
    %1532 = vmatpush1.msra.mxu0 %v122
    %1533 = vmatprep.subr.mxu0 0.0
    %1534 = vmatpush2.msra.mxu0 0.0
    %1535 = vmatprep.subr.mxu0 0.0
    %1536 = vmatpush2.msra.mxu0 0.0
    %1537 = vmatprep.subr.mxu0 0.0
    %1538 = vmatpush2.msra.mxu0 0.0
    %1539 = vmatprep.subr.mxu0 0.0
    %1540 = vmatpush2.msra.mxu0 0.0
    %1541 = vmatprep.subr.mxu0 0.0
    %1542 = vmatpush2.msra.mxu0 0.0
    %1543 = vmatprep.subr.mxu0 0.0
    %1544 = vmatpush2.msra.mxu0 0.0
    %1545 = vmatprep.subr.mxu0 0.0
    %1546 = vmatpush2.msra.mxu0 0.0
    %1547 = vmatprep.subr.mxu0 0.0
    %1548 = vmatpush2.msra.mxu0 0.0
    %1549 = vmatprep.subr.mxu0 0.0
    %1550 = vmatpush2.msra.mxu0 0.0
    %1551 = vmatprep.subr.mxu0 0.0
    %1552 = vmatpush2.msra.mxu0 0.0
    %1553 = vmatprep.subr.mxu0 0.0
    %1554 = vmatpush2.msra.mxu0 0.0
    %1555 = vmatprep.subr.mxu0 0.0
    %1556 = vmatpush2.msra.mxu0 0.0
    %1557 = vmatprep.subr.mxu0 0.0
    %1558 = vmatpush2.msra.mxu0 0.0
    %1559 = vmatprep.subr.mxu0 0.0
    %1560 = vmatpush2.msra.mxu0 0.0
    %1561 = vmatprep.subr.mxu0 0.0
    %1562 = vmatpush2.msra.mxu0 0.0
    %1563 = vmatprep.subr.mxu0 0.0
    %1564 = vmatpush2.msra.mxu0 0.0
    %1565 = vmatprep.mubr.f32.mxu0 0.0
    %1566 = vmatmul.mubr.f32.gmra.mxu0 %v1499
    %v1567 = vpop.f32.mrf.mxu0
    %v1568 = vadd.f32 0.0, %v1567
    %v1569 = vpop.f32.mrf.mxu0
    %v1570 = vadd.f32 0.0, %v1569
    %1571 = vdwg.mxu0
    %v1572 = vlaneseq
    %v1573 = vshrl.u32 %v1572, 7
    %v1574 = vsub.s32 0, %v1573
    %v1575 = vrot.slane %v1494, %v1574
    %v1576 = vlaneseq
    %v1577 = vshrl.u32 %v1576, 7
    %v1578 = vsub.s32 0, %v1577
    %v1579 = vrot.slane %v1496, %v1578
    %v1580 = vmul.f32 %v1229, %v1575
    %v1581 = vmul.f32 %v1231, %v1579
    %v1582 = vmul.f32 %v1235, %v1575
    %v1583 = vmul.f32 %v1237, %v1579
    %v1584 = vlaneseq
    %v1585 = vshrl.u32 %v1584, 7
    %v1586 = vsub.s32 0, %v1585
    %v1587 = vrot.slane %v1568, %v1586
    %v1588 = vlaneseq
    %v1589 = vshrl.u32 %v1588, 7
    %v1590 = vsub.s32 0, %v1589
    %v1591 = vrot.slane %v1570, %v1590
    %v1592 = vadd.f32 %v1580, %v1587
    %v1593 = vadd.f32 %v1581, %v1591
    %v1594 = vadd.f32 %v1582, %v1587
    %v1595 = vadd.f32 %v1583, %v1591
    %v1596 = vmax.f32 %v1592, 0.0
    %v1597 = vmax.f32 %v1593, 0.0
    %v1598 = vmax.f32 %v1594, 0.0
    %v1599 = vmax.f32 %v1595, 0.0
    %1600 = vmatprep.subr.mxu0 0.0
    %1601 = vmatpush1.msra.mxu0 0.0
    %1602 = vmatprep.subr.mxu0 0.0
    %1603 = vmatpush1.msra.mxu0 0.0
    %1604 = vmatprep.subr.mxu0 0.0
    %1605 = vmatpush1.msra.mxu0 0.0
    %1606 = vmatprep.subr.mxu0 0.0
    %1607 = vmatpush1.msra.mxu0 0.0
    %1608 = vmatprep.subr.mxu0 0.0
    %1609 = vmatpush1.msra.mxu0 0.0
    %1610 = vmatprep.subr.mxu0 0.0
    %1611 = vmatpush1.msra.mxu0 0.0
    %1612 = vmatprep.subr.mxu0 0.0
    %1613 = vmatpush1.msra.mxu0 0.0
    %1614 = vmatprep.subr.mxu0 0.0
    %1615 = vmatpush1.msra.mxu0 0.0
    %1616 = vmatprep.subr.mxu0 0.0
    %1617 = vmatpush1.msra.mxu0 0.0
    %1618 = vmatprep.subr.mxu0 0.0
    %1619 = vmatpush1.msra.mxu0 0.0
    %1620 = vmatprep.subr.mxu0 0.0
    %1621 = vmatpush1.msra.mxu0 0.0
    %1622 = vmatprep.subr.mxu0 0.0
    %1623 = vmatpush1.msra.mxu0 0.0
    %1624 = vmatprep.subr.mxu0 0.0
    %1625 = vmatpush1.msra.mxu0 0.0
    %1626 = vmatprep.subr.mxu0 0.0
    %1627 = vmatpush1.msra.mxu0 0.0
    %1628 = vmatprep.subr.mxu0 %v1599
    %1629 = vmatpush1.msra.mxu0 %v1598
    %1630 = vmatprep.subr.mxu0 %v1597
    %1631 = vmatpush1.msra.mxu0 %v1596
    %1632 = vmatprep.subr.mxu0 0.0
    %1633 = vmatpush2.msra.mxu0 0.0
    %1634 = vmatprep.subr.mxu0 0.0
    %1635 = vmatpush2.msra.mxu0 0.0
    %1636 = vmatprep.subr.mxu0 0.0
    %1637 = vmatpush2.msra.mxu0 0.0
    %1638 = vmatprep.subr.mxu0 0.0
    %1639 = vmatpush2.msra.mxu0 0.0
    %1640 = vmatprep.subr.mxu0 0.0
    %1641 = vmatpush2.msra.mxu0 0.0
    %1642 = vmatprep.subr.mxu0 0.0
    %1643 = vmatpush2.msra.mxu0 0.0
    %1644 = vmatprep.subr.mxu0 0.0
    %1645 = vmatpush2.msra.mxu0 0.0
    %1646 = vmatprep.subr.mxu0 0.0
    %1647 = vmatpush2.msra.mxu0 0.0
    %1648 = vmatprep.subr.mxu0 0.0
    %1649 = vmatpush2.msra.mxu0 0.0
    %1650 = vmatprep.subr.mxu0 0.0
    %1651 = vmatpush2.msra.mxu0 0.0
    %1652 = vmatprep.subr.mxu0 0.0
    %1653 = vmatpush2.msra.mxu0 0.0
    %1654 = vmatprep.subr.mxu0 0.0
    %1655 = vmatpush2.msra.mxu0 0.0
    %1656 = vmatprep.subr.mxu0 0.0
    %1657 = vmatpush2.msra.mxu0 0.0
    %1658 = vmatprep.subr.mxu0 0.0
    %1659 = vmatpush2.msra.mxu0 0.0
    %1660 = vmatprep.subr.mxu0 0.0
    %1661 = vmatpush2.msra.mxu0 0.0
    %1662 = vmatprep.subr.mxu0 0.0
    %1663 = vmatpush2.msra.mxu0 0.0
    %1664 = vmatprep.mubr.f32.mxu0 0.0
    %1665 = vmatmul.mubr.f32.gmra.mxu0 %v134
    %v1666 = vpop.f32.mrf.mxu0
    %v1667 = vadd.f32 0.0, %v1666
    %v1668 = vpop.f32.mrf.mxu0
    %v1669 = vadd.f32 0.0, %v1668
    %1670 = vdwg.mxu0
    %v1671 = vld [vmem:[%s21] sm:$0xff]
    %v1672 = vld [vmem:[%s21 + $0x8] sm:$0xff]
    %v1673 = vld [vmem:[%s21 + $0x10] sm:$0xff]
    %v1674 = vld [vmem:[%s21 + $0x18] sm:$0xff]
    %v1675 = vld [vmem:[%s21 + $0x20] sm:$0xff]
    %v1676 = vld [vmem:[%s21 + $0x28] sm:$0xff]
    %v1677 = vld [vmem:[%s21 + $0x30] sm:$0xff]
    %v1678 = vld [vmem:[%s21 + $0x38] sm:$0xff]
    %v1679 = vld [vmem:[%s21 + $0x40] sm:$0xff]
    %v1680 = vld [vmem:[%s21 + $0x48] sm:$0xff]
    %v1681 = vld [vmem:[%s21 + $0x50] sm:$0xff]
    %v1682 = vld [vmem:[%s21 + $0x58] sm:$0xff]
    %v1683 = vld [vmem:[%s21 + $0x60] sm:$0xff]
    %v1684 = vld [vmem:[%s21 + $0x68] sm:$0xff]
    %v1685 = vld [vmem:[%s21 + $0x70] sm:$0xff]
    %v1686 = vld [vmem:[%s21 + $0x78] sm:$0xff]
    %v1687 = vld [vmem:[%s21 + $0x80] sm:$0xff]
    %v1688 = vld [vmem:[%s21 + $0x88] sm:$0xff]
    %v1689 = vld [vmem:[%s21 + $0x90] sm:$0xff]
    %v1690 = vld [vmem:[%s21 + $0x98] sm:$0xff]
    %v1691 = vld [vmem:[%s21 + $0xa0] sm:$0xff]
    %v1692 = vld [vmem:[%s21 + $0xa8] sm:$0xff]
    %v1693 = vld [vmem:[%s21 + $0xb0] sm:$0xff]
    %v1694 = vld [vmem:[%s21 + $0xb8] sm:$0xff]
    %v1695 = vld [vmem:[%s21 + $0xc0] sm:$0xff]
    %v1696 = vld [vmem:[%s21 + $0xc8] sm:$0xff]
    %v1697 = vld [vmem:[%s21 + $0xd0] sm:$0xff]
    %v1698 = vld [vmem:[%s21 + $0xd8] sm:$0xff]
    %v1699 = vld [vmem:[%s21 + $0xe0] sm:$0xff]
    %v1700 = vld [vmem:[%s21 + $0xe8] sm:$0xff]
    %v1701 = vld [vmem:[%s21 + $0xf0] sm:$0xff]
    %v1702 = vld [vmem:[%s21 + $0xf8] sm:$0xff]
    %v1703 = vld [vmem:[%s22] sm:$0x1]
    %v1705 = vlaneseq
    %v1706 = vshrl.u32 %v1705, 7
    %v1707 = vsub.s32 0, %v1706
    %v1708 = vrot.slane %v1703, %v1707
    %1710 = vmatprep.subr.mxu0 0.0
    %1711 = vmatpush1.msra.mxu0 %v1686
    %1712 = vmatprep.subr.mxu0 0.0
    %1713 = vmatpush1.msra.mxu0 %v1685
    %1714 = vmatprep.subr.mxu0 0.0
    %1715 = vmatpush1.msra.mxu0 %v1684
    %1716 = vmatprep.subr.mxu0 0.0
    %1717 = vmatpush1.msra.mxu0 %v1683
    %1718 = vmatprep.subr.mxu0 0.0
    %1719 = vmatpush1.msra.mxu0 %v1682
    %1720 = vmatprep.subr.mxu0 0.0
    %1721 = vmatpush1.msra.mxu0 %v1681
    %1722 = vmatprep.subr.mxu0 0.0
    %1723 = vmatpush1.msra.mxu0 %v1680
    %1724 = vmatprep.subr.mxu0 0.0
    %1725 = vmatpush1.msra.mxu0 %v1679
    %1726 = vmatprep.subr.mxu0 0.0
    %1727 = vmatpush1.msra.mxu0 %v1678
    %1728 = vmatprep.subr.mxu0 0.0
    %1729 = vmatpush1.msra.mxu0 %v1677
    %1730 = vmatprep.subr.mxu0 0.0
    %1731 = vmatpush1.msra.mxu0 %v1676
    %1732 = vmatprep.subr.mxu0 0.0
    %1733 = vmatpush1.msra.mxu0 %v1675
    %1734 = vmatprep.subr.mxu0 0.0
    %1735 = vmatpush1.msra.mxu0 %v1674
    %1736 = vmatprep.subr.mxu0 0.0
    %1737 = vmatpush1.msra.mxu0 %v1673
    %1738 = vmatprep.subr.mxu0 0.0
    %1739 = vmatpush1.msra.mxu0 %v1672
    %1740 = vmatprep.subr.mxu0 0.0
    %1741 = vmatpush1.msra.mxu0 %v1671
    %1742 = vmatprep.subr.mxu0 0.0
    %1743 = vmatpush2.msra.mxu0 %v1702
    %1744 = vmatprep.subr.mxu0 0.0
    %1745 = vmatpush2.msra.mxu0 %v1701
    %1746 = vmatprep.subr.mxu0 0.0
    %1747 = vmatpush2.msra.mxu0 %v1700
    %1748 = vmatprep.subr.mxu0 0.0
    %1749 = vmatpush2.msra.mxu0 %v1699
    %1750 = vmatprep.subr.mxu0 0.0
    %1751 = vmatpush2.msra.mxu0 %v1698
    %1752 = vmatprep.subr.mxu0 0.0
    %1753 = vmatpush2.msra.mxu0 %v1697
    %1754 = vmatprep.subr.mxu0 0.0
    %1755 = vmatpush2.msra.mxu0 %v1696
    %1756 = vmatprep.subr.mxu0 0.0
    %1757 = vmatpush2.msra.mxu0 %v1695
    %1758 = vmatprep.subr.mxu0 0.0
    %1759 = vmatpush2.msra.mxu0 %v1694
    %1760 = vmatprep.subr.mxu0 0.0
    %1761 = vmatpush2.msra.mxu0 %v1693
    %1762 = vmatprep.subr.mxu0 0.0
    %1763 = vmatpush2.msra.mxu0 %v1692
    %1764 = vmatprep.subr.mxu0 0.0
    %1765 = vmatpush2.msra.mxu0 %v1691
    %1766 = vmatprep.subr.mxu0 0.0
    %1767 = vmatpush2.msra.mxu0 %v1690
    %1768 = vmatprep.subr.mxu0 0.0
    %1769 = vmatpush2.msra.mxu0 %v1689
    %1770 = vmatprep.subr.mxu0 0.0
    %1771 = vmatpush2.msra.mxu0 %v1688
    %1772 = vmatprep.subr.mxu0 0.0
    %1773 = vmatpush2.msra.mxu0 %v1687
    %1774 = vmatprep.mubr.f32.mxu0 %v1669
    %1775 = vmatmul.mubr.f32.gmra.mxu0 %v1667
    %v1776 = vpop.f32.mrf.mxu0
    %v1777 = vadd.f32 %v1708, %v1776
    %v1778 = vpop.f32.mrf.mxu0
    %1779 = vdwg.mxu0
    %v1780 = vadd.f32 %v1020, %v1777
    %v1781 = vld [vmem:[%s11] sm:$0xff]
    %v1782 = vld [vmem:[%s11 + $0x8] sm:$0xff]
    %v1783 = vld [vmem:[%s11 + $0x10] sm:$0xff]
    %v1784 = vld [vmem:[%s11 + $0x18] sm:$0xff]
    %v1785 = vld [vmem:[%s11 + $0x20] sm:$0xff]
    %v1786 = vld [vmem:[%s11 + $0x28] sm:$0xff]
    %v1787 = vld [vmem:[%s11 + $0x30] sm:$0xff]
    %v1788 = vld [vmem:[%s11 + $0x38] sm:$0xff]
    %v1789 = vld [vmem:[%s11 + $0x40] sm:$0xff]
    %v1790 = vld [vmem:[%s11 + $0x48] sm:$0xff]
    %v1791 = vld [vmem:[%s11 + $0x50] sm:$0xff]
    %v1792 = vld [vmem:[%s11 + $0x58] sm:$0xff]
    %v1793 = vld [vmem:[%s11 + $0x60] sm:$0xff]
    %v1794 = vld [vmem:[%s11 + $0x68] sm:$0xff]
    %v1795 = vld [vmem:[%s11 + $0x70] sm:$0xff]
    %v1796 = vld [vmem:[%s11 + $0x78] sm:$0xff]
    %v1797 = vld [vmem:[%s11 + $0x80] sm:$0xff]
    %v1798 = vld [vmem:[%s11 + $0x88] sm:$0xff]
    %v1799 = vld [vmem:[%s11 + $0x90] sm:$0xff]
    %v1800 = vld [vmem:[%s11 + $0x98] sm:$0xff]
    %v1801 = vld [vmem:[%s11 + $0xa0] sm:$0xff]
    %v1802 = vld [vmem:[%s11 + $0xa8] sm:$0xff]
    %v1803 = vld [vmem:[%s11 + $0xb0] sm:$0xff]
    %v1804 = vld [vmem:[%s11 + $0xb8] sm:$0xff]
    %v1805 = vld [vmem:[%s11 + $0xc0] sm:$0xff]
    %v1806 = vld [vmem:[%s11 + $0xc8] sm:$0xff]
    %v1807 = vld [vmem:[%s11 + $0xd0] sm:$0xff]
    %v1808 = vld [vmem:[%s11 + $0xd8] sm:$0xff]
    %v1809 = vld [vmem:[%s11 + $0xe0] sm:$0xff]
    %v1810 = vld [vmem:[%s11 + $0xe8] sm:$0xff]
    %v1811 = vld [vmem:[%s11 + $0xf0] sm:$0xff]
    %v1812 = vld [vmem:[%s11 + $0xf8] sm:$0xff]
    %v1813 = vld [vmem:[%s11 + $0x100] sm:$0xff]
    %v1814 = vld [vmem:[%s11 + $0x108] sm:$0xff]
    %v1815 = vld [vmem:[%s11 + $0x110] sm:$0xff]
    %v1816 = vld [vmem:[%s11 + $0x118] sm:$0xff]
    %v1817 = vld [vmem:[%s11 + $0x120] sm:$0xff]
    %v1818 = vld [vmem:[%s11 + $0x128] sm:$0xff]
    %v1819 = vld [vmem:[%s11 + $0x130] sm:$0xff]
    %v1820 = vld [vmem:[%s11 + $0x138] sm:$0xff]
    %v1821 = vld [vmem:[%s11 + $0x140] sm:$0xff]
    %v1822 = vld [vmem:[%s11 + $0x148] sm:$0xff]
    %v1823 = vld [vmem:[%s11 + $0x150] sm:$0xff]
    %v1824 = vld [vmem:[%s11 + $0x158] sm:$0xff]
    %v1825 = vld [vmem:[%s11 + $0x160] sm:$0xff]
    %v1826 = vld [vmem:[%s11 + $0x168] sm:$0xff]
    %v1827 = vld [vmem:[%s11 + $0x170] sm:$0xff]
    %v1828 = vld [vmem:[%s11 + $0x178] sm:$0xff]
    %v1829 = vld [vmem:[%s11 + $0x180] sm:$0xff]
    %v1830 = vld [vmem:[%s11 + $0x188] sm:$0xff]
    %v1831 = vld [vmem:[%s11 + $0x190] sm:$0xff]
    %v1832 = vld [vmem:[%s11 + $0x198] sm:$0xff]
    %v1833 = vld [vmem:[%s11 + $0x1a0] sm:$0xff]
    %v1834 = vld [vmem:[%s11 + $0x1a8] sm:$0xff]
    %v1835 = vld [vmem:[%s11 + $0x1b0] sm:$0xff]
    %v1836 = vld [vmem:[%s11 + $0x1b8] sm:$0xff]
    %v1837 = vld [vmem:[%s11 + $0x1c0] sm:$0xff]
    %v1838 = vld [vmem:[%s11 + $0x1c8] sm:$0xff]
    %v1839 = vld [vmem:[%s11 + $0x1d0] sm:$0xff]
    %v1840 = vld [vmem:[%s11 + $0x1d8] sm:$0xff]
    %v1841 = vld [vmem:[%s11 + $0x1e0] sm:$0xff]
    %v1842 = vld [vmem:[%s11 + $0x1e8] sm:$0xff]
    %v1843 = vld [vmem:[%s11 + $0x1f0] sm:$0xff]
    %v1844 = vld [vmem:[%s11 + $0x1f8] sm:$0xff]
    %1845 = vmatprep.subr.mxu0 %v1812
    %1846 = vmatpush1.msra.mxu0 %v1811
    %1847 = vmatprep.subr.mxu0 %v1810
    %1848 = vmatpush1.msra.mxu0 %v1809
    %1849 = vmatprep.subr.mxu0 %v1808
    %1850 = vmatpush1.msra.mxu0 %v1807
    %1851 = vmatprep.subr.mxu0 %v1806
    %1852 = vmatpush1.msra.mxu0 %v1805
    %1853 = vmatprep.subr.mxu0 %v1804
    %1854 = vmatpush1.msra.mxu0 %v1803
    %1855 = vmatprep.subr.mxu0 %v1802
    %1856 = vmatpush1.msra.mxu0 %v1801
    %1857 = vmatprep.subr.mxu0 %v1800
    %1858 = vmatpush1.msra.mxu0 %v1799
    %1859 = vmatprep.subr.mxu0 %v1798
    %1860 = vmatpush1.msra.mxu0 %v1797
    %1861 = vmatprep.subr.mxu0 %v1796
    %1862 = vmatpush1.msra.mxu0 %v1795
    %1863 = vmatprep.subr.mxu0 %v1794
    %1864 = vmatpush1.msra.mxu0 %v1793
    %1865 = vmatprep.subr.mxu0 %v1792
    %1866 = vmatpush1.msra.mxu0 %v1791
    %1867 = vmatprep.subr.mxu0 %v1790
    %1868 = vmatpush1.msra.mxu0 %v1789
    %1869 = vmatprep.subr.mxu0 %v1788
    %1870 = vmatpush1.msra.mxu0 %v1787
    %1871 = vmatprep.subr.mxu0 %v1786
    %1872 = vmatpush1.msra.mxu0 %v1785
    %1873 = vmatprep.subr.mxu0 %v1784
    %1874 = vmatpush1.msra.mxu0 %v1783
    %1875 = vmatprep.subr.mxu0 %v1782
    %1876 = vmatpush1.msra.mxu0 %v1781
    %1877 = vmatprep.subr.mxu0 %v1844
    %1878 = vmatpush2.msra.mxu0 %v1843
    %1879 = vmatprep.subr.mxu0 %v1842
    %1880 = vmatpush2.msra.mxu0 %v1841
    %1881 = vmatprep.subr.mxu0 %v1840
    %1882 = vmatpush2.msra.mxu0 %v1839
    %1883 = vmatprep.subr.mxu0 %v1838
    %1884 = vmatpush2.msra.mxu0 %v1837
    %1885 = vmatprep.subr.mxu0 %v1836
    %1886 = vmatpush2.msra.mxu0 %v1835
    %1887 = vmatprep.subr.mxu0 %v1834
    %1888 = vmatpush2.msra.mxu0 %v1833
    %1889 = vmatprep.subr.mxu0 %v1832
    %1890 = vmatpush2.msra.mxu0 %v1831
    %1891 = vmatprep.subr.mxu0 %v1830
    %1892 = vmatpush2.msra.mxu0 %v1829
    %1893 = vmatprep.subr.mxu0 %v1828
    %1894 = vmatpush2.msra.mxu0 %v1827
    %1895 = vmatprep.subr.mxu0 %v1826
    %1896 = vmatpush2.msra.mxu0 %v1825
    %1897 = vmatprep.subr.mxu0 %v1824
    %1898 = vmatpush2.msra.mxu0 %v1823
    %1899 = vmatprep.subr.mxu0 %v1822
    %1900 = vmatpush2.msra.mxu0 %v1821
    %1901 = vmatprep.subr.mxu0 %v1820
    %1902 = vmatpush2.msra.mxu0 %v1819
    %1903 = vmatprep.subr.mxu0 %v1818
    %1904 = vmatpush2.msra.mxu0 %v1817
    %1905 = vmatprep.subr.mxu0 %v1816
    %1906 = vmatpush2.msra.mxu0 %v1815
    %1907 = vmatprep.subr.mxu0 %v1814
    %1908 = vmatpush2.msra.mxu0 %v1813
    %1909 = vmatprep.mubr.f32.mxu0 %v1597
    %1910 = vmatmul.mubr.f32.gmra.mxu0 %v1596
    %v1911 = vpop.f32.mrf.mxu0
    %v1912 = vadd.f32 0.0, %v1911
    %v1913 = vpop.f32.mrf.mxu0
    %v1914 = vadd.f32 0.0, %v1913
    %1915 = vmatprep.mubr.f32.mxu0 %v1599
    %1916 = vmatmul.mubr.f32.gmra.mxu0 %v1598
    %v1917 = vpop.f32.mrf.mxu0
    %v1918 = vadd.f32 0.0, %v1917
    %v1919 = vpop.f32.mrf.mxu0
    %v1920 = vadd.f32 0.0, %v1919
    %1921 = vdwg.mxu0
    %1922 = vmatprep.subr.mxu0 0.0
    %1923 = vmatpush1.msra.mxu0 0.0
    %1924 = vmatprep.subr.mxu0 0.0
    %1925 = vmatpush1.msra.mxu0 0.0
    %1926 = vmatprep.subr.mxu0 0.0
    %1927 = vmatpush1.msra.mxu0 0.0
    %1928 = vmatprep.subr.mxu0 0.0
    %1929 = vmatpush1.msra.mxu0 0.0
    %1930 = vmatprep.subr.mxu0 0.0
    %1931 = vmatpush1.msra.mxu0 0.0
    %1932 = vmatprep.subr.mxu0 0.0
    %1933 = vmatpush1.msra.mxu0 0.0
    %1934 = vmatprep.subr.mxu0 0.0
    %1935 = vmatpush1.msra.mxu0 0.0
    %1936 = vmatprep.subr.mxu0 0.0
    %1937 = vmatpush1.msra.mxu0 0.0
    %1938 = vmatprep.subr.mxu0 0.0
    %1939 = vmatpush1.msra.mxu0 0.0
    %1940 = vmatprep.subr.mxu0 0.0
    %1941 = vmatpush1.msra.mxu0 0.0
    %1942 = vmatprep.subr.mxu0 0.0
    %1943 = vmatpush1.msra.mxu0 0.0
    %1944 = vmatprep.subr.mxu0 0.0
    %1945 = vmatpush1.msra.mxu0 0.0
    %1946 = vmatprep.subr.mxu0 0.0
    %1947 = vmatpush1.msra.mxu0 0.0
    %1948 = vmatprep.subr.mxu0 0.0
    %1949 = vmatpush1.msra.mxu0 0.0
    %1950 = vmatprep.subr.mxu0 %v1920
    %1951 = vmatpush1.msra.mxu0 %v1918
    %1952 = vmatprep.subr.mxu0 %v1914
    %1953 = vmatpush1.msra.mxu0 %v1912
    %1954 = vmatprep.subr.mxu0 0.0
    %1955 = vmatpush2.msra.mxu0 0.0
    %1956 = vmatprep.subr.mxu0 0.0
    %1957 = vmatpush2.msra.mxu0 0.0
    %1958 = vmatprep.subr.mxu0 0.0
    %1959 = vmatpush2.msra.mxu0 0.0
    %1960 = vmatprep.subr.mxu0 0.0
    %1961 = vmatpush2.msra.mxu0 0.0
    %1962 = vmatprep.subr.mxu0 0.0
    %1963 = vmatpush2.msra.mxu0 0.0
    %1964 = vmatprep.subr.mxu0 0.0
    %1965 = vmatpush2.msra.mxu0 0.0
    %1966 = vmatprep.subr.mxu0 0.0
    %1967 = vmatpush2.msra.mxu0 0.0
    %1968 = vmatprep.subr.mxu0 0.0
    %1969 = vmatpush2.msra.mxu0 0.0
    %1970 = vmatprep.subr.mxu0 0.0
    %1971 = vmatpush2.msra.mxu0 0.0
    %1972 = vmatprep.subr.mxu0 0.0
    %1973 = vmatpush2.msra.mxu0 0.0
    %1974 = vmatprep.subr.mxu0 0.0
    %1975 = vmatpush2.msra.mxu0 0.0
    %1976 = vmatprep.subr.mxu0 0.0
    %1977 = vmatpush2.msra.mxu0 0.0
    %1978 = vmatprep.subr.mxu0 0.0
    %1979 = vmatpush2.msra.mxu0 0.0
    %1980 = vmatprep.subr.mxu0 0.0
    %1981 = vmatpush2.msra.mxu0 0.0
    %1982 = vmatprep.subr.mxu0 0.0
    %1983 = vmatpush2.msra.mxu0 0.0
    %1984 = vmatprep.subr.mxu0 0.0
    %1985 = vmatpush2.msra.mxu0 0.0
    %1986 = vmatprep.mubr.f32.mxu0 0.0
    %1987 = vmatmul.mubr.f32.gmra.mxu0 %v395
    %v1988 = vpop.f32.mrf.mxu0
    %v1989 = vadd.f32 0.0, %v1988
    %v1990 = vpop.f32.mrf.mxu0
    %v1991 = vadd.f32 0.0, %v1990
    %1992 = vmatprep.mubr.f32.mxu0 0.0
    %1993 = vmatmul.mubr.f32.gmra.mxu0 %v398
    %v1994 = vpop.f32.mrf.mxu0
    %v1995 = vadd.f32 0.0, %v1994
    %v1996 = vpop.f32.mrf.mxu0
    %v1997 = vadd.f32 0.0, %v1996
    %1998 = vdwg.mxu0
    %v1999 = vadd.f32 %v1989, %v1995
    %v2000 = vrot.slane %v1999, 4
    %v2001 = vadd.f32 %v1999, %v2000
    %v2002 = vrot.slane %v2001, 2
    %v2003 = vadd.f32 %v2001, %v2002
    %v2004 = vrot.slane %v2003, 1
    %v2005 = vadd.f32 %v2003, %v2004
    %v2006 = vadd.f32 %v1991, %v1997
    %v2007 = vrot.slane %v2006, 4
    %v2008 = vadd.f32 %v2006, %v2007
    %v2009 = vrot.slane %v2008, 2
    %v2010 = vadd.f32 %v2008, %v2009
    %v2011 = vrot.slane %v2010, 1
    %v2012 = vadd.f32 %v2010, %v2011
    %v2013 = vmul.f32 %v2005, %v491
    %v2014 = vmul.f32 %v2012, %v491
    %v2015 = vmul.f32 %v1989, %v1989
    %v2016 = vmul.f32 %v1991, %v1991
    %v2017 = vmul.f32 %v1995, %v1995
    %v2018 = vmul.f32 %v1997, %v1997
    %v2019 = vadd.f32 %v2015, %v2017
    %v2020 = vrot.slane %v2019, 4
    %v2021 = vadd.f32 %v2019, %v2020
    %v2022 = vrot.slane %v2021, 2
    %v2023 = vadd.f32 %v2021, %v2022
    %v2024 = vrot.slane %v2023, 1
    %v2025 = vadd.f32 %v2023, %v2024
    %v2026 = vadd.f32 %v2016, %v2018
    %v2027 = vrot.slane %v2026, 4
    %v2028 = vadd.f32 %v2026, %v2027
    %v2029 = vrot.slane %v2028, 2
    %v2030 = vadd.f32 %v2028, %v2029
    %v2031 = vrot.slane %v2030, 1
    %v2032 = vadd.f32 %v2030, %v2031
    %v2033 = vmul.f32 %v2025, %v491
    %v2034 = vmul.f32 %v2032, %v491
    %2035 = vmatprep.subr.mxu0 0.0
    %2036 = vmatpush1.msra.mxu0 %v105
    %2037 = vmatprep.subr.mxu0 0.0
    %2038 = vmatpush1.msra.mxu0 %v104
    %2039 = vmatprep.subr.mxu0 0.0
    %2040 = vmatpush1.msra.mxu0 %v103
    %2041 = vmatprep.subr.mxu0 0.0
    %2042 = vmatpush1.msra.mxu0 %v102
    %2043 = vmatprep.subr.mxu0 0.0
    %2044 = vmatpush1.msra.mxu0 %v101
    %2045 = vmatprep.subr.mxu0 0.0
    %2046 = vmatpush1.msra.mxu0 %v100
    %2047 = vmatprep.subr.mxu0 0.0
    %2048 = vmatpush1.msra.mxu0 %v99
    %2049 = vmatprep.subr.mxu0 0.0
    %2050 = vmatpush1.msra.mxu0 %v98
    %2051 = vmatprep.subr.mxu0 0.0
    %2052 = vmatpush1.msra.mxu0 %v97
    %2053 = vmatprep.subr.mxu0 0.0
    %2054 = vmatpush1.msra.mxu0 %v96
    %2055 = vmatprep.subr.mxu0 0.0
    %2056 = vmatpush1.msra.mxu0 %v95
    %2057 = vmatprep.subr.mxu0 0.0
    %2058 = vmatpush1.msra.mxu0 %v94
    %2059 = vmatprep.subr.mxu0 0.0
    %2060 = vmatpush1.msra.mxu0 %v93
    %2061 = vmatprep.subr.mxu0 0.0
    %2062 = vmatpush1.msra.mxu0 %v92
    %2063 = vmatprep.subr.mxu0 0.0
    %2064 = vmatpush1.msra.mxu0 %v91
    %2065 = vmatprep.subr.mxu0 0.0
    %2066 = vmatpush1.msra.mxu0 %v90
    %2067 = vmatprep.subr.mxu0 0.0
    %2068 = vmatpush2.msra.mxu0 %v121
    %2069 = vmatprep.subr.mxu0 0.0
    %2070 = vmatpush2.msra.mxu0 %v120
    %2071 = vmatprep.subr.mxu0 0.0
    %2072 = vmatpush2.msra.mxu0 %v119
    %2073 = vmatprep.subr.mxu0 0.0
    %2074 = vmatpush2.msra.mxu0 %v118
    %2075 = vmatprep.subr.mxu0 0.0
    %2076 = vmatpush2.msra.mxu0 %v117
    %2077 = vmatprep.subr.mxu0 0.0
    %2078 = vmatpush2.msra.mxu0 %v116
    %2079 = vmatprep.subr.mxu0 0.0
    %2080 = vmatpush2.msra.mxu0 %v115
    %2081 = vmatprep.subr.mxu0 0.0
    %2082 = vmatpush2.msra.mxu0 %v114
    %2083 = vmatprep.subr.mxu0 0.0
    %2084 = vmatpush2.msra.mxu0 %v113
    %2085 = vmatprep.subr.mxu0 0.0
    %2086 = vmatpush2.msra.mxu0 %v112
    %2087 = vmatprep.subr.mxu0 0.0
    %2088 = vmatpush2.msra.mxu0 %v111
    %2089 = vmatprep.subr.mxu0 0.0
    %2090 = vmatpush2.msra.mxu0 %v110
    %2091 = vmatprep.subr.mxu0 0.0
    %2092 = vmatpush2.msra.mxu0 %v109
    %2093 = vmatprep.subr.mxu0 0.0
    %2094 = vmatpush2.msra.mxu0 %v108
    %2095 = vmatprep.subr.mxu0 0.0
    %2096 = vmatpush2.msra.mxu0 %v107
    %2097 = vmatprep.subr.mxu0 0.0
    %2098 = vmatpush2.msra.mxu0 %v106
    %2099 = vmatprep.mubr.f32.mxu0 %v2014
    %2100 = vmatmul.mubr.f32.gmra.mxu0 %v2013
    %v2101 = vpop.f32.mrf.mxu0
    %v2102 = vadd.f32 0.0, %v2101
    %v2103 = vpop.f32.mrf.mxu0
    %2104 = vdwg.mxu0
    %2105 = vmatprep.subr.mxu0 0.0
    %2106 = vmatpush1.msra.mxu0 %v105
    %2107 = vmatprep.subr.mxu0 0.0
    %2108 = vmatpush1.msra.mxu0 %v104
    %2109 = vmatprep.subr.mxu0 0.0
    %2110 = vmatpush1.msra.mxu0 %v103
    %2111 = vmatprep.subr.mxu0 0.0
    %2112 = vmatpush1.msra.mxu0 %v102
    %2113 = vmatprep.subr.mxu0 0.0
    %2114 = vmatpush1.msra.mxu0 %v101
    %2115 = vmatprep.subr.mxu0 0.0
    %2116 = vmatpush1.msra.mxu0 %v100
    %2117 = vmatprep.subr.mxu0 0.0
    %2118 = vmatpush1.msra.mxu0 %v99
    %2119 = vmatprep.subr.mxu0 0.0
    %2120 = vmatpush1.msra.mxu0 %v98
    %2121 = vmatprep.subr.mxu0 0.0
    %2122 = vmatpush1.msra.mxu0 %v97
    %2123 = vmatprep.subr.mxu0 0.0
    %2124 = vmatpush1.msra.mxu0 %v96
    %2125 = vmatprep.subr.mxu0 0.0
    %2126 = vmatpush1.msra.mxu0 %v95
    %2127 = vmatprep.subr.mxu0 0.0
    %2128 = vmatpush1.msra.mxu0 %v94
    %2129 = vmatprep.subr.mxu0 0.0
    %2130 = vmatpush1.msra.mxu0 %v93
    %2131 = vmatprep.subr.mxu0 0.0
    %2132 = vmatpush1.msra.mxu0 %v92
    %2133 = vmatprep.subr.mxu0 0.0
    %2134 = vmatpush1.msra.mxu0 %v91
    %2135 = vmatprep.subr.mxu0 0.0
    %2136 = vmatpush1.msra.mxu0 %v90
    %2137 = vmatprep.subr.mxu0 0.0
    %2138 = vmatpush2.msra.mxu0 %v121
    %2139 = vmatprep.subr.mxu0 0.0
    %2140 = vmatpush2.msra.mxu0 %v120
    %2141 = vmatprep.subr.mxu0 0.0
    %2142 = vmatpush2.msra.mxu0 %v119
    %2143 = vmatprep.subr.mxu0 0.0
    %2144 = vmatpush2.msra.mxu0 %v118
    %2145 = vmatprep.subr.mxu0 0.0
    %2146 = vmatpush2.msra.mxu0 %v117
    %2147 = vmatprep.subr.mxu0 0.0
    %2148 = vmatpush2.msra.mxu0 %v116
    %2149 = vmatprep.subr.mxu0 0.0
    %2150 = vmatpush2.msra.mxu0 %v115
    %2151 = vmatprep.subr.mxu0 0.0
    %2152 = vmatpush2.msra.mxu0 %v114
    %2153 = vmatprep.subr.mxu0 0.0
    %2154 = vmatpush2.msra.mxu0 %v113
    %2155 = vmatprep.subr.mxu0 0.0
    %2156 = vmatpush2.msra.mxu0 %v112
    %2157 = vmatprep.subr.mxu0 0.0
    %2158 = vmatpush2.msra.mxu0 %v111
    %2159 = vmatprep.subr.mxu0 0.0
    %2160 = vmatpush2.msra.mxu0 %v110
    %2161 = vmatprep.subr.mxu0 0.0
    %2162 = vmatpush2.msra.mxu0 %v109
    %2163 = vmatprep.subr.mxu0 0.0
    %2164 = vmatpush2.msra.mxu0 %v108
    %2165 = vmatprep.subr.mxu0 0.0
    %2166 = vmatpush2.msra.mxu0 %v107
    %2167 = vmatprep.subr.mxu0 0.0
    %2168 = vmatpush2.msra.mxu0 %v106
    %2169 = vmatprep.mubr.f32.mxu0 %v2034
    %2170 = vmatmul.mubr.f32.gmra.mxu0 %v2033
    %v2171 = vpop.f32.mrf.mxu0
    %v2172 = vadd.f32 0.0, %v2171
    %v2173 = vpop.f32.mrf.mxu0
    %2174 = vdwg.mxu0
    %v2175 = vmul.f32 %v2102, %v2102
    %v2176 = vsub.f32 %v2172, %v2175
    %v2177 = vld [vmem:[%s12] sm:$0x1]
    %v2178 = vadd.f32 %v2176, 1e-05
    %v2179 = vrsqrt.pop %v2178
    %v2180 = vmul.f32 %v2177, %v2179
    %v2181 = vld [vmem:[%s13] sm:$0x1]
    %v2182 = vmul.f32 %v2180, %v2102
    %v2183 = vsub.f32 %v2181, %v2182
    %v2185 = vsel %vm663, %v2180, 0
    %2187 = vmatprep.subr.mxu0 0.0
    %2188 = vmatpush1.msra.mxu0 0.0
    %2189 = vmatprep.subr.mxu0 0.0
    %2190 = vmatpush1.msra.mxu0 0.0
    %2191 = vmatprep.subr.mxu0 0.0
    %2192 = vmatpush1.msra.mxu0 0.0
    %2193 = vmatprep.subr.mxu0 0.0
    %2194 = vmatpush1.msra.mxu0 0.0
    %2195 = vmatprep.subr.mxu0 0.0
    %2196 = vmatpush1.msra.mxu0 0.0
    %2197 = vmatprep.subr.mxu0 0.0
    %2198 = vmatpush1.msra.mxu0 0.0
    %2199 = vmatprep.subr.mxu0 0.0
    %2200 = vmatpush1.msra.mxu0 0.0
    %2201 = vmatprep.subr.mxu0 0.0
    %2202 = vmatpush1.msra.mxu0 0.0
    %2203 = vmatprep.subr.mxu0 0.0
    %2204 = vmatpush1.msra.mxu0 0.0
    %2205 = vmatprep.subr.mxu0 0.0
    %2206 = vmatpush1.msra.mxu0 0.0
    %2207 = vmatprep.subr.mxu0 0.0
    %2208 = vmatpush1.msra.mxu0 0.0
    %2209 = vmatprep.subr.mxu0 0.0
    %2210 = vmatpush1.msra.mxu0 0.0
    %2211 = vmatprep.subr.mxu0 %v129
    %2212 = vmatpush1.msra.mxu0 %v128
    %2213 = vmatprep.subr.mxu0 %v127
    %2214 = vmatpush1.msra.mxu0 %v126
    %2215 = vmatprep.subr.mxu0 %v125
    %2216 = vmatpush1.msra.mxu0 %v124
    %2217 = vmatprep.subr.mxu0 %v123
    %2218 = vmatpush1.msra.mxu0 %v122
    %2219 = vmatprep.subr.mxu0 0.0
    %2220 = vmatpush2.msra.mxu0 0.0
    %2221 = vmatprep.subr.mxu0 0.0
    %2222 = vmatpush2.msra.mxu0 0.0
    %2223 = vmatprep.subr.mxu0 0.0
    %2224 = vmatpush2.msra.mxu0 0.0
    %2225 = vmatprep.subr.mxu0 0.0
    %2226 = vmatpush2.msra.mxu0 0.0
    %2227 = vmatprep.subr.mxu0 0.0
    %2228 = vmatpush2.msra.mxu0 0.0
    %2229 = vmatprep.subr.mxu0 0.0
    %2230 = vmatpush2.msra.mxu0 0.0
    %2231 = vmatprep.subr.mxu0 0.0
    %2232 = vmatpush2.msra.mxu0 0.0
    %2233 = vmatprep.subr.mxu0 0.0
    %2234 = vmatpush2.msra.mxu0 0.0
    %2235 = vmatprep.subr.mxu0 0.0
    %2236 = vmatpush2.msra.mxu0 0.0
    %2237 = vmatprep.subr.mxu0 0.0
    %2238 = vmatpush2.msra.mxu0 0.0
    %2239 = vmatprep.subr.mxu0 0.0
    %2240 = vmatpush2.msra.mxu0 0.0
    %2241 = vmatprep.subr.mxu0 0.0
    %2242 = vmatpush2.msra.mxu0 0.0
    %2243 = vmatprep.subr.mxu0 0.0
    %2244 = vmatpush2.msra.mxu0 0.0
    %2245 = vmatprep.subr.mxu0 0.0
    %2246 = vmatpush2.msra.mxu0 0.0
    %2247 = vmatprep.subr.mxu0 0.0
    %2248 = vmatpush2.msra.mxu0 0.0
    %2249 = vmatprep.subr.mxu0 0.0
    %2250 = vmatpush2.msra.mxu0 0.0
    %2251 = vmatprep.mubr.f32.mxu0 0.0
    %2252 = vmatmul.mubr.f32.gmra.mxu0 %v2185
    %v2253 = vpop.f32.mrf.mxu0
    %v2254 = vadd.f32 0.0, %v2253
    %v2255 = vpop.f32.mrf.mxu0
    %v2256 = vadd.f32 0.0, %v2255
    %2257 = vdwg.mxu0
    %v2259 = vsel %vm663, %v2183, 0
    %2261 = vmatprep.subr.mxu0 0.0
    %2262 = vmatpush1.msra.mxu0 0.0
    %2263 = vmatprep.subr.mxu0 0.0
    %2264 = vmatpush1.msra.mxu0 0.0
    %2265 = vmatprep.subr.mxu0 0.0
    %2266 = vmatpush1.msra.mxu0 0.0
    %2267 = vmatprep.subr.mxu0 0.0
    %2268 = vmatpush1.msra.mxu0 0.0
    %2269 = vmatprep.subr.mxu0 0.0
    %2270 = vmatpush1.msra.mxu0 0.0
    %2271 = vmatprep.subr.mxu0 0.0
    %2272 = vmatpush1.msra.mxu0 0.0
    %2273 = vmatprep.subr.mxu0 0.0
    %2274 = vmatpush1.msra.mxu0 0.0
    %2275 = vmatprep.subr.mxu0 0.0
    %2276 = vmatpush1.msra.mxu0 0.0
    %2277 = vmatprep.subr.mxu0 0.0
    %2278 = vmatpush1.msra.mxu0 0.0
    %2279 = vmatprep.subr.mxu0 0.0
    %2280 = vmatpush1.msra.mxu0 0.0
    %2281 = vmatprep.subr.mxu0 0.0
    %2282 = vmatpush1.msra.mxu0 0.0
    %2283 = vmatprep.subr.mxu0 0.0
    %2284 = vmatpush1.msra.mxu0 0.0
    %2285 = vmatprep.subr.mxu0 %v129
    %2286 = vmatpush1.msra.mxu0 %v128
    %2287 = vmatprep.subr.mxu0 %v127
    %2288 = vmatpush1.msra.mxu0 %v126
    %2289 = vmatprep.subr.mxu0 %v125
    %2290 = vmatpush1.msra.mxu0 %v124
    %2291 = vmatprep.subr.mxu0 %v123
    %2292 = vmatpush1.msra.mxu0 %v122
    %2293 = vmatprep.subr.mxu0 0.0
    %2294 = vmatpush2.msra.mxu0 0.0
    %2295 = vmatprep.subr.mxu0 0.0
    %2296 = vmatpush2.msra.mxu0 0.0
    %2297 = vmatprep.subr.mxu0 0.0
    %2298 = vmatpush2.msra.mxu0 0.0
    %2299 = vmatprep.subr.mxu0 0.0
    %2300 = vmatpush2.msra.mxu0 0.0
    %2301 = vmatprep.subr.mxu0 0.0
    %2302 = vmatpush2.msra.mxu0 0.0
    %2303 = vmatprep.subr.mxu0 0.0
    %2304 = vmatpush2.msra.mxu0 0.0
    %2305 = vmatprep.subr.mxu0 0.0
    %2306 = vmatpush2.msra.mxu0 0.0
    %2307 = vmatprep.subr.mxu0 0.0
    %2308 = vmatpush2.msra.mxu0 0.0
    %2309 = vmatprep.subr.mxu0 0.0
    %2310 = vmatpush2.msra.mxu0 0.0
    %2311 = vmatprep.subr.mxu0 0.0
    %2312 = vmatpush2.msra.mxu0 0.0
    %2313 = vmatprep.subr.mxu0 0.0
    %2314 = vmatpush2.msra.mxu0 0.0
    %2315 = vmatprep.subr.mxu0 0.0
    %2316 = vmatpush2.msra.mxu0 0.0
    %2317 = vmatprep.subr.mxu0 0.0
    %2318 = vmatpush2.msra.mxu0 0.0
    %2319 = vmatprep.subr.mxu0 0.0
    %2320 = vmatpush2.msra.mxu0 0.0
    %2321 = vmatprep.subr.mxu0 0.0
    %2322 = vmatpush2.msra.mxu0 0.0
    %2323 = vmatprep.subr.mxu0 0.0
    %2324 = vmatpush2.msra.mxu0 0.0
    %2325 = vmatprep.mubr.f32.mxu0 0.0
    %2326 = vmatmul.mubr.f32.gmra.mxu0 %v2259
    %v2327 = vpop.f32.mrf.mxu0
    %v2328 = vadd.f32 0.0, %v2327
    %v2329 = vpop.f32.mrf.mxu0
    %v2330 = vadd.f32 0.0, %v2329
    %2331 = vdwg.mxu0
    %v2332 = vlaneseq
    %v2333 = vshrl.u32 %v2332, 7
    %v2334 = vsub.s32 0, %v2333
    %v2335 = vrot.slane %v2254, %v2334
    %v2336 = vlaneseq
    %v2337 = vshrl.u32 %v2336, 7
    %v2338 = vsub.s32 0, %v2337
    %v2339 = vrot.slane %v2256, %v2338
    %v2340 = vmul.f32 %v1989, %v2335
    %v2341 = vmul.f32 %v1991, %v2339
    %v2342 = vmul.f32 %v1995, %v2335
    %v2343 = vmul.f32 %v1997, %v2339
    %v2344 = vlaneseq
    %v2345 = vshrl.u32 %v2344, 7
    %v2346 = vsub.s32 0, %v2345
    %v2347 = vrot.slane %v2328, %v2346
    %v2348 = vlaneseq
    %v2349 = vshrl.u32 %v2348, 7
    %v2350 = vsub.s32 0, %v2349
    %v2351 = vrot.slane %v2330, %v2350
    %v2352 = vadd.f32 %v2340, %v2347
    %v2353 = vadd.f32 %v2341, %v2351
    %v2354 = vadd.f32 %v2342, %v2347
    %v2355 = vadd.f32 %v2343, %v2351
    %v2356 = vmax.f32 %v2352, 0.0
    %v2357 = vmax.f32 %v2353, 0.0
    %v2358 = vmax.f32 %v2354, 0.0
    %v2359 = vmax.f32 %v2355, 0.0
    %2360 = vmatprep.subr.mxu0 0.0
    %2361 = vmatpush1.msra.mxu0 0.0
    %2362 = vmatprep.subr.mxu0 0.0
    %2363 = vmatpush1.msra.mxu0 0.0
    %2364 = vmatprep.subr.mxu0 0.0
    %2365 = vmatpush1.msra.mxu0 0.0
    %2366 = vmatprep.subr.mxu0 0.0
    %2367 = vmatpush1.msra.mxu0 0.0
    %2368 = vmatprep.subr.mxu0 0.0
    %2369 = vmatpush1.msra.mxu0 0.0
    %2370 = vmatprep.subr.mxu0 0.0
    %2371 = vmatpush1.msra.mxu0 0.0
    %2372 = vmatprep.subr.mxu0 0.0
    %2373 = vmatpush1.msra.mxu0 0.0
    %2374 = vmatprep.subr.mxu0 0.0
    %2375 = vmatpush1.msra.mxu0 0.0
    %2376 = vmatprep.subr.mxu0 0.0
    %2377 = vmatpush1.msra.mxu0 0.0
    %2378 = vmatprep.subr.mxu0 0.0
    %2379 = vmatpush1.msra.mxu0 0.0
    %2380 = vmatprep.subr.mxu0 0.0
    %2381 = vmatpush1.msra.mxu0 0.0
    %2382 = vmatprep.subr.mxu0 0.0
    %2383 = vmatpush1.msra.mxu0 0.0
    %2384 = vmatprep.subr.mxu0 0.0
    %2385 = vmatpush1.msra.mxu0 0.0
    %2386 = vmatprep.subr.mxu0 0.0
    %2387 = vmatpush1.msra.mxu0 0.0
    %2388 = vmatprep.subr.mxu0 %v2359
    %2389 = vmatpush1.msra.mxu0 %v2358
    %2390 = vmatprep.subr.mxu0 %v2357
    %2391 = vmatpush1.msra.mxu0 %v2356
    %2392 = vmatprep.subr.mxu0 0.0
    %2393 = vmatpush2.msra.mxu0 0.0
    %2394 = vmatprep.subr.mxu0 0.0
    %2395 = vmatpush2.msra.mxu0 0.0
    %2396 = vmatprep.subr.mxu0 0.0
    %2397 = vmatpush2.msra.mxu0 0.0
    %2398 = vmatprep.subr.mxu0 0.0
    %2399 = vmatpush2.msra.mxu0 0.0
    %2400 = vmatprep.subr.mxu0 0.0
    %2401 = vmatpush2.msra.mxu0 0.0
    %2402 = vmatprep.subr.mxu0 0.0
    %2403 = vmatpush2.msra.mxu0 0.0
    %2404 = vmatprep.subr.mxu0 0.0
    %2405 = vmatpush2.msra.mxu0 0.0
    %2406 = vmatprep.subr.mxu0 0.0
    %2407 = vmatpush2.msra.mxu0 0.0
    %2408 = vmatprep.subr.mxu0 0.0
    %2409 = vmatpush2.msra.mxu0 0.0
    %2410 = vmatprep.subr.mxu0 0.0
    %2411 = vmatpush2.msra.mxu0 0.0
    %2412 = vmatprep.subr.mxu0 0.0
    %2413 = vmatpush2.msra.mxu0 0.0
    %2414 = vmatprep.subr.mxu0 0.0
    %2415 = vmatpush2.msra.mxu0 0.0
    %2416 = vmatprep.subr.mxu0 0.0
    %2417 = vmatpush2.msra.mxu0 0.0
    %2418 = vmatprep.subr.mxu0 0.0
    %2419 = vmatpush2.msra.mxu0 0.0
    %2420 = vmatprep.subr.mxu0 0.0
    %2421 = vmatpush2.msra.mxu0 0.0
    %2422 = vmatprep.subr.mxu0 0.0
    %2423 = vmatpush2.msra.mxu0 0.0
    %2424 = vmatprep.mubr.f32.mxu0 0.0
    %2425 = vmatmul.mubr.f32.gmra.mxu0 %v134
    %v2426 = vpop.f32.mrf.mxu0
    %v2427 = vadd.f32 0.0, %v2426
    %v2428 = vpop.f32.mrf.mxu0
    %v2429 = vadd.f32 0.0, %v2428
    %2430 = vdwg.mxu0
    %v2431 = vld [vmem:[%s23] sm:$0xff]
    %v2432 = vld [vmem:[%s23 + $0x8] sm:$0xff]
    %v2433 = vld [vmem:[%s23 + $0x10] sm:$0xff]
    %v2434 = vld [vmem:[%s23 + $0x18] sm:$0xff]
    %v2435 = vld [vmem:[%s23 + $0x20] sm:$0xff]
    %v2436 = vld [vmem:[%s23 + $0x28] sm:$0xff]
    %v2437 = vld [vmem:[%s23 + $0x30] sm:$0xff]
    %v2438 = vld [vmem:[%s23 + $0x38] sm:$0xff]
    %v2439 = vld [vmem:[%s23 + $0x40] sm:$0xff]
    %v2440 = vld [vmem:[%s23 + $0x48] sm:$0xff]
    %v2441 = vld [vmem:[%s23 + $0x50] sm:$0xff]
    %v2442 = vld [vmem:[%s23 + $0x58] sm:$0xff]
    %v2443 = vld [vmem:[%s23 + $0x60] sm:$0xff]
    %v2444 = vld [vmem:[%s23 + $0x68] sm:$0xff]
    %v2445 = vld [vmem:[%s23 + $0x70] sm:$0xff]
    %v2446 = vld [vmem:[%s23 + $0x78] sm:$0xff]
    %v2447 = vld [vmem:[%s23 + $0x80] sm:$0xff]
    %v2448 = vld [vmem:[%s23 + $0x88] sm:$0xff]
    %v2449 = vld [vmem:[%s23 + $0x90] sm:$0xff]
    %v2450 = vld [vmem:[%s23 + $0x98] sm:$0xff]
    %v2451 = vld [vmem:[%s23 + $0xa0] sm:$0xff]
    %v2452 = vld [vmem:[%s23 + $0xa8] sm:$0xff]
    %v2453 = vld [vmem:[%s23 + $0xb0] sm:$0xff]
    %v2454 = vld [vmem:[%s23 + $0xb8] sm:$0xff]
    %v2455 = vld [vmem:[%s23 + $0xc0] sm:$0xff]
    %v2456 = vld [vmem:[%s23 + $0xc8] sm:$0xff]
    %v2457 = vld [vmem:[%s23 + $0xd0] sm:$0xff]
    %v2458 = vld [vmem:[%s23 + $0xd8] sm:$0xff]
    %v2459 = vld [vmem:[%s23 + $0xe0] sm:$0xff]
    %v2460 = vld [vmem:[%s23 + $0xe8] sm:$0xff]
    %v2461 = vld [vmem:[%s23 + $0xf0] sm:$0xff]
    %v2462 = vld [vmem:[%s23 + $0xf8] sm:$0xff]
    %v2463 = vld [vmem:[%s24] sm:$0x1]
    %v2465 = vlaneseq
    %v2466 = vshrl.u32 %v2465, 7
    %v2467 = vsub.s32 0, %v2466
    %v2468 = vrot.slane %v2463, %v2467
    %2470 = vmatprep.subr.mxu0 0.0
    %2471 = vmatpush1.msra.mxu0 %v2446
    %2472 = vmatprep.subr.mxu0 0.0
    %2473 = vmatpush1.msra.mxu0 %v2445
    %2474 = vmatprep.subr.mxu0 0.0
    %2475 = vmatpush1.msra.mxu0 %v2444
    %2476 = vmatprep.subr.mxu0 0.0
    %2477 = vmatpush1.msra.mxu0 %v2443
    %2478 = vmatprep.subr.mxu0 0.0
    %2479 = vmatpush1.msra.mxu0 %v2442
    %2480 = vmatprep.subr.mxu0 0.0
    %2481 = vmatpush1.msra.mxu0 %v2441
    %2482 = vmatprep.subr.mxu0 0.0
    %2483 = vmatpush1.msra.mxu0 %v2440
    %2484 = vmatprep.subr.mxu0 0.0
    %2485 = vmatpush1.msra.mxu0 %v2439
    %2486 = vmatprep.subr.mxu0 0.0
    %2487 = vmatpush1.msra.mxu0 %v2438
    %2488 = vmatprep.subr.mxu0 0.0
    %2489 = vmatpush1.msra.mxu0 %v2437
    %2490 = vmatprep.subr.mxu0 0.0
    %2491 = vmatpush1.msra.mxu0 %v2436
    %2492 = vmatprep.subr.mxu0 0.0
    %2493 = vmatpush1.msra.mxu0 %v2435
    %2494 = vmatprep.subr.mxu0 0.0
    %2495 = vmatpush1.msra.mxu0 %v2434
    %2496 = vmatprep.subr.mxu0 0.0
    %2497 = vmatpush1.msra.mxu0 %v2433
    %2498 = vmatprep.subr.mxu0 0.0
    %2499 = vmatpush1.msra.mxu0 %v2432
    %2500 = vmatprep.subr.mxu0 0.0
    %2501 = vmatpush1.msra.mxu0 %v2431
    %2502 = vmatprep.subr.mxu0 0.0
    %2503 = vmatpush2.msra.mxu0 %v2462
    %2504 = vmatprep.subr.mxu0 0.0
    %2505 = vmatpush2.msra.mxu0 %v2461
    %2506 = vmatprep.subr.mxu0 0.0
    %2507 = vmatpush2.msra.mxu0 %v2460
    %2508 = vmatprep.subr.mxu0 0.0
    %2509 = vmatpush2.msra.mxu0 %v2459
    %2510 = vmatprep.subr.mxu0 0.0
    %2511 = vmatpush2.msra.mxu0 %v2458
    %2512 = vmatprep.subr.mxu0 0.0
    %2513 = vmatpush2.msra.mxu0 %v2457
    %2514 = vmatprep.subr.mxu0 0.0
    %2515 = vmatpush2.msra.mxu0 %v2456
    %2516 = vmatprep.subr.mxu0 0.0
    %2517 = vmatpush2.msra.mxu0 %v2455
    %2518 = vmatprep.subr.mxu0 0.0
    %2519 = vmatpush2.msra.mxu0 %v2454
    %2520 = vmatprep.subr.mxu0 0.0
    %2521 = vmatpush2.msra.mxu0 %v2453
    %2522 = vmatprep.subr.mxu0 0.0
    %2523 = vmatpush2.msra.mxu0 %v2452
    %2524 = vmatprep.subr.mxu0 0.0
    %2525 = vmatpush2.msra.mxu0 %v2451
    %2526 = vmatprep.subr.mxu0 0.0
    %2527 = vmatpush2.msra.mxu0 %v2450
    %2528 = vmatprep.subr.mxu0 0.0
    %2529 = vmatpush2.msra.mxu0 %v2449
    %2530 = vmatprep.subr.mxu0 0.0
    %2531 = vmatpush2.msra.mxu0 %v2448
    %2532 = vmatprep.subr.mxu0 0.0
    %2533 = vmatpush2.msra.mxu0 %v2447
    %2534 = vmatprep.mubr.f32.mxu0 %v2429
    %2535 = vmatmul.mubr.f32.gmra.mxu0 %v2427
    %v2536 = vpop.f32.mrf.mxu0
    %v2537 = vadd.f32 %v2468, %v2536
    %v2538 = vpop.f32.mrf.mxu0
    %2539 = vdwg.mxu0
    %v2540 = vadd.f32 %v1780, %v2537
    %v2541 = vld [vmem:[%s14] sm:$0xff]
    %v2542 = vld [vmem:[%s14 + $0x8] sm:$0xff]
    %v2543 = vld [vmem:[%s14 + $0x10] sm:$0xff]
    %v2544 = vld [vmem:[%s14 + $0x18] sm:$0xff]
    %v2545 = vld [vmem:[%s14 + $0x20] sm:$0xff]
    %v2546 = vld [vmem:[%s14 + $0x28] sm:$0xff]
    %v2547 = vld [vmem:[%s14 + $0x30] sm:$0xff]
    %v2548 = vld [vmem:[%s14 + $0x38] sm:$0xff]
    %v2549 = vld [vmem:[%s14 + $0x40] sm:$0xff]
    %v2550 = vld [vmem:[%s14 + $0x48] sm:$0xff]
    %v2551 = vld [vmem:[%s14 + $0x50] sm:$0xff]
    %v2552 = vld [vmem:[%s14 + $0x58] sm:$0xff]
    %v2553 = vld [vmem:[%s14 + $0x60] sm:$0xff]
    %v2554 = vld [vmem:[%s14 + $0x68] sm:$0xff]
    %v2555 = vld [vmem:[%s14 + $0x70] sm:$0xff]
    %v2556 = vld [vmem:[%s14 + $0x78] sm:$0xff]
    %v2557 = vld [vmem:[%s14 + $0x80] sm:$0xff]
    %v2558 = vld [vmem:[%s14 + $0x88] sm:$0xff]
    %v2559 = vld [vmem:[%s14 + $0x90] sm:$0xff]
    %v2560 = vld [vmem:[%s14 + $0x98] sm:$0xff]
    %v2561 = vld [vmem:[%s14 + $0xa0] sm:$0xff]
    %v2562 = vld [vmem:[%s14 + $0xa8] sm:$0xff]
    %v2563 = vld [vmem:[%s14 + $0xb0] sm:$0xff]
    %v2564 = vld [vmem:[%s14 + $0xb8] sm:$0xff]
    %v2565 = vld [vmem:[%s14 + $0xc0] sm:$0xff]
    %v2566 = vld [vmem:[%s14 + $0xc8] sm:$0xff]
    %v2567 = vld [vmem:[%s14 + $0xd0] sm:$0xff]
    %v2568 = vld [vmem:[%s14 + $0xd8] sm:$0xff]
    %v2569 = vld [vmem:[%s14 + $0xe0] sm:$0xff]
    %v2570 = vld [vmem:[%s14 + $0xe8] sm:$0xff]
    %v2571 = vld [vmem:[%s14 + $0xf0] sm:$0xff]
    %v2572 = vld [vmem:[%s14 + $0xf8] sm:$0xff]
    %v2573 = vld [vmem:[%s14 + $0x100] sm:$0xff]
    %v2574 = vld [vmem:[%s14 + $0x108] sm:$0xff]
    %v2575 = vld [vmem:[%s14 + $0x110] sm:$0xff]
    %v2576 = vld [vmem:[%s14 + $0x118] sm:$0xff]
    %v2577 = vld [vmem:[%s14 + $0x120] sm:$0xff]
    %v2578 = vld [vmem:[%s14 + $0x128] sm:$0xff]
    %v2579 = vld [vmem:[%s14 + $0x130] sm:$0xff]
    %v2580 = vld [vmem:[%s14 + $0x138] sm:$0xff]
    %v2581 = vld [vmem:[%s14 + $0x140] sm:$0xff]
    %v2582 = vld [vmem:[%s14 + $0x148] sm:$0xff]
    %v2583 = vld [vmem:[%s14 + $0x150] sm:$0xff]
    %v2584 = vld [vmem:[%s14 + $0x158] sm:$0xff]
    %v2585 = vld [vmem:[%s14 + $0x160] sm:$0xff]
    %v2586 = vld [vmem:[%s14 + $0x168] sm:$0xff]
    %v2587 = vld [vmem:[%s14 + $0x170] sm:$0xff]
    %v2588 = vld [vmem:[%s14 + $0x178] sm:$0xff]
    %v2589 = vld [vmem:[%s14 + $0x180] sm:$0xff]
    %v2590 = vld [vmem:[%s14 + $0x188] sm:$0xff]
    %v2591 = vld [vmem:[%s14 + $0x190] sm:$0xff]
    %v2592 = vld [vmem:[%s14 + $0x198] sm:$0xff]
    %v2593 = vld [vmem:[%s14 + $0x1a0] sm:$0xff]
    %v2594 = vld [vmem:[%s14 + $0x1a8] sm:$0xff]
    %v2595 = vld [vmem:[%s14 + $0x1b0] sm:$0xff]
    %v2596 = vld [vmem:[%s14 + $0x1b8] sm:$0xff]
    %v2597 = vld [vmem:[%s14 + $0x1c0] sm:$0xff]
    %v2598 = vld [vmem:[%s14 + $0x1c8] sm:$0xff]
    %v2599 = vld [vmem:[%s14 + $0x1d0] sm:$0xff]
    %v2600 = vld [vmem:[%s14 + $0x1d8] sm:$0xff]
    %v2601 = vld [vmem:[%s14 + $0x1e0] sm:$0xff]
    %v2602 = vld [vmem:[%s14 + $0x1e8] sm:$0xff]
    %v2603 = vld [vmem:[%s14 + $0x1f0] sm:$0xff]
    %v2604 = vld [vmem:[%s14 + $0x1f8] sm:$0xff]
    %2605 = vmatprep.subr.mxu0 %v2572
    %2606 = vmatpush1.msra.mxu0 %v2571
    %2607 = vmatprep.subr.mxu0 %v2570
    %2608 = vmatpush1.msra.mxu0 %v2569
    %2609 = vmatprep.subr.mxu0 %v2568
    %2610 = vmatpush1.msra.mxu0 %v2567
    %2611 = vmatprep.subr.mxu0 %v2566
    %2612 = vmatpush1.msra.mxu0 %v2565
    %2613 = vmatprep.subr.mxu0 %v2564
    %2614 = vmatpush1.msra.mxu0 %v2563
    %2615 = vmatprep.subr.mxu0 %v2562
    %2616 = vmatpush1.msra.mxu0 %v2561
    %2617 = vmatprep.subr.mxu0 %v2560
    %2618 = vmatpush1.msra.mxu0 %v2559
    %2619 = vmatprep.subr.mxu0 %v2558
    %2620 = vmatpush1.msra.mxu0 %v2557
    %2621 = vmatprep.subr.mxu0 %v2556
    %2622 = vmatpush1.msra.mxu0 %v2555
    %2623 = vmatprep.subr.mxu0 %v2554
    %2624 = vmatpush1.msra.mxu0 %v2553
    %2625 = vmatprep.subr.mxu0 %v2552
    %2626 = vmatpush1.msra.mxu0 %v2551
    %2627 = vmatprep.subr.mxu0 %v2550
    %2628 = vmatpush1.msra.mxu0 %v2549
    %2629 = vmatprep.subr.mxu0 %v2548
    %2630 = vmatpush1.msra.mxu0 %v2547
    %2631 = vmatprep.subr.mxu0 %v2546
    %2632 = vmatpush1.msra.mxu0 %v2545
    %2633 = vmatprep.subr.mxu0 %v2544
    %2634 = vmatpush1.msra.mxu0 %v2543
    %2635 = vmatprep.subr.mxu0 %v2542
    %2636 = vmatpush1.msra.mxu0 %v2541
    %2637 = vmatprep.subr.mxu0 %v2604
    %2638 = vmatpush2.msra.mxu0 %v2603
    %2639 = vmatprep.subr.mxu0 %v2602
    %2640 = vmatpush2.msra.mxu0 %v2601
    %2641 = vmatprep.subr.mxu0 %v2600
    %2642 = vmatpush2.msra.mxu0 %v2599
    %2643 = vmatprep.subr.mxu0 %v2598
    %2644 = vmatpush2.msra.mxu0 %v2597
    %2645 = vmatprep.subr.mxu0 %v2596
    %2646 = vmatpush2.msra.mxu0 %v2595
    %2647 = vmatprep.subr.mxu0 %v2594
    %2648 = vmatpush2.msra.mxu0 %v2593
    %2649 = vmatprep.subr.mxu0 %v2592
    %2650 = vmatpush2.msra.mxu0 %v2591
    %2651 = vmatprep.subr.mxu0 %v2590
    %2652 = vmatpush2.msra.mxu0 %v2589
    %2653 = vmatprep.subr.mxu0 %v2588
    %2654 = vmatpush2.msra.mxu0 %v2587
    %2655 = vmatprep.subr.mxu0 %v2586
    %2656 = vmatpush2.msra.mxu0 %v2585
    %2657 = vmatprep.subr.mxu0 %v2584
    %2658 = vmatpush2.msra.mxu0 %v2583
    %2659 = vmatprep.subr.mxu0 %v2582
    %2660 = vmatpush2.msra.mxu0 %v2581
    %2661 = vmatprep.subr.mxu0 %v2580
    %2662 = vmatpush2.msra.mxu0 %v2579
    %2663 = vmatprep.subr.mxu0 %v2578
    %2664 = vmatpush2.msra.mxu0 %v2577
    %2665 = vmatprep.subr.mxu0 %v2576
    %2666 = vmatpush2.msra.mxu0 %v2575
    %2667 = vmatprep.subr.mxu0 %v2574
    %2668 = vmatpush2.msra.mxu0 %v2573
    %2669 = vmatprep.mubr.f32.mxu0 %v2357
    %2670 = vmatmul.mubr.f32.gmra.mxu0 %v2356
    %v2671 = vpop.f32.mrf.mxu0
    %v2672 = vadd.f32 0.0, %v2671
    %v2673 = vpop.f32.mrf.mxu0
    %v2674 = vadd.f32 0.0, %v2673
    %2675 = vmatprep.mubr.f32.mxu0 %v2359
    %2676 = vmatmul.mubr.f32.gmra.mxu0 %v2358
    %v2677 = vpop.f32.mrf.mxu0
    %v2678 = vadd.f32 0.0, %v2677
    %v2679 = vpop.f32.mrf.mxu0
    %v2680 = vadd.f32 0.0, %v2679
    %2681 = vdwg.mxu0
    %2682 = vmatprep.subr.mxu0 0.0
    %2683 = vmatpush1.msra.mxu0 0.0
    %2684 = vmatprep.subr.mxu0 0.0
    %2685 = vmatpush1.msra.mxu0 0.0
    %2686 = vmatprep.subr.mxu0 0.0
    %2687 = vmatpush1.msra.mxu0 0.0
    %2688 = vmatprep.subr.mxu0 0.0
    %2689 = vmatpush1.msra.mxu0 0.0
    %2690 = vmatprep.subr.mxu0 0.0
    %2691 = vmatpush1.msra.mxu0 0.0
    %2692 = vmatprep.subr.mxu0 0.0
    %2693 = vmatpush1.msra.mxu0 0.0
    %2694 = vmatprep.subr.mxu0 0.0
    %2695 = vmatpush1.msra.mxu0 0.0
    %2696 = vmatprep.subr.mxu0 0.0
    %2697 = vmatpush1.msra.mxu0 0.0
    %2698 = vmatprep.subr.mxu0 0.0
    %2699 = vmatpush1.msra.mxu0 0.0
    %2700 = vmatprep.subr.mxu0 0.0
    %2701 = vmatpush1.msra.mxu0 0.0
    %2702 = vmatprep.subr.mxu0 0.0
    %2703 = vmatpush1.msra.mxu0 0.0
    %2704 = vmatprep.subr.mxu0 0.0
    %2705 = vmatpush1.msra.mxu0 0.0
    %2706 = vmatprep.subr.mxu0 0.0
    %2707 = vmatpush1.msra.mxu0 0.0
    %2708 = vmatprep.subr.mxu0 0.0
    %2709 = vmatpush1.msra.mxu0 0.0
    %2710 = vmatprep.subr.mxu0 %v2680
    %2711 = vmatpush1.msra.mxu0 %v2678
    %2712 = vmatprep.subr.mxu0 %v2674
    %2713 = vmatpush1.msra.mxu0 %v2672
    %2714 = vmatprep.subr.mxu0 0.0
    %2715 = vmatpush2.msra.mxu0 0.0
    %2716 = vmatprep.subr.mxu0 0.0
    %2717 = vmatpush2.msra.mxu0 0.0
    %2718 = vmatprep.subr.mxu0 0.0
    %2719 = vmatpush2.msra.mxu0 0.0
    %2720 = vmatprep.subr.mxu0 0.0
    %2721 = vmatpush2.msra.mxu0 0.0
    %2722 = vmatprep.subr.mxu0 0.0
    %2723 = vmatpush2.msra.mxu0 0.0
    %2724 = vmatprep.subr.mxu0 0.0
    %2725 = vmatpush2.msra.mxu0 0.0
    %2726 = vmatprep.subr.mxu0 0.0
    %2727 = vmatpush2.msra.mxu0 0.0
    %2728 = vmatprep.subr.mxu0 0.0
    %2729 = vmatpush2.msra.mxu0 0.0
    %2730 = vmatprep.subr.mxu0 0.0
    %2731 = vmatpush2.msra.mxu0 0.0
    %2732 = vmatprep.subr.mxu0 0.0
    %2733 = vmatpush2.msra.mxu0 0.0
    %2734 = vmatprep.subr.mxu0 0.0
    %2735 = vmatpush2.msra.mxu0 0.0
    %2736 = vmatprep.subr.mxu0 0.0
    %2737 = vmatpush2.msra.mxu0 0.0
    %2738 = vmatprep.subr.mxu0 0.0
    %2739 = vmatpush2.msra.mxu0 0.0
    %2740 = vmatprep.subr.mxu0 0.0
    %2741 = vmatpush2.msra.mxu0 0.0
    %2742 = vmatprep.subr.mxu0 0.0
    %2743 = vmatpush2.msra.mxu0 0.0
    %2744 = vmatprep.subr.mxu0 0.0
    %2745 = vmatpush2.msra.mxu0 0.0
    %2746 = vmatprep.mubr.f32.mxu0 0.0
    %2747 = vmatmul.mubr.f32.gmra.mxu0 %v395
    %v2748 = vpop.f32.mrf.mxu0
    %v2749 = vadd.f32 0.0, %v2748
    %v2750 = vpop.f32.mrf.mxu0
    %v2751 = vadd.f32 0.0, %v2750
    %2752 = vmatprep.mubr.f32.mxu0 0.0
    %2753 = vmatmul.mubr.f32.gmra.mxu0 %v398
    %v2754 = vpop.f32.mrf.mxu0
    %v2755 = vadd.f32 0.0, %v2754
    %v2756 = vpop.f32.mrf.mxu0
    %v2757 = vadd.f32 0.0, %v2756
    %2758 = vdwg.mxu0
    %v2759 = vadd.f32 %v2749, %v2755
    %v2760 = vrot.slane %v2759, 4
    %v2761 = vadd.f32 %v2759, %v2760
    %v2762 = vrot.slane %v2761, 2
    %v2763 = vadd.f32 %v2761, %v2762
    %v2764 = vrot.slane %v2763, 1
    %v2765 = vadd.f32 %v2763, %v2764
    %v2766 = vadd.f32 %v2751, %v2757
    %v2767 = vrot.slane %v2766, 4
    %v2768 = vadd.f32 %v2766, %v2767
    %v2769 = vrot.slane %v2768, 2
    %v2770 = vadd.f32 %v2768, %v2769
    %v2771 = vrot.slane %v2770, 1
    %v2772 = vadd.f32 %v2770, %v2771
    %v2773 = vmul.f32 %v2765, %v491
    %v2774 = vmul.f32 %v2772, %v491
    %v2775 = vmul.f32 %v2749, %v2749
    %v2776 = vmul.f32 %v2751, %v2751
    %v2777 = vmul.f32 %v2755, %v2755
    %v2778 = vmul.f32 %v2757, %v2757
    %v2779 = vadd.f32 %v2775, %v2777
    %v2780 = vrot.slane %v2779, 4
    %v2781 = vadd.f32 %v2779, %v2780
    %v2782 = vrot.slane %v2781, 2
    %v2783 = vadd.f32 %v2781, %v2782
    %v2784 = vrot.slane %v2783, 1
    %v2785 = vadd.f32 %v2783, %v2784
    %v2786 = vadd.f32 %v2776, %v2778
    %v2787 = vrot.slane %v2786, 4
    %v2788 = vadd.f32 %v2786, %v2787
    %v2789 = vrot.slane %v2788, 2
    %v2790 = vadd.f32 %v2788, %v2789
    %v2791 = vrot.slane %v2790, 1
    %v2792 = vadd.f32 %v2790, %v2791
    %v2793 = vmul.f32 %v2785, %v491
    %v2794 = vmul.f32 %v2792, %v491
    %2795 = vmatprep.subr.mxu0 0.0
    %2796 = vmatpush1.msra.mxu0 %v105
    %2797 = vmatprep.subr.mxu0 0.0
    %2798 = vmatpush1.msra.mxu0 %v104
    %2799 = vmatprep.subr.mxu0 0.0
    %2800 = vmatpush1.msra.mxu0 %v103
    %2801 = vmatprep.subr.mxu0 0.0
    %2802 = vmatpush1.msra.mxu0 %v102
    %2803 = vmatprep.subr.mxu0 0.0
    %2804 = vmatpush1.msra.mxu0 %v101
    %2805 = vmatprep.subr.mxu0 0.0
    %2806 = vmatpush1.msra.mxu0 %v100
    %2807 = vmatprep.subr.mxu0 0.0
    %2808 = vmatpush1.msra.mxu0 %v99
    %2809 = vmatprep.subr.mxu0 0.0
    %2810 = vmatpush1.msra.mxu0 %v98
    %2811 = vmatprep.subr.mxu0 0.0
    %2812 = vmatpush1.msra.mxu0 %v97
    %2813 = vmatprep.subr.mxu0 0.0
    %2814 = vmatpush1.msra.mxu0 %v96
    %2815 = vmatprep.subr.mxu0 0.0
    %2816 = vmatpush1.msra.mxu0 %v95
    %2817 = vmatprep.subr.mxu0 0.0
    %2818 = vmatpush1.msra.mxu0 %v94
    %2819 = vmatprep.subr.mxu0 0.0
    %2820 = vmatpush1.msra.mxu0 %v93
    %2821 = vmatprep.subr.mxu0 0.0
    %2822 = vmatpush1.msra.mxu0 %v92
    %2823 = vmatprep.subr.mxu0 0.0
    %2824 = vmatpush1.msra.mxu0 %v91
    %2825 = vmatprep.subr.mxu0 0.0
    %2826 = vmatpush1.msra.mxu0 %v90
    %2827 = vmatprep.subr.mxu0 0.0
    %2828 = vmatpush2.msra.mxu0 %v121
    %2829 = vmatprep.subr.mxu0 0.0
    %2830 = vmatpush2.msra.mxu0 %v120
    %2831 = vmatprep.subr.mxu0 0.0
    %2832 = vmatpush2.msra.mxu0 %v119
    %2833 = vmatprep.subr.mxu0 0.0
    %2834 = vmatpush2.msra.mxu0 %v118
    %2835 = vmatprep.subr.mxu0 0.0
    %2836 = vmatpush2.msra.mxu0 %v117
    %2837 = vmatprep.subr.mxu0 0.0
    %2838 = vmatpush2.msra.mxu0 %v116
    %2839 = vmatprep.subr.mxu0 0.0
    %2840 = vmatpush2.msra.mxu0 %v115
    %2841 = vmatprep.subr.mxu0 0.0
    %2842 = vmatpush2.msra.mxu0 %v114
    %2843 = vmatprep.subr.mxu0 0.0
    %2844 = vmatpush2.msra.mxu0 %v113
    %2845 = vmatprep.subr.mxu0 0.0
    %2846 = vmatpush2.msra.mxu0 %v112
    %2847 = vmatprep.subr.mxu0 0.0
    %2848 = vmatpush2.msra.mxu0 %v111
    %2849 = vmatprep.subr.mxu0 0.0
    %2850 = vmatpush2.msra.mxu0 %v110
    %2851 = vmatprep.subr.mxu0 0.0
    %2852 = vmatpush2.msra.mxu0 %v109
    %2853 = vmatprep.subr.mxu0 0.0
    %2854 = vmatpush2.msra.mxu0 %v108
    %2855 = vmatprep.subr.mxu0 0.0
    %2856 = vmatpush2.msra.mxu0 %v107
    %2857 = vmatprep.subr.mxu0 0.0
    %2858 = vmatpush2.msra.mxu0 %v106
    %2859 = vmatprep.mubr.f32.mxu0 %v2774
    %2860 = vmatmul.mubr.f32.gmra.mxu0 %v2773
    %v2861 = vpop.f32.mrf.mxu0
    %v2862 = vadd.f32 0.0, %v2861
    %v2863 = vpop.f32.mrf.mxu0
    %2864 = vdwg.mxu0
    %2865 = vmatprep.subr.mxu0 0.0
    %2866 = vmatpush1.msra.mxu0 %v105
    %2867 = vmatprep.subr.mxu0 0.0
    %2868 = vmatpush1.msra.mxu0 %v104
    %2869 = vmatprep.subr.mxu0 0.0
    %2870 = vmatpush1.msra.mxu0 %v103
    %2871 = vmatprep.subr.mxu0 0.0
    %2872 = vmatpush1.msra.mxu0 %v102
    %2873 = vmatprep.subr.mxu0 0.0
    %2874 = vmatpush1.msra.mxu0 %v101
    %2875 = vmatprep.subr.mxu0 0.0
    %2876 = vmatpush1.msra.mxu0 %v100
    %2877 = vmatprep.subr.mxu0 0.0
    %2878 = vmatpush1.msra.mxu0 %v99
    %2879 = vmatprep.subr.mxu0 0.0
    %2880 = vmatpush1.msra.mxu0 %v98
    %2881 = vmatprep.subr.mxu0 0.0
    %2882 = vmatpush1.msra.mxu0 %v97
    %2883 = vmatprep.subr.mxu0 0.0
    %2884 = vmatpush1.msra.mxu0 %v96
    %2885 = vmatprep.subr.mxu0 0.0
    %2886 = vmatpush1.msra.mxu0 %v95
    %2887 = vmatprep.subr.mxu0 0.0
    %2888 = vmatpush1.msra.mxu0 %v94
    %2889 = vmatprep.subr.mxu0 0.0
    %2890 = vmatpush1.msra.mxu0 %v93
    %2891 = vmatprep.subr.mxu0 0.0
    %2892 = vmatpush1.msra.mxu0 %v92
    %2893 = vmatprep.subr.mxu0 0.0
    %2894 = vmatpush1.msra.mxu0 %v91
    %2895 = vmatprep.subr.mxu0 0.0
    %2896 = vmatpush1.msra.mxu0 %v90
    %2897 = vmatprep.subr.mxu0 0.0
    %2898 = vmatpush2.msra.mxu0 %v121
    %2899 = vmatprep.subr.mxu0 0.0
    %2900 = vmatpush2.msra.mxu0 %v120
    %2901 = vmatprep.subr.mxu0 0.0
    %2902 = vmatpush2.msra.mxu0 %v119
    %2903 = vmatprep.subr.mxu0 0.0
    %2904 = vmatpush2.msra.mxu0 %v118
    %2905 = vmatprep.subr.mxu0 0.0
    %2906 = vmatpush2.msra.mxu0 %v117
    %2907 = vmatprep.subr.mxu0 0.0
    %2908 = vmatpush2.msra.mxu0 %v116
    %2909 = vmatprep.subr.mxu0 0.0
    %2910 = vmatpush2.msra.mxu0 %v115
    %2911 = vmatprep.subr.mxu0 0.0
    %2912 = vmatpush2.msra.mxu0 %v114
    %2913 = vmatprep.subr.mxu0 0.0
    %2914 = vmatpush2.msra.mxu0 %v113
    %2915 = vmatprep.subr.mxu0 0.0
    %2916 = vmatpush2.msra.mxu0 %v112
    %2917 = vmatprep.subr.mxu0 0.0
    %2918 = vmatpush2.msra.mxu0 %v111
    %2919 = vmatprep.subr.mxu0 0.0
    %2920 = vmatpush2.msra.mxu0 %v110
    %2921 = vmatprep.subr.mxu0 0.0
    %2922 = vmatpush2.msra.mxu0 %v109
    %2923 = vmatprep.subr.mxu0 0.0
    %2924 = vmatpush2.msra.mxu0 %v108
    %2925 = vmatprep.subr.mxu0 0.0
    %2926 = vmatpush2.msra.mxu0 %v107
    %2927 = vmatprep.subr.mxu0 0.0
    %2928 = vmatpush2.msra.mxu0 %v106
    %2929 = vmatprep.mubr.f32.mxu0 %v2794
    %2930 = vmatmul.mubr.f32.gmra.mxu0 %v2793
    %v2931 = vpop.f32.mrf.mxu0
    %v2932 = vadd.f32 0.0, %v2931
    %v2933 = vpop.f32.mrf.mxu0
    %2934 = vdwg.mxu0
    %v2935 = vmul.f32 %v2862, %v2862
    %v2936 = vsub.f32 %v2932, %v2935
    %v2937 = vld [vmem:[%s15] sm:$0x1]
    %v2938 = vadd.f32 %v2936, 1e-05
    %v2939 = vrsqrt.pop %v2938
    %v2940 = vmul.f32 %v2937, %v2939
    %v2941 = vld [vmem:[%s16] sm:$0x1]
    %v2942 = vmul.f32 %v2940, %v2862
    %v2943 = vsub.f32 %v2941, %v2942
    %v2945 = vsel %vm663, %v2940, 0
    %2947 = vmatprep.subr.mxu0 0.0
    %2948 = vmatpush1.msra.mxu0 0.0
    %2949 = vmatprep.subr.mxu0 0.0
    %2950 = vmatpush1.msra.mxu0 0.0
    %2951 = vmatprep.subr.mxu0 0.0
    %2952 = vmatpush1.msra.mxu0 0.0
    %2953 = vmatprep.subr.mxu0 0.0
    %2954 = vmatpush1.msra.mxu0 0.0
    %2955 = vmatprep.subr.mxu0 0.0
    %2956 = vmatpush1.msra.mxu0 0.0
    %2957 = vmatprep.subr.mxu0 0.0
    %2958 = vmatpush1.msra.mxu0 0.0
    %2959 = vmatprep.subr.mxu0 0.0
    %2960 = vmatpush1.msra.mxu0 0.0
    %2961 = vmatprep.subr.mxu0 0.0
    %2962 = vmatpush1.msra.mxu0 0.0
    %2963 = vmatprep.subr.mxu0 0.0
    %2964 = vmatpush1.msra.mxu0 0.0
    %2965 = vmatprep.subr.mxu0 0.0
    %2966 = vmatpush1.msra.mxu0 0.0
    %2967 = vmatprep.subr.mxu0 0.0
    %2968 = vmatpush1.msra.mxu0 0.0
    %2969 = vmatprep.subr.mxu0 0.0
    %2970 = vmatpush1.msra.mxu0 0.0
    %2971 = vmatprep.subr.mxu0 %v129
    %2972 = vmatpush1.msra.mxu0 %v128
    %2973 = vmatprep.subr.mxu0 %v127
    %2974 = vmatpush1.msra.mxu0 %v126
    %2975 = vmatprep.subr.mxu0 %v125
    %2976 = vmatpush1.msra.mxu0 %v124
    %2977 = vmatprep.subr.mxu0 %v123
    %2978 = vmatpush1.msra.mxu0 %v122
    %2979 = vmatprep.subr.mxu0 0.0
    %2980 = vmatpush2.msra.mxu0 0.0
    %2981 = vmatprep.subr.mxu0 0.0
    %2982 = vmatpush2.msra.mxu0 0.0
    %2983 = vmatprep.subr.mxu0 0.0
    %2984 = vmatpush2.msra.mxu0 0.0
    %2985 = vmatprep.subr.mxu0 0.0
    %2986 = vmatpush2.msra.mxu0 0.0
    %2987 = vmatprep.subr.mxu0 0.0
    %2988 = vmatpush2.msra.mxu0 0.0
    %2989 = vmatprep.subr.mxu0 0.0
    %2990 = vmatpush2.msra.mxu0 0.0
    %2991 = vmatprep.subr.mxu0 0.0
    %2992 = vmatpush2.msra.mxu0 0.0
    %2993 = vmatprep.subr.mxu0 0.0
    %2994 = vmatpush2.msra.mxu0 0.0
    %2995 = vmatprep.subr.mxu0 0.0
    %2996 = vmatpush2.msra.mxu0 0.0
    %2997 = vmatprep.subr.mxu0 0.0
    %2998 = vmatpush2.msra.mxu0 0.0
    %2999 = vmatprep.subr.mxu0 0.0
    %3000 = vmatpush2.msra.mxu0 0.0
    %3001 = vmatprep.subr.mxu0 0.0
    %3002 = vmatpush2.msra.mxu0 0.0
    %3003 = vmatprep.subr.mxu0 0.0
    %3004 = vmatpush2.msra.mxu0 0.0
    %3005 = vmatprep.subr.mxu0 0.0
    %3006 = vmatpush2.msra.mxu0 0.0
    %3007 = vmatprep.subr.mxu0 0.0
    %3008 = vmatpush2.msra.mxu0 0.0
    %3009 = vmatprep.subr.mxu0 0.0
    %3010 = vmatpush2.msra.mxu0 0.0
    %3011 = vmatprep.mubr.f32.mxu0 0.0
    %3012 = vmatmul.mubr.f32.gmra.mxu0 %v2945
    %v3013 = vpop.f32.mrf.mxu0
    %v3014 = vadd.f32 0.0, %v3013
    %v3015 = vpop.f32.mrf.mxu0
    %v3016 = vadd.f32 0.0, %v3015
    %3017 = vdwg.mxu0
    %v3019 = vsel %vm663, %v2943, 0
    %3021 = vmatprep.subr.mxu0 0.0
    %3022 = vmatpush1.msra.mxu0 0.0
    %3023 = vmatprep.subr.mxu0 0.0
    %3024 = vmatpush1.msra.mxu0 0.0
    %3025 = vmatprep.subr.mxu0 0.0
    %3026 = vmatpush1.msra.mxu0 0.0
    %3027 = vmatprep.subr.mxu0 0.0
    %3028 = vmatpush1.msra.mxu0 0.0
    %3029 = vmatprep.subr.mxu0 0.0
    %3030 = vmatpush1.msra.mxu0 0.0
    %3031 = vmatprep.subr.mxu0 0.0
    %3032 = vmatpush1.msra.mxu0 0.0
    %3033 = vmatprep.subr.mxu0 0.0
    %3034 = vmatpush1.msra.mxu0 0.0
    %3035 = vmatprep.subr.mxu0 0.0
    %3036 = vmatpush1.msra.mxu0 0.0
    %3037 = vmatprep.subr.mxu0 0.0
    %3038 = vmatpush1.msra.mxu0 0.0
    %3039 = vmatprep.subr.mxu0 0.0
    %3040 = vmatpush1.msra.mxu0 0.0
    %3041 = vmatprep.subr.mxu0 0.0
    %3042 = vmatpush1.msra.mxu0 0.0
    %3043 = vmatprep.subr.mxu0 0.0
    %3044 = vmatpush1.msra.mxu0 0.0
    %3045 = vmatprep.subr.mxu0 %v129
    %3046 = vmatpush1.msra.mxu0 %v128
    %3047 = vmatprep.subr.mxu0 %v127
    %3048 = vmatpush1.msra.mxu0 %v126
    %3049 = vmatprep.subr.mxu0 %v125
    %3050 = vmatpush1.msra.mxu0 %v124
    %3051 = vmatprep.subr.mxu0 %v123
    %3052 = vmatpush1.msra.mxu0 %v122
    %3053 = vmatprep.subr.mxu0 0.0
    %3054 = vmatpush2.msra.mxu0 0.0
    %3055 = vmatprep.subr.mxu0 0.0
    %3056 = vmatpush2.msra.mxu0 0.0
    %3057 = vmatprep.subr.mxu0 0.0
    %3058 = vmatpush2.msra.mxu0 0.0
    %3059 = vmatprep.subr.mxu0 0.0
    %3060 = vmatpush2.msra.mxu0 0.0
    %3061 = vmatprep.subr.mxu0 0.0
    %3062 = vmatpush2.msra.mxu0 0.0
    %3063 = vmatprep.subr.mxu0 0.0
    %3064 = vmatpush2.msra.mxu0 0.0
    %3065 = vmatprep.subr.mxu0 0.0
    %3066 = vmatpush2.msra.mxu0 0.0
    %3067 = vmatprep.subr.mxu0 0.0
    %3068 = vmatpush2.msra.mxu0 0.0
    %3069 = vmatprep.subr.mxu0 0.0
    %3070 = vmatpush2.msra.mxu0 0.0
    %3071 = vmatprep.subr.mxu0 0.0
    %3072 = vmatpush2.msra.mxu0 0.0
    %3073 = vmatprep.subr.mxu0 0.0
    %3074 = vmatpush2.msra.mxu0 0.0
    %3075 = vmatprep.subr.mxu0 0.0
    %3076 = vmatpush2.msra.mxu0 0.0
    %3077 = vmatprep.subr.mxu0 0.0
    %3078 = vmatpush2.msra.mxu0 0.0
    %3079 = vmatprep.subr.mxu0 0.0
    %3080 = vmatpush2.msra.mxu0 0.0
    %3081 = vmatprep.subr.mxu0 0.0
    %3082 = vmatpush2.msra.mxu0 0.0
    %3083 = vmatprep.subr.mxu0 0.0
    %3084 = vmatpush2.msra.mxu0 0.0
    %3085 = vmatprep.mubr.f32.mxu0 0.0
    %3086 = vmatmul.mubr.f32.gmra.mxu0 %v3019
    %v3087 = vpop.f32.mrf.mxu0
    %v3088 = vadd.f32 0.0, %v3087
    %v3089 = vpop.f32.mrf.mxu0
    %v3090 = vadd.f32 0.0, %v3089
    %3091 = vdwg.mxu0
    %v3092 = vlaneseq
    %v3093 = vshrl.u32 %v3092, 7
    %v3094 = vsub.s32 0, %v3093
    %v3095 = vrot.slane %v3014, %v3094
    %v3096 = vlaneseq
    %v3097 = vshrl.u32 %v3096, 7
    %v3098 = vsub.s32 0, %v3097
    %v3099 = vrot.slane %v3016, %v3098
    %v3100 = vmul.f32 %v2749, %v3095
    %v3101 = vmul.f32 %v2751, %v3099
    %v3102 = vmul.f32 %v2755, %v3095
    %v3103 = vmul.f32 %v2757, %v3099
    %v3104 = vlaneseq
    %v3105 = vshrl.u32 %v3104, 7
    %v3106 = vsub.s32 0, %v3105
    %v3107 = vrot.slane %v3088, %v3106
    %v3108 = vlaneseq
    %v3109 = vshrl.u32 %v3108, 7
    %v3110 = vsub.s32 0, %v3109
    %v3111 = vrot.slane %v3090, %v3110
    %v3112 = vadd.f32 %v3100, %v3107
    %v3113 = vadd.f32 %v3101, %v3111
    %v3114 = vadd.f32 %v3102, %v3107
    %v3115 = vadd.f32 %v3103, %v3111
    %v3116 = vmax.f32 %v3112, 0.0
    %v3117 = vmax.f32 %v3113, 0.0
    %v3118 = vmax.f32 %v3114, 0.0
    %v3119 = vmax.f32 %v3115, 0.0
    %3120 = vmatprep.subr.mxu0 0.0
    %3121 = vmatpush1.msra.mxu0 0.0
    %3122 = vmatprep.subr.mxu0 0.0
    %3123 = vmatpush1.msra.mxu0 0.0
    %3124 = vmatprep.subr.mxu0 0.0
    %3125 = vmatpush1.msra.mxu0 0.0
    %3126 = vmatprep.subr.mxu0 0.0
    %3127 = vmatpush1.msra.mxu0 0.0
    %3128 = vmatprep.subr.mxu0 0.0
    %3129 = vmatpush1.msra.mxu0 0.0
    %3130 = vmatprep.subr.mxu0 0.0
    %3131 = vmatpush1.msra.mxu0 0.0
    %3132 = vmatprep.subr.mxu0 0.0
    %3133 = vmatpush1.msra.mxu0 0.0
    %3134 = vmatprep.subr.mxu0 0.0
    %3135 = vmatpush1.msra.mxu0 0.0
    %3136 = vmatprep.subr.mxu0 0.0
    %3137 = vmatpush1.msra.mxu0 0.0
    %3138 = vmatprep.subr.mxu0 0.0
    %3139 = vmatpush1.msra.mxu0 0.0
    %3140 = vmatprep.subr.mxu0 0.0
    %3141 = vmatpush1.msra.mxu0 0.0
    %3142 = vmatprep.subr.mxu0 0.0
    %3143 = vmatpush1.msra.mxu0 0.0
    %3144 = vmatprep.subr.mxu0 0.0
    %3145 = vmatpush1.msra.mxu0 0.0
    %3146 = vmatprep.subr.mxu0 0.0
    %3147 = vmatpush1.msra.mxu0 0.0
    %3148 = vmatprep.subr.mxu0 %v3119
    %3149 = vmatpush1.msra.mxu0 %v3118
    %3150 = vmatprep.subr.mxu0 %v3117
    %3151 = vmatpush1.msra.mxu0 %v3116
    %3152 = vmatprep.subr.mxu0 0.0
    %3153 = vmatpush2.msra.mxu0 0.0
    %3154 = vmatprep.subr.mxu0 0.0
    %3155 = vmatpush2.msra.mxu0 0.0
    %3156 = vmatprep.subr.mxu0 0.0
    %3157 = vmatpush2.msra.mxu0 0.0
    %3158 = vmatprep.subr.mxu0 0.0
    %3159 = vmatpush2.msra.mxu0 0.0
    %3160 = vmatprep.subr.mxu0 0.0
    %3161 = vmatpush2.msra.mxu0 0.0
    %3162 = vmatprep.subr.mxu0 0.0
    %3163 = vmatpush2.msra.mxu0 0.0
    %3164 = vmatprep.subr.mxu0 0.0
    %3165 = vmatpush2.msra.mxu0 0.0
    %3166 = vmatprep.subr.mxu0 0.0
    %3167 = vmatpush2.msra.mxu0 0.0
    %3168 = vmatprep.subr.mxu0 0.0
    %3169 = vmatpush2.msra.mxu0 0.0
    %3170 = vmatprep.subr.mxu0 0.0
    %3171 = vmatpush2.msra.mxu0 0.0
    %3172 = vmatprep.subr.mxu0 0.0
    %3173 = vmatpush2.msra.mxu0 0.0
    %3174 = vmatprep.subr.mxu0 0.0
    %3175 = vmatpush2.msra.mxu0 0.0
    %3176 = vmatprep.subr.mxu0 0.0
    %3177 = vmatpush2.msra.mxu0 0.0
    %3178 = vmatprep.subr.mxu0 0.0
    %3179 = vmatpush2.msra.mxu0 0.0
    %3180 = vmatprep.subr.mxu0 0.0
    %3181 = vmatpush2.msra.mxu0 0.0
    %3182 = vmatprep.subr.mxu0 0.0
    %3183 = vmatpush2.msra.mxu0 0.0
    %3184 = vmatprep.mubr.f32.mxu0 0.0
    %3185 = vmatmul.mubr.f32.gmra.mxu0 %v134
    %v3186 = vpop.f32.mrf.mxu0
    %v3187 = vadd.f32 0.0, %v3186
    %v3188 = vpop.f32.mrf.mxu0
    %v3189 = vadd.f32 0.0, %v3188
    %3190 = vdwg.mxu0
    %v3191 = vld [vmem:[%s25] sm:$0xff]
    %v3192 = vld [vmem:[%s25 + $0x8] sm:$0xff]
    %v3193 = vld [vmem:[%s25 + $0x10] sm:$0xff]
    %v3194 = vld [vmem:[%s25 + $0x18] sm:$0xff]
    %v3195 = vld [vmem:[%s25 + $0x20] sm:$0xff]
    %v3196 = vld [vmem:[%s25 + $0x28] sm:$0xff]
    %v3197 = vld [vmem:[%s25 + $0x30] sm:$0xff]
    %v3198 = vld [vmem:[%s25 + $0x38] sm:$0xff]
    %v3199 = vld [vmem:[%s25 + $0x40] sm:$0xff]
    %v3200 = vld [vmem:[%s25 + $0x48] sm:$0xff]
    %v3201 = vld [vmem:[%s25 + $0x50] sm:$0xff]
    %v3202 = vld [vmem:[%s25 + $0x58] sm:$0xff]
    %v3203 = vld [vmem:[%s25 + $0x60] sm:$0xff]
    %v3204 = vld [vmem:[%s25 + $0x68] sm:$0xff]
    %v3205 = vld [vmem:[%s25 + $0x70] sm:$0xff]
    %v3206 = vld [vmem:[%s25 + $0x78] sm:$0xff]
    %v3207 = vld [vmem:[%s25 + $0x80] sm:$0xff]
    %v3208 = vld [vmem:[%s25 + $0x88] sm:$0xff]
    %v3209 = vld [vmem:[%s25 + $0x90] sm:$0xff]
    %v3210 = vld [vmem:[%s25 + $0x98] sm:$0xff]
    %v3211 = vld [vmem:[%s25 + $0xa0] sm:$0xff]
    %v3212 = vld [vmem:[%s25 + $0xa8] sm:$0xff]
    %v3213 = vld [vmem:[%s25 + $0xb0] sm:$0xff]
    %v3214 = vld [vmem:[%s25 + $0xb8] sm:$0xff]
    %v3215 = vld [vmem:[%s25 + $0xc0] sm:$0xff]
    %v3216 = vld [vmem:[%s25 + $0xc8] sm:$0xff]
    %v3217 = vld [vmem:[%s25 + $0xd0] sm:$0xff]
    %v3218 = vld [vmem:[%s25 + $0xd8] sm:$0xff]
    %v3219 = vld [vmem:[%s25 + $0xe0] sm:$0xff]
    %v3220 = vld [vmem:[%s25 + $0xe8] sm:$0xff]
    %v3221 = vld [vmem:[%s25 + $0xf0] sm:$0xff]
    %v3222 = vld [vmem:[%s25 + $0xf8] sm:$0xff]
    %v3223 = vld [vmem:[%s26] sm:$0x1]
    %v3225 = vlaneseq
    %v3226 = vshrl.u32 %v3225, 7
    %v3227 = vsub.s32 0, %v3226
    %v3228 = vrot.slane %v3223, %v3227
    %3230 = vmatprep.subr.mxu0 0.0
    %3231 = vmatpush1.msra.mxu0 %v3206
    %3232 = vmatprep.subr.mxu0 0.0
    %3233 = vmatpush1.msra.mxu0 %v3205
    %3234 = vmatprep.subr.mxu0 0.0
    %3235 = vmatpush1.msra.mxu0 %v3204
    %3236 = vmatprep.subr.mxu0 0.0
    %3237 = vmatpush1.msra.mxu0 %v3203
    %3238 = vmatprep.subr.mxu0 0.0
    %3239 = vmatpush1.msra.mxu0 %v3202
    %3240 = vmatprep.subr.mxu0 0.0
    %3241 = vmatpush1.msra.mxu0 %v3201
    %3242 = vmatprep.subr.mxu0 0.0
    %3243 = vmatpush1.msra.mxu0 %v3200
    %3244 = vmatprep.subr.mxu0 0.0
    %3245 = vmatpush1.msra.mxu0 %v3199
    %3246 = vmatprep.subr.mxu0 0.0
    %3247 = vmatpush1.msra.mxu0 %v3198
    %3248 = vmatprep.subr.mxu0 0.0
    %3249 = vmatpush1.msra.mxu0 %v3197
    %3250 = vmatprep.subr.mxu0 0.0
    %3251 = vmatpush1.msra.mxu0 %v3196
    %3252 = vmatprep.subr.mxu0 0.0
    %3253 = vmatpush1.msra.mxu0 %v3195
    %3254 = vmatprep.subr.mxu0 0.0
    %3255 = vmatpush1.msra.mxu0 %v3194
    %3256 = vmatprep.subr.mxu0 0.0
    %3257 = vmatpush1.msra.mxu0 %v3193
    %3258 = vmatprep.subr.mxu0 0.0
    %3259 = vmatpush1.msra.mxu0 %v3192
    %3260 = vmatprep.subr.mxu0 0.0
    %3261 = vmatpush1.msra.mxu0 %v3191
    %3262 = vmatprep.subr.mxu0 0.0
    %3263 = vmatpush2.msra.mxu0 %v3222
    %3264 = vmatprep.subr.mxu0 0.0
    %3265 = vmatpush2.msra.mxu0 %v3221
    %3266 = vmatprep.subr.mxu0 0.0
    %3267 = vmatpush2.msra.mxu0 %v3220
    %3268 = vmatprep.subr.mxu0 0.0
    %3269 = vmatpush2.msra.mxu0 %v3219
    %3270 = vmatprep.subr.mxu0 0.0
    %3271 = vmatpush2.msra.mxu0 %v3218
    %3272 = vmatprep.subr.mxu0 0.0
    %3273 = vmatpush2.msra.mxu0 %v3217
    %3274 = vmatprep.subr.mxu0 0.0
    %3275 = vmatpush2.msra.mxu0 %v3216
    %3276 = vmatprep.subr.mxu0 0.0
    %3277 = vmatpush2.msra.mxu0 %v3215
    %3278 = vmatprep.subr.mxu0 0.0
    %3279 = vmatpush2.msra.mxu0 %v3214
    %3280 = vmatprep.subr.mxu0 0.0
    %3281 = vmatpush2.msra.mxu0 %v3213
    %3282 = vmatprep.subr.mxu0 0.0
    %3283 = vmatpush2.msra.mxu0 %v3212
    %3284 = vmatprep.subr.mxu0 0.0
    %3285 = vmatpush2.msra.mxu0 %v3211
    %3286 = vmatprep.subr.mxu0 0.0
    %3287 = vmatpush2.msra.mxu0 %v3210
    %3288 = vmatprep.subr.mxu0 0.0
    %3289 = vmatpush2.msra.mxu0 %v3209
    %3290 = vmatprep.subr.mxu0 0.0
    %3291 = vmatpush2.msra.mxu0 %v3208
    %3292 = vmatprep.subr.mxu0 0.0
    %3293 = vmatpush2.msra.mxu0 %v3207
    %3294 = vmatprep.mubr.f32.mxu0 %v3189
    %3295 = vmatmul.mubr.f32.gmra.mxu0 %v3187
    %v3296 = vpop.f32.mrf.mxu0
    %v3297 = vadd.f32 %v3228, %v3296
    %v3298 = vpop.f32.mrf.mxu0
    %3299 = vdwg.mxu0
    %v3300 = vadd.f32 %v2540, %v3297
    %vm3301 = vcmask 25600
    %v3302 = vsel %vm3301, %v3300, -inf
    %3303 = vmax.xlane.f32.xlu0 %v3302
    %v3304 = vpop.xlane.xlu0 %3303
    %v3305 = vsub.f32 %v3300, %v3304
    %v3306 = vmul.f32 %v3305, 1.442695
    %v3307 = vpow.pop %v3306
    %v3308 = vsel %vm3301, %v3307, 0.0
    %3309 = vadd.xlane.f32.xlu0 %v3308
    %v3310 = vpop.xlane.xlu0 %3309
    %v3311 = vlog2.pop %v3310
    %v3312 = vmul.f32 %v3311, 0.6931472
    %v3313 = vsub.f32 %v3305, %v3312
    %3314 = vst.msk [vmem:[#allocation2] sm:$0x3] %vm3301, %v3313
    // Predicated region
    $region110: #{_lambda_.1} parent=1 // pred_check
      _
    $region111: #{_lambda_.1} parent=1 // pred_check_branch
      %3316 = sbr.rel (0) target = $region113
    $region112: #{_lambda_.1} parent=1 // pred_region
      %s3318 = ssub.s32 32, 32
      %3319 = vsyncadd [#allocation3], %s3318
      %s3321 = sshll.u32 [#allocation2], 4
      %s3322 = int_to_ptr.vmem [resolvable:$true] %s3321
      %3324 = dma.vmem_to_hbm [thread:$0]  %s3322, 32, %s27, [#allocation3]
    $region113: #{_lambda_.1} parent=1 // pred_fallthru
      _
    // Predicated region
    $region114: #{_lambda_.1} parent=1 // pred_check
      _
    $region115: #{_lambda_.1} parent=1 // pred_check_branch
      %3326 = sbr.rel (0) target = $region117
    $region116: #{_lambda_.1} parent=1 // pred_region
      %3327 = dma.done [#allocation3], 32
    $region117: #{_lambda_.1} parent=1 // pred_fallthru
      _
    %3328 = vsyncpa [#allocation3], 1

</llo_original>
